<compile_context>
chip_gen: v7x
topology: tpu7x:2x2x1
jax: 0.10.0
libtpu: 0.0.40
codegen_flags: <defaults>
</compile_context>

<pallas_src>
import math
import functools

import jax
import jax.numpy as jnp
from jax import lax
from jax.experimental import pallas as pl
from jax.experimental.pallas import tpu as pltpu


_MASK_VALUE = -1e30                       # finite (online-softmax safe) instead of -inf
_DEFAULT_VMEM_LIMIT = 64 * 1024 * 1024    # explicit scoped-VMEM budget (fits v7x's 64 MiB)


def _pick_block(dim, target):
    """Largest divisor of `dim` that is <= target (prefer 128/8-aligned).

    Never falls back to the full extent for large non-divisible dims, so a
    weird sequence length degrades tile size instead of blowing VMEM.
    """
    if dim <= target:
        return dim
    for align in (128, 8, 1):
        cand = (target // align) * align
        while cand >= align:
            if cand > 0 and dim % cand == 0:
                return cand
            cand -= align
    return dim


# ----------------------------------------------------------------------------
# Trace-time weight preparation (in a real module this is done once at init).
#  - splits q_b / kv_a / kv_b into nope / rope / v pieces (lane-aligned matmuls
#    instead of non-aligned result slices inside the kernel)
#  - permutes the rope columns to [even | odd] split layout and builds the
#    signed-permuted "rotate-half" copies, so RoPE becomes
#        pe_out = (x @ W_pe) * cos + (x @ W_pe_rot) * sin
#    with no in-kernel interleave relayout.  Scores are permutation-invariant.
#  - folds the softmax scale (1/sqrt(q_head_dim)) into the q weights.
# ----------------------------------------------------------------------------
def prepare_mla_weights(params, *, num_heads, qk_nope_head_dim, qk_rope_head_dim,
                        v_head_dim, kv_lora_rank, compute_dtype):
    dn, dr, dv, h = qk_nope_head_dim, qk_rope_head_dim, v_head_dim, num_heads
    scale = 1.0 / math.sqrt(dn + dr)
    cdt = compute_dtype

    w_qa = params["w_qa"]
    rq = w_qa.shape[1]
    w_qb = params["w_qb"].reshape(rq, h, dn + dr)
    w_qb_nope = (w_qb[:, :, :dn] * scale).reshape(rq, h * dn)
    pe = w_qb[:, :, dn:]                                   # (rq, h, dr) interleaved
    pe_even, pe_odd = pe[:, :, 0::2], pe[:, :, 1::2]
    w_qb_pe = (jnp.concatenate([pe_even, pe_odd], -1) * scale).reshape(rq, h * dr)
    w_qb_per = (jnp.concatenate([-pe_odd, pe_even], -1) * scale).reshape(rq, h * dr)

    w_kva = params["w_kva"]
    w_kva_c = w_kva[:, :kv_lora_rank]
    kpe = w_kva[:, kv_lora_rank:]                          # (d, dr) interleaved
    kpe_even, kpe_odd = kpe[:, 0::2], kpe[:, 1::2]
    w_kva_pe = jnp.concatenate([kpe_even, kpe_odd], -1)
    w_kva_per = jnp.concatenate([-kpe_odd, kpe_even], -1)

    rkv = kv_lora_rank
    w_kvb = params["w_kvb"].reshape(rkv, h, dn + dv)
    w_kvb_nope = w_kvb[:, :, :dn].reshape(rkv, h * dn)
    w_kvb_v = w_kvb[:, :, dn:].reshape(rkv, h * dv)

    return {
        "w_qa": w_qa.astype(cdt),
        "w_qb_nope": w_qb_nope.astype(cdt),
        "w_qb_pe": w_qb_pe.astype(cdt),
        "w_qb_per": w_qb_per.astype(cdt),
        "w_kva_c": w_kva_c.astype(cdt),
        "w_kva_pe": w_kva_pe.astype(cdt),
        "w_kva_per": w_kva_per.astype(cdt),
        "w_kvb_nope": w_kvb_nope.astype(cdt),
        "w_kvb_v": w_kvb_v.astype(cdt),
        "w_o": params["w_o"].astype(cdt),
    }


def rope_tables(n, rope_dim, base, offset=0):
    """cos/sin tables (n, rope_dim) in [cos|cos] / [sin|sin] split layout."""
    half = rope_dim // 2
    theta = base ** (-2.0 * jnp.arange(half, dtype=jnp.float32) / rope_dim)
    pos = jnp.arange(n, dtype=jnp.float32) + offset
    ang = pos[:, None] * theta[None, :]
    return jnp.tile(jnp.cos(ang), (1, 2)), jnp.tile(jnp.sin(ang), (1, 2))


# ----------------------------------------------------------------------------
# Fused low-rank projections + RoPE: x read once per tile, intermediates
# (q_a, compressed_kv) never leave the chip.
#   outputs (flat per-head layout, directly consumed by the attention kernel):
#     q_nope (b, n, h*dn) scaled      q_pe (b, n, h*dr) scaled + rotated
#     k_nope (b, n, h*dn)             k_pe (b, n, dr)   rotated, shared (MQA)
#     v      (b, n, h*dv)
# ----------------------------------------------------------------------------
def _proj_kernel(x_ref, wqa_ref, wqbn_ref, wqbp_ref, wqbr_ref,
                 wkac_ref, wkap_ref, wkar_ref, wkbn_ref, wkbv_ref,
                 cos_ref, sin_ref,
                 qn_ref, qp_ref, kn_ref, kp_ref, v_ref, *, num_heads):
    f32 = jnp.float32
    x = x_ref[0]                                            # (tm, d)
    mxd = wqa_ref.dtype                                     # compute dtype for MXU ops

    # --- q path: low-rank intermediate stays on-chip ---
    # NOTE: in bf16 mode q_a is quantized to bf16 before the second matmul
    # (one extra rounding vs the reference); keep compute_dtype=f32 if that matters.
    q_a = jnp.dot(x, wqa_ref[...], preferred_element_type=f32).astype(mxd)   # (tm, rq)
    qn_ref[0] = jnp.dot(q_a, wqbn_ref[...],
                        preferred_element_type=f32).astype(qn_ref.dtype)
    q_pe = jnp.dot(q_a, wqbp_ref[...], preferred_element_type=f32)           # (tm, h*dr)
    q_per = jnp.dot(q_a, wqbr_ref[...], preferred_element_type=f32)          # rotate-half
    cos = cos_ref[...]                                      # (tm, dr) f32
    sin = sin_ref[...]
    cos_h = jnp.tile(cos, (1, num_heads))                   # (tm, h*dr)
    sin_h = jnp.tile(sin, (1, num_heads))
    qp_ref[0] = (q_pe * cos_h + q_per * sin_h).astype(qp_ref.dtype)

    # --- kv path: shared low-rank kv_a projection, rope on k_pe (per position,
    #     BEFORE any head broadcast - k_pe stays (tm, dr)) ---
    c_kv = jnp.dot(x, wkac_ref[...], preferred_element_type=f32).astype(mxd)  # (tm, rkv)
    k_pe = jnp.dot(x, wkap_ref[...], preferred_element_type=f32)              # (tm, dr)
    k_per = jnp.dot(x, wkar_ref[...], preferred_element_type=f32)
    kp_ref[0] = (k_pe * cos + k_per * sin).astype(kp_ref.dtype)
    kn_ref[0] = jnp.dot(c_kv, wkbn_ref[...],
                        preferred_element_type=f32).astype(kn_ref.dtype)
    v_ref[0] = jnp.dot(c_kv, wkbv_ref[...],
                       preferred_element_type=f32).astype(v_ref.dtype)


def fused_projection(x, w, cos_t, sin_t, *, num_heads, dn, dr, dv,
                     block_target=256, vmem_limit_bytes=_DEFAULT_VMEM_LIMIT):
    b, n, d = x.shape
    h = num_heads
    tm = _pick_block(n, block_target)
    cdt = x.dtype
    kernel = functools.partial(_proj_kernel, num_heads=h)

    # Weights are whole-array resident with constant index maps (fine at demo /
    # moderate ranks).  TODO(synk): for very large ranks, tile w_qb*/w_kvb*
    # along their output dim with an extra grid axis.
    def _w(arr):
        return pl.BlockSpec(arr.shape, lambda bi, j: (0, 0))

    grid_spec = pltpu.PrefetchScalarGridSpec(
        num_scalar_prefetch=0,
        grid=(b, n // tm),
        in_specs=[
            pl.BlockSpec((1, tm, d), lambda bi, j: (bi, j, 0)),
            _w(w["w_qa"]), _w(w["w_qb_nope"]), _w(w["w_qb_pe"]), _w(w["w_qb_per"]),
            _w(w["w_kva_c"]), _w(w["w_kva_pe"]), _w(w["w_kva_per"]),
            _w(w["w_kvb_nope"]), _w(w["w_kvb_v"]),
            pl.BlockSpec((tm, dr), lambda bi, j: (j, 0)),   # cos
            pl.BlockSpec((tm, dr), lambda bi, j: (j, 0)),   # sin
        ],
        out_specs=(
            pl.BlockSpec((1, tm, h * dn), lambda bi, j: (bi, j, 0)),
            pl.BlockSpec((1, tm, h * dr), lambda bi, j: (bi, j, 0)),
            pl.BlockSpec((1, tm, h * dn), lambda bi, j: (bi, j, 0)),
            pl.BlockSpec((1, tm, dr), lambda bi, j: (bi, j, 0)),
            pl.BlockSpec((1, tm, h * dv), lambda bi, j: (bi, j, 0)),
        ),
    )
    return pl.pallas_call(
        kernel,
        out_shape=(
            jax.ShapeDtypeStruct((b, n, h * dn), cdt),
            jax.ShapeDtypeStruct((b, n, h * dr), cdt),
            jax.ShapeDtypeStruct((b, n, h * dn), cdt),
            jax.ShapeDtypeStruct((b, n, dr), cdt),
            jax.ShapeDtypeStruct((b, n, h * dv), cdt),
        ),
        grid_spec=grid_spec,
        compiler_params=pltpu.CompilerParams(
            dimension_semantics=("parallel", "parallel"),
            vmem_limit_bytes=vmem_limit_bytes),
    )(x, w["w_qa"], w["w_qb_nope"], w["w_qb_pe"], w["w_qb_per"],
      w["w_kva_c"], w["w_kva_pe"], w["w_kva_per"],
      w["w_kvb_nope"], w["w_kvb_v"], cos_t, sin_t)


# ----------------------------------------------------------------------------
# Flash-style causal attention over head groups.
#   grid = (b, h/G, q_tiles, kv_tiles); kv is the innermost ("arbitrary") axis
#   q already carries the softmax scale and RoPE; k_pe is shared per group.
#   Above-diagonal kv tiles do no compute; their DMA index is clamped.
#   NOTE: the kv grid axis still iterates all tiles (skipped steps cost only
#   the ~0.35us grid-step overhead); an in-kernel kv loop would remove that.
# ----------------------------------------------------------------------------
def _flash_kernel(qn_ref, qp_ref, kn_ref, kp_ref, v_ref, o_ref,
                  m_sc, l_sc, acc_sc, *, heads, dn, dr, dv, approx_reciprocal):
    qi = pl.program_id(2)
    ki = pl.program_id(3)
    tq = qn_ref.shape[1]
    tk = kn_ref.shape[1]

    @pl.when(ki == 0)
    def _init():
        m_sc[...] = jnp.full_like(m_sc, _MASK_VALUE)
        l_sc[...] = jnp.zeros_like(l_sc)
        acc_sc[...] = jnp.zeros_like(acc_sc)

    def _update(apply_mask):
        kp = kp_ref[0]                                      # (tk, dr), shared by group
        if apply_mask:   # mask built only on the diagonal tile
            row = lax.broadcasted_iota(jnp.int32, (tq, tk), 0)
            col = lax.broadcasted_iota(jnp.int32, (tq, tk), 1)
            allowed = col <= row
        for g in range(heads):                              # static head-group loop
            qn = qn_ref[0, :, g * dn:(g + 1) * dn]          # (tq, dn)
            qp = qp_ref[0, :, g * dr:(g + 1) * dr]          # (tq, dr)
            kn = kn_ref[0, :, g * dn:(g + 1) * dn]          # (tk, dn)
            vv = v_ref[0, :, g * dv:(g + 1) * dv]           # (tk, dv)
            # q is already scaled; contract last dims (no explicit k transpose)
            s = lax.dot_general(qn, kn, (((1,), (1,)), ((), ())),
                                preferred_element_type=jnp.float32)
            s = s + lax.dot_general(qp, kp, (((1,), (1,)), ((), ())),
                                    preferred_element_type=jnp.float32)
            if apply_mask:
                s = jnp.where(allowed, s, _MASK_VALUE)
            m_prev = m_sc[g]                                # (tq, 1)
            m_new = jnp.maximum(m_prev, jnp.max(s, axis=-1, keepdims=True))
            alpha = jnp.exp(m_prev - m_new)
            p = jnp.exp(s - m_new)                          # f32 stats
            l_sc[g] = alpha * l_sc[g] + jnp.sum(p, axis=-1, keepdims=True)
            pv = jnp.dot(p.astype(vv.dtype), vv, preferred_element_type=jnp.float32)
            sl = slice(g * dv, (g + 1) * dv)
            acc_sc[:, sl] = alpha * acc_sc[:, sl] + pv      # lane-dense accumulator
            m_sc[g] = m_new

    @pl.when(ki < qi)
    def _below_diag():
        _update(False)

    @pl.when(ki == qi)
    def _diag_and_finalize():
        _update(True)
        for g in range(heads):
            if approx_reciprocal:
                inv = pl.reciprocal(l_sc[g], approx=True)   # EUP slot, ~free
            else:
                inv = 1.0 / l_sc[g]
            sl = slice(g * dv, (g + 1) * dv)
            acc_sc[:, sl] = acc_sc[:, sl] * inv
        # single lane-dense store of (tq, G*dv)
        o_ref[0] = acc_sc[...].astype(o_ref.dtype)


def flash_mla_attention(q_nope, q_pe, k_nope, k_pe, v, *, num_heads,
                        heads_per_block=4, block_target=256,
                        approx_reciprocal=True,
                        vmem_limit_bytes=_DEFAULT_VMEM_LIMIT):
    b, n, _ = q_nope.shape
    dn = q_nope.shape[-1] // num_heads
    dr = q_pe.shape[-1] // num_heads
    dv = v.shape[-1] // num_heads
    G = _pick_block(num_heads, heads_per_block)             # divides num_heads
    # NOTE: 128 is the better target on v5e; 256 on v6e/v7x.
    tq = tk = _pick_block(n, block_target)
    grid = (b, num_heads // G, n // tq, n // tk)

    kernel = functools.partial(_flash_kernel, heads=G, dn=dn, dr=dr, dv=dv,
                               approx_reciprocal=approx_reciprocal)
    return pl.pallas_call(
        kernel,
        out_shape=jax.ShapeDtypeStruct((b, n, num_heads * dv), q_nope.dtype),
        grid_spec=pltpu.PrefetchScalarGridSpec(
            num_scalar_prefetch=0,
            grid=grid,
            in_specs=[
                pl.BlockSpec((1, tq, G * dn),
                             lambda bi, hg, qi, ki: (bi, qi, hg)),
                pl.BlockSpec((1, tq, G * dr),
                             lambda bi, hg, qi, ki: (bi, qi, hg)),
                # KV indices clamped so skipped (above-diagonal) steps re-use
                # the already-resident block (no wasted DMA).
                pl.BlockSpec((1, tk, G * dn),
                             lambda bi, hg, qi, ki: (bi, jnp.minimum(ki, qi), hg)),
                pl.BlockSpec((1, tk, dr),
                             lambda bi, hg, qi, ki: (bi, jnp.minimum(ki, qi), 0)),
                pl.BlockSpec((1, tk, G * dv),
                             lambda bi, hg, qi, ki: (bi, jnp.minimum(ki, qi), hg)),
            ],
            out_specs=pl.BlockSpec((1, tq, G * dv),
                                   lambda bi, hg, qi, ki: (bi, qi, hg)),
            scratch_shapes=[
                pltpu.VMEM((G, tq, 1), jnp.float32),        # m (per head in group)
                pltpu.VMEM((G, tq, 1), jnp.float32),        # l
                pltpu.VMEM((tq, G * dv), jnp.float32),      # lane-dense acc
            ],
        ),
        compiler_params=pltpu.CompilerParams(
            dimension_semantics=("parallel", "parallel", "parallel", "arbitrary"),
            vmem_limit_bytes=vmem_limit_bytes),
    )(q_nope, q_pe, k_nope, k_pe, v)


# ----------------------------------------------------------------------------
# Tiled matmul for o_proj: f32 accumulator grid, or a no-scratch fast path
# when the contraction fits a single K step.
# ----------------------------------------------------------------------------
def _matmul_acc_kernel(x_ref, w_ref, o_ref, acc_ref):
    @pl.when(pl.program_id(2) == 0)
    def _():
        acc_ref[...] = jnp.zeros_like(acc_ref)

    acc_ref[...] += jnp.dot(x_ref[...], w_ref[...], preferred_element_type=jnp.float32)

    @pl.when(pl.program_id(2) == pl.num_programs(2) - 1)
    def _():
        o_ref[...] = acc_ref[...].astype(o_ref.dtype)


def _matmul_single_kernel(x_ref, w_ref, o_ref):
    o_ref[...] = jnp.dot(x_ref[...], w_ref[...],
                         preferred_element_type=jnp.float32).astype(o_ref.dtype)


def pallas_matmul(x, w, out_dtype=None, tm=512, tn=512, tk=512,
                  vmem_limit_bytes=_DEFAULT_VMEM_LIMIT):
    M, K = x.shape
    K2, N = w.shape
    assert K == K2
    out_dtype = out_dtype or x.dtype
    tm = _pick_block(M, tm)
    tn = _pick_block(N, tn)
    tk = _pick_block(K, tk)
    grid = (M // tm, N // tn, K // tk)
    single_k = grid[2] == 1
    kernel = _matmul_single_kernel if single_k else _matmul_acc_kernel
    scratch = [] if single_k else [pltpu.VMEM((tm, tn), jnp.float32)]
    return pl.pallas_call(
        kernel,
        out_shape=jax.ShapeDtypeStruct((M, N), out_dtype),
        grid_spec=pltpu.PrefetchScalarGridSpec(
            num_scalar_prefetch=0,
            grid=grid,
            in_specs=[
                pl.BlockSpec((tm, tk), lambda i, j, k: (i, k)),
                pl.BlockSpec((tk, tn), lambda i, j, k: (k, j)),
            ],
            out_specs=pl.BlockSpec((tm, tn), lambda i, j, k: (i, j)),
            scratch_shapes=scratch,
        ),
        compiler_params=pltpu.CompilerParams(
            dimension_semantics=("parallel", "parallel", "arbitrary"),
            vmem_limit_bytes=vmem_limit_bytes),
    )(x, w)


# ----------------------------------------------------------------------------
# MultiLatentAttention forward (no KV cache / attention_mask / cu_seqlens).
# ----------------------------------------------------------------------------
def multi_latent_attention_forward(x, params, *, num_heads, qk_nope_head_dim,
                                   qk_rope_head_dim, v_head_dim, kv_lora_rank,
                                   base, compute_dtype=jnp.float32,
                                   heads_per_block=4, seq_block_target=256,
                                   proj_block_target=256,
                                   matmul_tiles=(512, 512, 512),
                                   approx_reciprocal=True,
                                   vmem_limit_bytes=_DEFAULT_VMEM_LIMIT):
    b, n, d = x.shape
    dn, dr, dv = qk_nope_head_dim, qk_rope_head_dim, v_head_dim
    cdt = compute_dtype

    # Trace-time weight prep (would be cached at module init in practice).
    w = prepare_mla_weights(params, num_heads=num_heads, qk_nope_head_dim=dn,
                            qk_rope_head_dim=dr, v_head_dim=dv,
                            kv_lora_rank=kv_lora_rank, compute_dtype=cdt)
    cos_t, sin_t = rope_tables(n, dr, base)

    # 1) fused projections + RoPE (x read once; q pre-scaled; k_pe shared)
    q_nope, q_pe, k_nope, k_pe, v = fused_projection(
        x.astype(cdt), w, cos_t, sin_t, num_heads=num_heads, dn=dn, dr=dr, dv=dv,
        block_target=proj_block_target, vmem_limit_bytes=vmem_limit_bytes)

    # 2) flash causal attention -> lane-dense (b, n, h*dv)
    o = flash_mla_attention(q_nope, q_pe, k_nope, k_pe, v, num_heads=num_heads,
                            heads_per_block=heads_per_block,
                            block_target=seq_block_target,
                            approx_reciprocal=approx_reciprocal,
                            vmem_limit_bytes=vmem_limit_bytes)

    # 3) o_proj (the (b,n,hd)->(b*n,hd) reshape is metadata-only)
    tm, tn, tk = matmul_tiles
    out = pallas_matmul(o.reshape(b * n, num_heads * dv), w["w_o"],
                        out_dtype=x.dtype, tm=tm, tn=tn, tk=tk,
                        vmem_limit_bytes=vmem_limit_bytes)
    return out.reshape(b, n, d)


# ----------------------------------------------------------------------------
# Pure-JAX reference (same math as the PyTorch module) for correctness checks.
# ----------------------------------------------------------------------------
def rope_interleaved(x, base, offset=0):
    # x: (b, n, h, D), D even; interleaved-pair rotation (Lrpe type 1 convention)
    b, n, h, D = x.shape
    half = D // 2
    theta = base ** (-2.0 * jnp.arange(half, dtype=jnp.float32) / D)
    pos = jnp.arange(n, dtype=jnp.float32) + offset
    angle = pos[:, None] * theta[None, :]
    cos = jnp.cos(angle)[None, :, None, :]
    sin = jnp.sin(angle)[None, :, None, :]
    xp = x.reshape(b, n, h, half, 2)
    x0, x1 = xp[..., 0], xp[..., 1]
    y0 = x0 * cos - x1 * sin
    y1 = x0 * sin + x1 * cos
    return jnp.stack([y0, y1], axis=-1).reshape(b, n, h, D)


def reference_forward(x, params, *, num_heads, qk_nope_head_dim, qk_rope_head_dim,
                      v_head_dim, kv_lora_rank, base):
    b, n, d = x.shape
    q_head_dim = qk_nope_head_dim + qk_rope_head_dim
    q = (x @ params["w_qa"]) @ params["w_qb"]
    q = q.reshape(b, n, num_heads, q_head_dim)
    q_nope, q_pe = q[..., :qk_nope_head_dim], q[..., qk_nope_head_dim:]
    ckv = x @ params["w_kva"]
    compressed_kv, k_pe = ckv[..., :kv_lora_rank], ckv[..., kv_lora_rank:]
    k_pe = jnp.broadcast_to(k_pe[:, :, None, :], (b, n, num_heads, qk_rope_head_dim))
    kv = (compressed_kv @ params["w_kvb"]).reshape(b, n, num_heads,
                                                   qk_nope_head_dim + v_head_dim)
    k_nope, v = kv[..., :qk_nope_head_dim], kv[..., qk_nope_head_dim:]
    q_pe = rope_interleaved(q_pe, base)
    k_pe = rope_interleaved(k_pe, base)
    qf = jnp.concatenate([q_nope, q_pe], -1)
    kf = jnp.concatenate([k_nope, k_pe], -1)
    scale = 1.0 / math.sqrt(q_head_dim)
    s = jnp.einsum("bqhd,bkhd->bhqk", qf, kf) * scale
    mask = jnp.tril(jnp.ones((n, n), dtype=bool))
    s = jnp.where(mask[None, None], s, -jnp.inf)
    p = jax.nn.softmax(s, axis=-1)
    o = jnp.einsum("bhqk,bkhd->bqhd", p, v)
    o = o.reshape(b, n, num_heads * v_head_dim)
    return o @ params["w_o"]


# ----------------------------------------------------------------------------
if __name__ == "__main__":
    # Full-precision f32 matmuls everywhere so the reference comparison is tight.
    jax.config.update("jax_default_matmul_precision", "highest")

    # Small, self-consistent config.
    embed_dim = 32
    num_heads = 2
    q_lora_rank = 64
    kv_lora_rank = 64
    qk_rope_head_dim = 16
    base = 10000
    batch, seq = 2, 16                  # seq=16 with 8-wide tiles exercises the
                                        # diagonal / below-diagonal / skipped branches

    qk_nope_head_dim = embed_dim // num_heads    # 16
    v_head_dim = embed_dim // num_heads          # 16

    key = jax.random.PRNGKey(0)
    ks = jax.random.split(key, 6)
    std = 0.02
    # weights stored in (in, out) layout so kernels compute x @ W directly
    params = {
        "w_qa": std * jax.random.normal(ks[0], (embed_dim, q_lora_rank), jnp.float32),
        "w_qb": std * jax.random.normal(
            ks[1], (q_lora_rank, num_heads * (qk_nope_head_dim + qk_rope_head_dim)),
            jnp.float32),
        "w_kva": std * jax.random.normal(
            ks[2], (embed_dim, kv_lora_rank + qk_rope_head_dim), jnp.float32),
        "w_kvb": std * jax.random.normal(
            ks[3], (kv_lora_rank, num_heads * (qk_nope_head_dim + v_head_dim)),
            jnp.float32),
        "w_o": std * jax.random.normal(
            ks[4], (num_heads * v_head_dim, embed_dim), jnp.float32),
    }
    x = jax.random.normal(ks[5], (batch, seq, embed_dim), jnp.float32)

    cfg = dict(num_heads=num_heads, qk_nope_head_dim=qk_nope_head_dim,
               qk_rope_head_dim=qk_rope_head_dim, v_head_dim=v_head_dim,
               kv_lora_rank=kv_lora_rank, base=base)

    ref = reference_forward(x, params, **cfg)

    # float32 path, exact reciprocal, small tiles so every kernel branch runs
    # (multi-tile causal grid + accumulating o_proj path): strict check.
    out_f32 = multi_latent_attention_forward(
        x, params, **cfg, compute_dtype=jnp.float32,
        heads_per_block=2, seq_block_target=8, proj_block_target=8,
        matmul_tiles=(16, 32, 16), approx_reciprocal=False)
    out_f32 = jax.block_until_ready(out_f32)
    assert out_f32.shape == (batch, seq, embed_dim)
    assert jnp.allclose(out_f32, ref, rtol=1e-2, atol=1e-5), "f32 mismatch vs reference"

    # bfloat16 MXU path (the "perf" configuration): loose sanity check.
    out_bf16 = multi_latent_attention_forward(
        x, params, **cfg, compute_dtype=jnp.bfloat16,
        heads_per_block=2, seq_block_target=8, proj_block_target=8,
        approx_reciprocal=True)
    out_bf16 = jax.block_until_ready(out_bf16)
    assert out_bf16.shape == (batch, seq, embed_dim)
    assert bool(jnp.all(jnp.isfinite(out_bf16)))
    assert jnp.allclose(out_bf16.astype(jnp.float32), ref,
                        rtol=1e-1, atol=2e-3), "bf16 mismatch vs reference"

    print("KERNEL_OK")
</pallas_src>

<mosaic_0001>
module attributes {stable_mosaic.version = 11 : i64} {
  func.func @_proj_kernel(%arg0: i32, %arg1: i32, %arg2: memref<1x8x32xf32, #tpu.memory_space<vmem>>, %arg3: memref<32x64xf32, #tpu.memory_space<vmem>>, %arg4: memref<64x32xf32, #tpu.memory_space<vmem>>, %arg5: memref<64x32xf32, #tpu.memory_space<vmem>>, %arg6: memref<64x32xf32, #tpu.memory_space<vmem>>, %arg7: memref<32x64xf32, #tpu.memory_space<vmem>>, %arg8: memref<32x16xf32, #tpu.memory_space<vmem>>, %arg9: memref<32x16xf32, #tpu.memory_space<vmem>>, %arg10: memref<64x32xf32, #tpu.memory_space<vmem>>, %arg11: memref<64x32xf32, #tpu.memory_space<vmem>>, %arg12: memref<8x16xf32, #tpu.memory_space<vmem>>, %arg13: memref<8x16xf32, #tpu.memory_space<vmem>>, %arg14: memref<1x8x32xf32, #tpu.memory_space<vmem>>, %arg15: memref<1x8x32xf32, #tpu.memory_space<vmem>>, %arg16: memref<1x8x32xf32, #tpu.memory_space<vmem>>, %arg17: memref<1x8x16xf32, #tpu.memory_space<vmem>>, %arg18: memref<1x8x32xf32, #tpu.memory_space<vmem>>) attributes {dimension_semantics = [#tpu.dimension_semantics<parallel>, #tpu.dimension_semantics<parallel>], iteration_bounds = array<i64: 2, 2>, scalar_prefetch = 0 : i64, scratch_operands = 0 : i64, tpu.core_type = #tpu.core_type<tc>, window_params = [{transform_indices = @transform_0, window_bounds = array<i64: 1, 8, 32>}, {pipeline_mode = #tpu.pipeline_mode<synchronous>, transform_indices = @transform_1, window_bounds = array<i64: 32, 64>}, {pipeline_mode = #tpu.pipeline_mode<synchronous>, transform_indices = @transform_2, window_bounds = array<i64: 64, 32>}, {pipeline_mode = #tpu.pipeline_mode<synchronous>, transform_indices = @transform_3, window_bounds = array<i64: 64, 32>}, {pipeline_mode = #tpu.pipeline_mode<synchronous>, transform_indices = @transform_4, window_bounds = array<i64: 64, 32>}, {pipeline_mode = #tpu.pipeline_mode<synchronous>, transform_indices = @transform_5, window_bounds = array<i64: 32, 64>}, {pipeline_mode = #tpu.pipeline_mode<synchronous>, transform_indices = @transform_6, window_bounds = array<i64: 32, 16>}, {pipeline_mode = #tpu.pipeline_mode<synchronous>, transform_indices = @transform_7, window_bounds = array<i64: 32, 16>}, {pipeline_mode = #tpu.pipeline_mode<synchronous>, transform_indices = @transform_8, window_bounds = array<i64: 64, 32>}, {pipeline_mode = #tpu.pipeline_mode<synchronous>, transform_indices = @transform_9, window_bounds = array<i64: 64, 32>}, {transform_indices = @transform_10, window_bounds = array<i64: 8, 16>}, {transform_indices = @transform_11, window_bounds = array<i64: 8, 16>}, {transform_indices = @transform_12, window_bounds = array<i64: 1, 8, 32>}, {transform_indices = @transform_13, window_bounds = array<i64: 1, 8, 32>}, {transform_indices = @transform_14, window_bounds = array<i64: 1, 8, 32>}, {transform_indices = @transform_15, window_bounds = array<i64: 1, 8, 16>}, {transform_indices = @transform_16, window_bounds = array<i64: 1, 8, 32>}]} {
    %c0 = arith.constant 0 : index
    %c0_0 = arith.constant 0 : index
    %c0_1 = arith.constant 0 : index
    %0 = vector.load %arg2[%c0, %c0_0, %c0_1] : memref<1x8x32xf32, #tpu.memory_space<vmem>>, vector<1x8x32xf32>
    %1 = vector.shape_cast %0 : vector<1x8x32xf32> to vector<8x32xf32>
    %c0_2 = arith.constant 0 : index
    %c0_3 = arith.constant 0 : index
    %2 = vector.load %arg3[%c0_2, %c0_3] : memref<32x64xf32, #tpu.memory_space<vmem>>, vector<32x64xf32>
    %cst = arith.constant dense<0.000000e+00> : vector<8x64xf32>
    %3 = tpu.matmul %1, %2, %cst {dimension_numbers = #tpu.dot_dimension_numbers<[1], [0], [0], [1], [0, 0, 1, 1], [], []>, precision = #tpu.contract_precision<fp32>} : vector<8x32xf32>, vector<32x64xf32>, vector<8x64xf32> -> vector<8x64xf32>
    %c0_4 = arith.constant 0 : index
    %c0_5 = arith.constant 0 : index
    %4 = vector.load %arg4[%c0_4, %c0_5] : memref<64x32xf32, #tpu.memory_space<vmem>>, vector<64x32xf32>
    %cst_6 = arith.constant dense<0.000000e+00> : vector<8x32xf32>
    %5 = tpu.matmul %3, %4, %cst_6 {dimension_numbers = #tpu.dot_dimension_numbers<[1], [0], [0], [1], [0, 0, 1, 1], [], []>, precision = #tpu.contract_precision<fp32>} : vector<8x64xf32>, vector<64x32xf32>, vector<8x32xf32> -> vector<8x32xf32>
    %c0_7 = arith.constant 0 : index
    %c0_8 = arith.constant 0 : index
    %c0_9 = arith.constant 0 : index
    %6 = vector.load %arg14[%c0_7, %c0_8, %c0_9] : memref<1x8x32xf32, #tpu.memory_space<vmem>>, vector<1x8x32xf32>
    %7 = vector.shape_cast %6 : vector<1x8x32xf32> to vector<8x32xf32>
    %8 = vector.shape_cast %5 : vector<8x32xf32> to vector<1x8x32xf32>
    tpu.vector_store %arg14[%c0_7, %c0_8, %c0_9], %8 {strides = array<i32>} : memref<1x8x32xf32, #tpu.memory_space<vmem>>, vector<1x8x32xf32>,
    %c0_10 = arith.constant 0 : index
    %c0_11 = arith.constant 0 : index
    %9 = vector.load %arg5[%c0_10, %c0_11] : memref<64x32xf32, #tpu.memory_space<vmem>>, vector<64x32xf32>
    %cst_12 = arith.constant dense<0.000000e+00> : vector<8x32xf32>
    %10 = tpu.matmul %3, %9, %cst_12 {dimension_numbers = #tpu.dot_dimension_numbers<[1], [0], [0], [1], [0, 0, 1, 1], [], []>, precision = #tpu.contract_precision<fp32>} : vector<8x64xf32>, vector<64x32xf32>, vector<8x32xf32> -> vector<8x32xf32>
    %c0_13 = arith.constant 0 : index
    %c0_14 = arith.constant 0 : index
    %11 = vector.load %arg6[%c0_13, %c0_14] : memref<64x32xf32, #tpu.memory_space<vmem>>, vector<64x32xf32>
    %cst_15 = arith.constant dense<0.000000e+00> : vector<8x32xf32>
    %12 = tpu.matmul %3, %11, %cst_15 {dimension_numbers = #tpu.dot_dimension_numbers<[1], [0], [0], [1], [0, 0, 1, 1], [], []>, precision = #tpu.contract_precision<fp32>} : vector<8x64xf32>, vector<64x32xf32>, vector<8x32xf32> -> vector<8x32xf32>
    %c0_16 = arith.constant 0 : index
    %c0_17 = arith.constant 0 : index
    %13 = vector.load %arg12[%c0_16, %c0_17] : memref<8x16xf32, #tpu.memory_space<vmem>>, vector<8x16xf32>
    %c0_18 = arith.constant 0 : index
    %c0_19 = arith.constant 0 : index
    %14 = vector.load %arg13[%c0_18, %c0_19] : memref<8x16xf32, #tpu.memory_space<vmem>>, vector<8x16xf32>
    %15 = tpu.concatenate %13, %13 in 1 : vector<8x16xf32>, vector<8x16xf32> -> vector<8x32xf32>
    %16 = tpu.concatenate %14, %14 in 1 : vector<8x16xf32>, vector<8x16xf32> -> vector<8x32xf32>
    %17 = arith.mulf %10, %15 : vector<8x32xf32>
    %18 = arith.mulf %12, %16 : vector<8x32xf32>
    %19 = arith.addf %17, %18 : vector<8x32xf32>
    %c0_20 = arith.constant 0 : index
    %c0_21 = arith.constant 0 : index
    %c0_22 = arith.constant 0 : index
    %20 = vector.load %arg15[%c0_20, %c0_21, %c0_22] : memref<1x8x32xf32, #tpu.memory_space<vmem>>, vector<1x8x32xf32>
    %21 = vector.shape_cast %20 : vector<1x8x32xf32> to vector<8x32xf32>
    %22 = vector.shape_cast %19 : vector<8x32xf32> to vector<1x8x32xf32>
    tpu.vector_store %arg15[%c0_20, %c0_21, %c0_22], %22 {strides = array<i32>} : memref<1x8x32xf32, #tpu.memory_space<vmem>>, vector<1x8x32xf32>,
    %c0_23 = arith.constant 0 : index
    %c0_24 = arith.constant 0 : index
    %23 = vector.load %arg7[%c0_23, %c0_24] : memref<32x64xf32, #tpu.memory_space<vmem>>, vector<32x64xf32>
    %cst_25 = arith.constant dense<0.000000e+00> : vector<8x64xf32>
    %24 = tpu.matmul %1, %23, %cst_25 {dimension_numbers = #tpu.dot_dimension_numbers<[1], [0], [0], [1], [0, 0, 1, 1], [], []>, precision = #tpu.contract_precision<fp32>} : vector<8x32xf32>, vector<32x64xf32>, vector<8x64xf32> -> vector<8x64xf32>
    %c0_26 = arith.constant 0 : index
    %c0_27 = arith.constant 0 : index
    %25 = vector.load %arg8[%c0_26, %c0_27] : memref<32x16xf32, #tpu.memory_space<vmem>>, vector<32x16xf32>
    %cst_28 = arith.constant dense<0.000000e+00> : vector<8x16xf32>
    %26 = tpu.matmul %1, %25, %cst_28 {dimension_numbers = #tpu.dot_dimension_numbers<[1], [0], [0], [1], [0, 0, 1, 1], [], []>, precision = #tpu.contract_precision<fp32>} : vector<8x32xf32>, vector<32x16xf32>, vector<8x16xf32> -> vector<8x16xf32>
    %c0_29 = arith.constant 0 : index
    %c0_30 = arith.constant 0 : index
    %27 = vector.load %arg9[%c0_29, %c0_30] : memref<32x16xf32, #tpu.memory_space<vmem>>, vector<32x16xf32>
    %cst_31 = arith.constant dense<0.000000e+00> : vector<8x16xf32>
    %28 = tpu.matmul %1, %27, %cst_31 {dimension_numbers = #tpu.dot_dimension_numbers<[1], [0], [0], [1], [0, 0, 1, 1], [], []>, precision = #tpu.contract_precision<fp32>} : vector<8x32xf32>, vector<32x16xf32>, vector<8x16xf32> -> vector<8x16xf32>
    %29 = arith.mulf %26, %13 : vector<8x16xf32>
    %30 = arith.mulf %28, %14 : vector<8x16xf32>
    %31 = arith.addf %29, %30 : vector<8x16xf32>
    %c0_32 = arith.constant 0 : index
    %c0_33 = arith.constant 0 : index
    %c0_34 = arith.constant 0 : index
    %32 = vector.load %arg17[%c0_32, %c0_33, %c0_34] : memref<1x8x16xf32, #tpu.memory_space<vmem>>, vector<1x8x16xf32>
    %33 = vector.shape_cast %32 : vector<1x8x16xf32> to vector<8x16xf32>
    %34 = vector.shape_cast %31 : vector<8x16xf32> to vector<1x8x16xf32>
    tpu.vector_store %arg17[%c0_32, %c0_33, %c0_34], %34 {strides = array<i32>} : memref<1x8x16xf32, #tpu.memory_space<vmem>>, vector<1x8x16xf32>,
    %c0_35 = arith.constant 0 : index
    %c0_36 = arith.constant 0 : index
    %35 = vector.load %arg10[%c0_35, %c0_36] : memref<64x32xf32, #tpu.memory_space<vmem>>, vector<64x32xf32>
    %cst_37 = arith.constant dense<0.000000e+00> : vector<8x32xf32>
    %36 = tpu.matmul %24, %35, %cst_37 {dimension_numbers = #tpu.dot_dimension_numbers<[1], [0], [0], [1], [0, 0, 1, 1], [], []>, precision = #tpu.contract_precision<fp32>} : vector<8x64xf32>, vector<64x32xf32>, vector<8x32xf32> -> vector<8x32xf32>
    %c0_38 = arith.constant 0 : index
    %c0_39 = arith.constant 0 : index
    %c0_40 = arith.constant 0 : index
    %37 = vector.load %arg16[%c0_38, %c0_39, %c0_40] : memref<1x8x32xf32, #tpu.memory_space<vmem>>, vector<1x8x32xf32>
    %38 = vector.shape_cast %37 : vector<1x8x32xf32> to vector<8x32xf32>
    %39 = vector.shape_cast %36 : vector<8x32xf32> to vector<1x8x32xf32>
    tpu.vector_store %arg16[%c0_38, %c0_39, %c0_40], %39 {strides = array<i32>} : memref<1x8x32xf32, #tpu.memory_space<vmem>>, vector<1x8x32xf32>,
    %c0_41 = arith.constant 0 : index
    %c0_42 = arith.constant 0 : index
    %40 = vector.load %arg11[%c0_41, %c0_42] : memref<64x32xf32, #tpu.memory_space<vmem>>, vector<64x32xf32>
    %cst_43 = arith.constant dense<0.000000e+00> : vector<8x32xf32>
    %41 = tpu.matmul %24, %40, %cst_43 {dimension_numbers = #tpu.dot_dimension_numbers<[1], [0], [0], [1], [0, 0, 1, 1], [], []>, precision = #tpu.contract_precision<fp32>} : vector<8x64xf32>, vector<64x32xf32>, vector<8x32xf32> -> vector<8x32xf32>
    %c0_44 = arith.constant 0 : index
    %c0_45 = arith.constant 0 : index
    %c0_46 = arith.constant 0 : index
    %42 = vector.load %arg18[%c0_44, %c0_45, %c0_46] : memref<1x8x32xf32, #tpu.memory_space<vmem>>, vector<1x8x32xf32>
    %43 = vector.shape_cast %42 : vector<1x8x32xf32> to vector<8x32xf32>
    %44 = vector.shape_cast %41 : vector<8x32xf32> to vector<1x8x32xf32>
    tpu.vector_store %arg18[%c0_44, %c0_45, %c0_46], %44 {strides = array<i32>} : memref<1x8x32xf32, #tpu.memory_space<vmem>>, vector<1x8x32xf32>,
    return
  }
  func.func @transform_0(%arg0: i32, %arg1: i32) -> (i32, i32, i32) {
    %c0_i32 = arith.constant 0 : i32
    %c0_i32_0 = arith.constant 0 : i32
    return %arg0, %arg1, %c0_i32 : i32, i32, i32
  }
  func.func @transform_1(%arg0: i32, %arg1: i32) -> (i32, i32) {
    %c0_i32 = arith.constant 0 : i32
    %c0_i32_0 = arith.constant 0 : i32
    %c0_i32_1 = arith.constant 0 : i32
    return %c0_i32, %c0_i32_0 : i32, i32
  }
  func.func @transform_2(%arg0: i32, %arg1: i32) -> (i32, i32) {
    %c0_i32 = arith.constant 0 : i32
    %c0_i32_0 = arith.constant 0 : i32
    %c0_i32_1 = arith.constant 0 : i32
    return %c0_i32, %c0_i32_0 : i32, i32
  }
  func.func @transform_3(%arg0: i32, %arg1: i32) -> (i32, i32) {
    %c0_i32 = arith.constant 0 : i32
    %c0_i32_0 = arith.constant 0 : i32
    %c0_i32_1 = arith.constant 0 : i32
    return %c0_i32, %c0_i32_0 : i32, i32
  }
  func.func @transform_4(%arg0: i32, %arg1: i32) -> (i32, i32) {
    %c0_i32 = arith.constant 0 : i32
    %c0_i32_0 = arith.constant 0 : i32
    %c0_i32_1 = arith.constant 0 : i32
    return %c0_i32, %c0_i32_0 : i32, i32
  }
  func.func @transform_5(%arg0: i32, %arg1: i32) -> (i32, i32) {
    %c0_i32 = arith.constant 0 : i32
    %c0_i32_0 = arith.constant 0 : i32
    %c0_i32_1 = arith.constant 0 : i32
    return %c0_i32, %c0_i32_0 : i32, i32
  }
  func.func @transform_6(%arg0: i32, %arg1: i32) -> (i32, i32) {
    %c0_i32 = arith.constant 0 : i32
    %c0_i32_0 = arith.constant 0 : i32
    %c0_i32_1 = arith.constant 0 : i32
    return %c0_i32, %c0_i32_0 : i32, i32
  }
  func.func @transform_7(%arg0: i32, %arg1: i32) -> (i32, i32) {
    %c0_i32 = arith.constant 0 : i32
    %c0_i32_0 = arith.constant 0 : i32
    %c0_i32_1 = arith.constant 0 : i32
    return %c0_i32, %c0_i32_0 : i32, i32
  }
  func.func @transform_8(%arg0: i32, %arg1: i32) -> (i32, i32) {
    %c0_i32 = arith.constant 0 : i32
    %c0_i32_0 = arith.constant 0 : i32
    %c0_i32_1 = arith.constant 0 : i32
    return %c0_i32, %c0_i32_0 : i32, i32
  }
  func.func @transform_9(%arg0: i32, %arg1: i32) -> (i32, i32) {
    %c0_i32 = arith.constant 0 : i32
    %c0_i32_0 = arith.constant 0 : i32
    %c0_i32_1 = arith.constant 0 : i32
    return %c0_i32, %c0_i32_0 : i32, i32
  }
  func.func @transform_10(%arg0: i32, %arg1: i32) -> (i32, i32) {
    %c0_i32 = arith.constant 0 : i32
    %c0_i32_0 = arith.constant 0 : i32
    return %arg1, %c0_i32 : i32, i32
  }
  func.func @transform_11(%arg0: i32, %arg1: i32) -> (i32, i32) {
    %c0_i32 = arith.constant 0 : i32
    %c0_i32_0 = arith.constant 0 : i32
    return %arg1, %c0_i32 : i32, i32
  }
  func.func @transform_12(%arg0: i32, %arg1: i32) -> (i32, i32, i32) {
    %c0_i32 = arith.constant 0 : i32
    %c0_i32_0 = arith.constant 0 : i32
    return %arg0, %arg1, %c0_i32 : i32, i32, i32
  }
  func.func @transform_13(%arg0: i32, %arg1: i32) -> (i32, i32, i32) {
    %c0_i32 = arith.constant 0 : i32
    %c0_i32_0 = arith.constant 0 : i32
    return %arg0, %arg1, %c0_i32 : i32, i32, i32
  }
  func.func @transform_14(%arg0: i32, %arg1: i32) -> (i32, i32, i32) {
    %c0_i32 = arith.constant 0 : i32
    %c0_i32_0 = arith.constant 0 : i32
    return %arg0, %arg1, %c0_i32 : i32, i32, i32
  }
  func.func @transform_15(%arg0: i32, %arg1: i32) -> (i32, i32, i32) {
    %c0_i32 = arith.constant 0 : i32
    %c0_i32_0 = arith.constant 0 : i32
    return %arg0, %arg1, %c0_i32 : i32, i32, i32
  }
  func.func @transform_16(%arg0: i32, %arg1: i32) -> (i32, i32, i32) {
    %c0_i32 = arith.constant 0 : i32
    %c0_i32_0 = arith.constant 0 : i32
    return %arg0, %arg1, %c0_i32 : i32, i32, i32
  }
}

</mosaic_0001>

<llo_original>
// kernel: tpu_custom_call.1
$region0: #{tpu_custom_call.1}
  #allocation0 [shape = 'u32[]', space=smem, size = 0x4, offset = 0x4, fixed_abs, tag = 'smem constant byte address 0x4 - core index']
  #allocation1 [shape = 'u32[144,128]{1,0:T(1,128)}', space=vmem, size = 0x12000, scoped, tag = 'internal scratch']
  %s0 = inlined_call_operand.hbm [shape: f32[2,16,32], index: 0, kind: input, shape index: {}]
  %s1 = inlined_call_operand.hbm [shape: f32[32,64], index: 1, kind: input, shape index: {}]
  %s2 = inlined_call_operand.hbm [shape: f32[64,32], index: 2, kind: input, shape index: {}]
  %s3 = inlined_call_operand.hbm [shape: f32[64,32], index: 3, kind: input, shape index: {}]
  %s4 = inlined_call_operand.hbm [shape: f32[64,32], index: 4, kind: input, shape index: {}]
  %s5 = inlined_call_operand.hbm [shape: f32[32,64], index: 5, kind: input, shape index: {}]
  %s6 = inlined_call_operand.hbm [shape: f32[32,16], index: 6, kind: input, shape index: {}]
  %s7 = inlined_call_operand.hbm [shape: f32[32,16], index: 7, kind: input, shape index: {}]
  %s8 = inlined_call_operand.hbm [shape: f32[64,32], index: 8, kind: input, shape index: {}]
  %s9 = inlined_call_operand.hbm [shape: f32[64,32], index: 9, kind: input, shape index: {}]
  %s10 = inlined_call_operand.hbm [shape: f32[16,16], index: 10, kind: input, shape index: {}]
  %s11 = inlined_call_operand.hbm [shape: f32[16,16], index: 11, kind: input, shape index: {}]
  %s12 = inlined_call_operand.hbm [shape: f32[2,16,32], index: 12, kind: output, shape index: {0}]
  %s13 = inlined_call_operand.hbm [shape: f32[2,16,32], index: 13, kind: output, shape index: {1}]
  %s14 = inlined_call_operand.hbm [shape: f32[2,16,32], index: 14, kind: output, shape index: {2}]
  %s15 = inlined_call_operand.hbm [shape: f32[2,16,16], index: 15, kind: output, shape index: {3}]
  %s16 = inlined_call_operand.hbm [shape: f32[2,16,32], index: 16, kind: output, shape index: {4}]
  %17 = xla_tuple %s12, %s13, %s14, %s15, %s16
  %s18 = sld [smem:[#allocation0]]
  $region161: #{tpu_custom_call.1} parent=0
    _
  %s20 = ssub.s32 1, %s18
  %s21 = scalar_select 0, %s20, %s18
  $region1: #{tpu_custom_call.1} parent=0
    #allocation2 [shape = 'u8[8192]{0}', space=vmem, size = 0x2000, scoped, tag = 'input window, operand 0']
    #allocation3 [shape = 's32[2]{0}', space=sflag, size = 0x8, scoped, tag = 'scoped memory for tpu_custom_call.1']
    #allocation4 [shape = 's32[2]{0}', space=sflag, size = 0x8, scoped, tag = 'scoped memory for tpu_custom_call.1']
    #allocation5 [shape = 'u8[16384]{0}', space=vmem, size = 0x4000, scoped, tag = 'input window, operand 1, single buffered']
    #allocation6 [shape = 's32[1]{0}', space=sflag, size = 0x4, scoped, tag = 'scoped memory for tpu_custom_call.1']
    #allocation7 [shape = 'u8[32768]{0}', space=vmem, size = 0x8000, scoped, tag = 'input window, operand 2, single buffered']
    #allocation8 [shape = 'u8[32768]{0}', space=vmem, size = 0x8000, scoped, tag = 'input window, operand 3, single buffered']
    #allocation9 [shape = 's32[1]{0}', space=sflag, size = 0x4, scoped, tag = 'scoped memory for tpu_custom_call.1']
    #allocation10 [shape = 'u8[32768]{0}', space=vmem, size = 0x8000, scoped, tag = 'input window, operand 4, single buffered']
    #allocation11 [shape = 'u8[16384]{0}', space=vmem, size = 0x4000, scoped, tag = 'input window, operand 5, single buffered']
    #allocation12 [shape = 's32[1]{0}', space=sflag, size = 0x4, scoped, tag = 'scoped memory for tpu_custom_call.1']
    #allocation13 [shape = 'u8[16384]{0}', space=vmem, size = 0x4000, scoped, tag = 'input window, operand 6, single buffered']
    #allocation14 [shape = 'u8[16384]{0}', space=vmem, size = 0x4000, scoped, tag = 'input window, operand 7, single buffered']
    #allocation15 [shape = 's32[1]{0}', space=sflag, size = 0x4, scoped, tag = 'scoped memory for tpu_custom_call.1']
    #allocation16 [shape = 'u8[32768]{0}', space=vmem, size = 0x8000, scoped, tag = 'input window, operand 8, single buffered']
    #allocation17 [shape = 'u8[32768]{0}', space=vmem, size = 0x8000, scoped, tag = 'input window, operand 9, single buffered']
    #allocation18 [shape = 's32[1]{0}', space=sflag, size = 0x4, scoped, tag = 'scoped memory for tpu_custom_call.1']
    #allocation19 [shape = 'u8[8192]{0}', space=vmem, size = 0x2000, scoped, tag = 'input window, operand 10']
    #allocation20 [shape = 'u8[8192]{0}', space=vmem, size = 0x2000, scoped, tag = 'input window, operand 11']
    #allocation21 [shape = 'u8[8192]{0}', space=vmem, size = 0x2000, scoped, tag = 'output window, operand 0']
    #allocation22 [shape = 'u8[8192]{0}', space=vmem, size = 0x2000, scoped, tag = 'output window, operand 1']
    #allocation23 [shape = 's32[2]{0}', space=sflag, size = 0x8, scoped, tag = 'scoped memory for tpu_custom_call.1']
    #allocation24 [shape = 'u8[8192]{0}', space=vmem, size = 0x2000, scoped, tag = 'output window, operand 2']
    #allocation25 [shape = 'u8[8192]{0}', space=vmem, size = 0x2000, scoped, tag = 'output window, operand 3']
    #allocation26 [shape = 's32[2]{0}', space=sflag, size = 0x8, scoped, tag = 'scoped memory for tpu_custom_call.1']
    #allocation27 [shape = 'u8[8192]{0}', space=vmem, size = 0x2000, scoped, tag = 'output window, operand 4']
    %22 = vsyncpa [#allocation3], 0
    %s23 = scalar_lea.sflag [#allocation3], 1
    %24 = vsyncpa %s23, 0
    %25 = vsyncpa [#allocation6], 0
    %26 = vsyncpa [#allocation9], 0
    %27 = vsyncpa [#allocation12], 0
    %28 = vsyncpa [#allocation15], 0
    %29 = vsyncpa [#allocation18], 0
    %30 = vsyncpa [#allocation4], 0
    %s31 = scalar_lea.sflag [#allocation4], 1
    %32 = vsyncpa %s31, 0
    %33 = vsyncpa [#allocation23], 0
    %s34 = scalar_lea.sflag [#allocation23], 1
    %35 = vsyncpa %s34, 0
    %36 = vsyncpa [#allocation26], 0
    %s37 = scalar_lea.sflag [#allocation26], 1
    %38 = vsyncpa %s37, 0
    loop: start=0, step=1, limit=6
    $region2: #{tpu_custom_call.1} parent=1 // loop_pre_header
      _
    $region3: #{tpu_custom_call.1} parent=1 // loop_header
      %s40 = sphi 0, %s44
      %p41 = scmp.ge.s32.totalorder %s40, 6
      %s47 = sphi 0, %s59
      %s48 = sphi 0, %s55
      %s49 = sphi 0, %s47
      %s50 = sphi 0, %s48
      %s51 = sphi 0, %s49
      %s52 = sphi 0, %s50
      %s64 = sphi 0, %s66
      %s67 = sphi 0, %s64
      %s68 = sphi 0, %s67
      %s84 = sphi 0, %s68
      %s88 = sphi 0, %s88
      %s90 = sphi 0, %s88
      %s91 = sphi 0, %s90
      %s105 = sphi 0, %s91
      %s109 = sphi 0, %s109
      %s111 = sphi 0, %s109
      %s112 = sphi 0, %s111
      %s126 = sphi 0, %s112
      %s130 = sphi 0, %s130
      %s132 = sphi 0, %s130
      %s133 = sphi 0, %s132
      %s147 = sphi 0, %s133
      %s151 = sphi 0, %s151
      %s153 = sphi 0, %s151
      %s154 = sphi 0, %s153
      %s168 = sphi 0, %s154
      %s172 = sphi 0, %s172
      %s174 = sphi 0, %s172
      %s175 = sphi 0, %s174
      %s189 = sphi 0, %s175
      %s193 = sphi 0, %s193
      %s195 = sphi 0, %s193
      %s196 = sphi 0, %s195
      %s210 = sphi 0, %s196
      %s214 = sphi 0, %s214
      %s216 = sphi 0, %s214
      %s217 = sphi 0, %s216
      %s231 = sphi 0, %s217
      %s235 = sphi 0, %s235
      %s237 = sphi 0, %s235
      %s238 = sphi 0, %s237
      %s252 = sphi 0, %s238
      %s256 = sphi 0, %s256
      %s258 = sphi 0, %s256
      %s259 = sphi 0, %s258
      %s273 = sphi 0, %s259
      %s279 = sphi 0, %s281
      %s282 = sphi 0, %s279
      %s283 = sphi 0, %s282
      %s299 = sphi 0, %s283
      %s305 = sphi 0, %s307
      %s308 = sphi 0, %s305
      %s309 = sphi 0, %s308
      %s325 = sphi 0, %s309
      %s333 = sphi 0, %s335
      %s336 = sphi 0, %s333
      %s337 = sphi 0, %s336
      %s353 = sphi 0, %s337
      %s361 = sphi 0, %s363
      %s364 = sphi 0, %s361
      %s365 = sphi 0, %s364
      %s381 = sphi 0, %s365
      %s389 = sphi 0, %s391
      %s392 = sphi 0, %s389
      %s393 = sphi 0, %s392
      %s409 = sphi 0, %s393
      %s417 = sphi 0, %s419
      %s420 = sphi 0, %s417
      %s421 = sphi 0, %s420
      %s437 = sphi 0, %s421
      %s445 = sphi 0, %s447
      %s448 = sphi 0, %s445
      %s449 = sphi 0, %s448
      %s465 = sphi 0, %s449
    $region4: #{tpu_custom_call.1} parent=1 // loop_header_branch
      %43 = sbr.rel (%p41) target = $region8
    $region5: #{tpu_custom_call.1} parent=1 // loop_body
      %s45 = ssub.s32 %s40, 1
      %s46 = ssub.s32 %s40, 2
      %s53 = sadd.s32 1, %s48
      %p54 = scmp.ge.s32.totalorder %s53, 2
      %s55 = scalar_select %p54, 0, %s53
      %s56 = sadd.s32 1, %s47
      %s57 = scalar_select %p54, %s56, %s47
      %p58 = scmp.ge.s32.totalorder %s57, 2
      %s59 = scalar_select %p58, 0, %s57
      %s60 = ssub.s32 %s47, %s59
      %s61 = ssub.s32 %s48, %s55
      %s62 = sor.u32 %s60, %s61
      %p63 = scmp.eq.s32.totalorder %s62, 0
      %s65 = sadd.s32 %s64, 1
      %s66 = scalar_select %p63, %s64, %s65
      %p69 = pneg %p63
      %p70 = scmp.eq.s32.totalorder %s40, 3
      %p71 = por %p69, %p70
      %p72 = scmp.ne.s32.totalorder %s64, %s67
      %p73 = scmp.eq.s32.totalorder %s40, 0
      %p74 = por %p72, %p73
      %p75 = scmp.ne.s32.totalorder %s64, %s67
      %p76 = scmp.eq.s32.totalorder %s45, 3
      %p77 = por %p75, %p76
      %p78 = scmp.ne.s32.totalorder %s67, %s68
      %p79 = scmp.eq.s32.totalorder %s45, 0
      %p80 = por %p78, %p79
      %p81 = scmp.ne.s32.totalorder %s67, %s68
      %p82 = scmp.eq.s32.totalorder %s46, 3
      %p83 = por %p81, %p82
      %p85 = scmp.ne.s32.totalorder %s68, %s84
      %p86 = scmp.eq.s32.totalorder %s46, 0
      %p87 = por %p85, %p86
      %s89 = sadd.s32 %s88, 1
      %p92 = scmp.eq.s32.totalorder %s40, 3
      %p93 = scmp.ne.s32.totalorder %s88, %s90
      %p94 = scmp.eq.s32.totalorder %s40, 0
      %p95 = por %p93, %p94
      %p96 = scmp.ne.s32.totalorder %s88, %s90
      %p97 = scmp.eq.s32.totalorder %s45, 3
      %p98 = por %p96, %p97
      %p99 = scmp.ne.s32.totalorder %s90, %s91
      %p100 = scmp.eq.s32.totalorder %s45, 0
      %p101 = por %p99, %p100
      %p102 = scmp.ne.s32.totalorder %s90, %s91
      %p103 = scmp.eq.s32.totalorder %s46, 3
      %p104 = por %p102, %p103
      %p106 = scmp.ne.s32.totalorder %s91, %s105
      %p107 = scmp.eq.s32.totalorder %s46, 0
      %p108 = por %p106, %p107
      %s110 = sadd.s32 %s109, 1
      %p113 = scmp.eq.s32.totalorder %s40, 3
      %p114 = scmp.ne.s32.totalorder %s109, %s111
      %p115 = scmp.eq.s32.totalorder %s40, 0
      %p116 = por %p114, %p115
      %p117 = scmp.ne.s32.totalorder %s109, %s111
      %p118 = scmp.eq.s32.totalorder %s45, 3
      %p119 = por %p117, %p118
      %p120 = scmp.ne.s32.totalorder %s111, %s112
      %p121 = scmp.eq.s32.totalorder %s45, 0
      %p122 = por %p120, %p121
      %p123 = scmp.ne.s32.totalorder %s111, %s112
      %p124 = scmp.eq.s32.totalorder %s46, 3
      %p125 = por %p123, %p124
      %p127 = scmp.ne.s32.totalorder %s112, %s126
      %p128 = scmp.eq.s32.totalorder %s46, 0
      %p129 = por %p127, %p128
      %s131 = sadd.s32 %s130, 1
      %p134 = scmp.eq.s32.totalorder %s40, 3
      %p135 = scmp.ne.s32.totalorder %s130, %s132
      %p136 = scmp.eq.s32.totalorder %s40, 0
      %p137 = por %p135, %p136
      %p138 = scmp.ne.s32.totalorder %s130, %s132
      %p139 = scmp.eq.s32.totalorder %s45, 3
      %p140 = por %p138, %p139
      %p141 = scmp.ne.s32.totalorder %s132, %s133
      %p142 = scmp.eq.s32.totalorder %s45, 0
      %p143 = por %p141, %p142
      %p144 = scmp.ne.s32.totalorder %s132, %s133
      %p145 = scmp.eq.s32.totalorder %s46, 3
      %p146 = por %p144, %p145
      %p148 = scmp.ne.s32.totalorder %s133, %s147
      %p149 = scmp.eq.s32.totalorder %s46, 0
      %p150 = por %p148, %p149
      %s152 = sadd.s32 %s151, 1
      %p155 = scmp.eq.s32.totalorder %s40, 3
      %p156 = scmp.ne.s32.totalorder %s151, %s153
      %p157 = scmp.eq.s32.totalorder %s40, 0
      %p158 = por %p156, %p157
      %p159 = scmp.ne.s32.totalorder %s151, %s153
      %p160 = scmp.eq.s32.totalorder %s45, 3
      %p161 = por %p159, %p160
      %p162 = scmp.ne.s32.totalorder %s153, %s154
      %p163 = scmp.eq.s32.totalorder %s45, 0
      %p164 = por %p162, %p163
      %p165 = scmp.ne.s32.totalorder %s153, %s154
      %p166 = scmp.eq.s32.totalorder %s46, 3
      %p167 = por %p165, %p166
      %p169 = scmp.ne.s32.totalorder %s154, %s168
      %p170 = scmp.eq.s32.totalorder %s46, 0
      %p171 = por %p169, %p170
      %s173 = sadd.s32 %s172, 1
      %p176 = scmp.eq.s32.totalorder %s40, 3
      %p177 = scmp.ne.s32.totalorder %s172, %s174
      %p178 = scmp.eq.s32.totalorder %s40, 0
      %p179 = por %p177, %p178
      %p180 = scmp.ne.s32.totalorder %s172, %s174
      %p181 = scmp.eq.s32.totalorder %s45, 3
      %p182 = por %p180, %p181
      %p183 = scmp.ne.s32.totalorder %s174, %s175
      %p184 = scmp.eq.s32.totalorder %s45, 0
      %p185 = por %p183, %p184
      %p186 = scmp.ne.s32.totalorder %s174, %s175
      %p187 = scmp.eq.s32.totalorder %s46, 3
      %p188 = por %p186, %p187
      %p190 = scmp.ne.s32.totalorder %s175, %s189
      %p191 = scmp.eq.s32.totalorder %s46, 0
      %p192 = por %p190, %p191
      %s194 = sadd.s32 %s193, 1
      %p197 = scmp.eq.s32.totalorder %s40, 3
      %p198 = scmp.ne.s32.totalorder %s193, %s195
      %p199 = scmp.eq.s32.totalorder %s40, 0
      %p200 = por %p198, %p199
      %p201 = scmp.ne.s32.totalorder %s193, %s195
      %p202 = scmp.eq.s32.totalorder %s45, 3
      %p203 = por %p201, %p202
      %p204 = scmp.ne.s32.totalorder %s195, %s196
      %p205 = scmp.eq.s32.totalorder %s45, 0
      %p206 = por %p204, %p205
      %p207 = scmp.ne.s32.totalorder %s195, %s196
      %p208 = scmp.eq.s32.totalorder %s46, 3
      %p209 = por %p207, %p208
      %p211 = scmp.ne.s32.totalorder %s196, %s210
      %p212 = scmp.eq.s32.totalorder %s46, 0
      %p213 = por %p211, %p212
      %s215 = sadd.s32 %s214, 1
      %p218 = scmp.eq.s32.totalorder %s40, 3
      %p219 = scmp.ne.s32.totalorder %s214, %s216
      %p220 = scmp.eq.s32.totalorder %s40, 0
      %p221 = por %p219, %p220
      %p222 = scmp.ne.s32.totalorder %s214, %s216
      %p223 = scmp.eq.s32.totalorder %s45, 3
      %p224 = por %p222, %p223
      %p225 = scmp.ne.s32.totalorder %s216, %s217
      %p226 = scmp.eq.s32.totalorder %s45, 0
      %p227 = por %p225, %p226
      %p228 = scmp.ne.s32.totalorder %s216, %s217
      %p229 = scmp.eq.s32.totalorder %s46, 3
      %p230 = por %p228, %p229
      %p232 = scmp.ne.s32.totalorder %s217, %s231
      %p233 = scmp.eq.s32.totalorder %s46, 0
      %p234 = por %p232, %p233
      %s236 = sadd.s32 %s235, 1
      %p239 = scmp.eq.s32.totalorder %s40, 3
      %p240 = scmp.ne.s32.totalorder %s235, %s237
      %p241 = scmp.eq.s32.totalorder %s40, 0
      %p242 = por %p240, %p241
      %p243 = scmp.ne.s32.totalorder %s235, %s237
      %p244 = scmp.eq.s32.totalorder %s45, 3
      %p245 = por %p243, %p244
      %p246 = scmp.ne.s32.totalorder %s237, %s238
      %p247 = scmp.eq.s32.totalorder %s45, 0
      %p248 = por %p246, %p247
      %p249 = scmp.ne.s32.totalorder %s237, %s238
      %p250 = scmp.eq.s32.totalorder %s46, 3
      %p251 = por %p249, %p250
      %p253 = scmp.ne.s32.totalorder %s238, %s252
      %p254 = scmp.eq.s32.totalorder %s46, 0
      %p255 = por %p253, %p254
      %s257 = sadd.s32 %s256, 1
      %p260 = scmp.eq.s32.totalorder %s40, 3
      %p261 = scmp.ne.s32.totalorder %s256, %s258
      %p262 = scmp.eq.s32.totalorder %s40, 0
      %p263 = por %p261, %p262
      %p264 = scmp.ne.s32.totalorder %s256, %s258
      %p265 = scmp.eq.s32.totalorder %s45, 3
      %p266 = por %p264, %p265
      %p267 = scmp.ne.s32.totalorder %s258, %s259
      %p268 = scmp.eq.s32.totalorder %s45, 0
      %p269 = por %p267, %p268
      %p270 = scmp.ne.s32.totalorder %s258, %s259
      %p271 = scmp.eq.s32.totalorder %s46, 3
      %p272 = por %p270, %p271
      %p274 = scmp.ne.s32.totalorder %s259, %s273
      %p275 = scmp.eq.s32.totalorder %s46, 0
      %p276 = por %p274, %p275
      %s277 = ssub.s32 %s48, %s55
      %p278 = scmp.eq.s32.totalorder %s277, 0
      %s280 = sadd.s32 %s279, 1
      %s281 = scalar_select %p278, %s279, %s280
      %p284 = pneg %p278
      %p285 = scmp.eq.s32.totalorder %s40, 3
      %p286 = por %p284, %p285
      %p287 = scmp.ne.s32.totalorder %s279, %s282
      %p288 = scmp.eq.s32.totalorder %s40, 0
      %p289 = por %p287, %p288
      %p290 = scmp.ne.s32.totalorder %s279, %s282
      %p291 = scmp.eq.s32.totalorder %s45, 3
      %p292 = por %p290, %p291
      %p293 = scmp.ne.s32.totalorder %s282, %s283
      %p294 = scmp.eq.s32.totalorder %s45, 0
      %p295 = por %p293, %p294
      %p296 = scmp.ne.s32.totalorder %s282, %s283
      %p297 = scmp.eq.s32.totalorder %s46, 3
      %p298 = por %p296, %p297
      %p300 = scmp.ne.s32.totalorder %s283, %s299
      %p301 = scmp.eq.s32.totalorder %s46, 0
      %p302 = por %p300, %p301
      %s303 = ssub.s32 %s48, %s55
      %p304 = scmp.eq.s32.totalorder %s303, 0
      %s306 = sadd.s32 %s305, 1
      %s307 = scalar_select %p304, %s305, %s306
      %p310 = pneg %p304
      %p311 = scmp.eq.s32.totalorder %s40, 3
      %p312 = por %p310, %p311
      %p313 = scmp.ne.s32.totalorder %s305, %s308
      %p314 = scmp.eq.s32.totalorder %s40, 0
      %p315 = por %p313, %p314
      %p316 = scmp.ne.s32.totalorder %s305, %s308
      %p317 = scmp.eq.s32.totalorder %s45, 3
      %p318 = por %p316, %p317
      %p319 = scmp.ne.s32.totalorder %s308, %s309
      %p320 = scmp.eq.s32.totalorder %s45, 0
      %p321 = por %p319, %p320
      %p322 = scmp.ne.s32.totalorder %s308, %s309
      %p323 = scmp.eq.s32.totalorder %s46, 3
      %p324 = por %p322, %p323
      %p326 = scmp.ne.s32.totalorder %s309, %s325
      %p327 = scmp.eq.s32.totalorder %s46, 0
      %p328 = por %p326, %p327
      %s329 = ssub.s32 %s47, %s59
      %s330 = ssub.s32 %s48, %s55
      %s331 = sor.u32 %s329, %s330
      %p332 = scmp.eq.s32.totalorder %s331, 0
      %s334 = sadd.s32 %s333, 1
      %s335 = scalar_select %p332, %s333, %s334
      %p338 = pneg %p332
      %p339 = scmp.eq.s32.totalorder %s40, 3
      %p340 = por %p338, %p339
      %p341 = scmp.ne.s32.totalorder %s333, %s336
      %p342 = scmp.eq.s32.totalorder %s40, 0
      %p343 = por %p341, %p342
      %p344 = scmp.ne.s32.totalorder %s333, %s336
      %p345 = scmp.eq.s32.totalorder %s45, 3
      %p346 = por %p344, %p345
      %p347 = scmp.ne.s32.totalorder %s336, %s337
      %p348 = scmp.eq.s32.totalorder %s45, 0
      %p349 = por %p347, %p348
      %p350 = scmp.ne.s32.totalorder %s336, %s337
      %p351 = scmp.eq.s32.totalorder %s46, 3
      %p352 = por %p350, %p351
      %p354 = scmp.ne.s32.totalorder %s337, %s353
      %p355 = scmp.eq.s32.totalorder %s46, 0
      %p356 = por %p354, %p355
      %s357 = ssub.s32 %s47, %s59
      %s358 = ssub.s32 %s48, %s55
      %s359 = sor.u32 %s357, %s358
      %p360 = scmp.eq.s32.totalorder %s359, 0
      %s362 = sadd.s32 %s361, 1
      %s363 = scalar_select %p360, %s361, %s362
      %p366 = pneg %p360
      %p367 = scmp.eq.s32.totalorder %s40, 3
      %p368 = por %p366, %p367
      %p369 = scmp.ne.s32.totalorder %s361, %s364
      %p370 = scmp.eq.s32.totalorder %s40, 0
      %p371 = por %p369, %p370
      %p372 = scmp.ne.s32.totalorder %s361, %s364
      %p373 = scmp.eq.s32.totalorder %s45, 3
      %p374 = por %p372, %p373
      %p375 = scmp.ne.s32.totalorder %s364, %s365
      %p376 = scmp.eq.s32.totalorder %s45, 0
      %p377 = por %p375, %p376
      %p378 = scmp.ne.s32.totalorder %s364, %s365
      %p379 = scmp.eq.s32.totalorder %s46, 3
      %p380 = por %p378, %p379
      %p382 = scmp.ne.s32.totalorder %s365, %s381
      %p383 = scmp.eq.s32.totalorder %s46, 0
      %p384 = por %p382, %p383
      %s385 = ssub.s32 %s47, %s59
      %s386 = ssub.s32 %s48, %s55
      %s387 = sor.u32 %s385, %s386
      %p388 = scmp.eq.s32.totalorder %s387, 0
      %s390 = sadd.s32 %s389, 1
      %s391 = scalar_select %p388, %s389, %s390
      %p394 = pneg %p388
      %p395 = scmp.eq.s32.totalorder %s40, 3
      %p396 = por %p394, %p395
      %p397 = scmp.ne.s32.totalorder %s389, %s392
      %p398 = scmp.eq.s32.totalorder %s40, 0
      %p399 = por %p397, %p398
      %p400 = scmp.ne.s32.totalorder %s389, %s392
      %p401 = scmp.eq.s32.totalorder %s45, 3
      %p402 = por %p400, %p401
      %p403 = scmp.ne.s32.totalorder %s392, %s393
      %p404 = scmp.eq.s32.totalorder %s45, 0
      %p405 = por %p403, %p404
      %p406 = scmp.ne.s32.totalorder %s392, %s393
      %p407 = scmp.eq.s32.totalorder %s46, 3
      %p408 = por %p406, %p407
      %p410 = scmp.ne.s32.totalorder %s393, %s409
      %p411 = scmp.eq.s32.totalorder %s46, 0
      %p412 = por %p410, %p411
      %s413 = ssub.s32 %s47, %s59
      %s414 = ssub.s32 %s48, %s55
      %s415 = sor.u32 %s413, %s414
      %p416 = scmp.eq.s32.totalorder %s415, 0
      %s418 = sadd.s32 %s417, 1
      %s419 = scalar_select %p416, %s417, %s418
      %p422 = pneg %p416
      %p423 = scmp.eq.s32.totalorder %s40, 3
      %p424 = por %p422, %p423
      %p425 = scmp.ne.s32.totalorder %s417, %s420
      %p426 = scmp.eq.s32.totalorder %s40, 0
      %p427 = por %p425, %p426
      %p428 = scmp.ne.s32.totalorder %s417, %s420
      %p429 = scmp.eq.s32.totalorder %s45, 3
      %p430 = por %p428, %p429
      %p431 = scmp.ne.s32.totalorder %s420, %s421
      %p432 = scmp.eq.s32.totalorder %s45, 0
      %p433 = por %p431, %p432
      %p434 = scmp.ne.s32.totalorder %s420, %s421
      %p435 = scmp.eq.s32.totalorder %s46, 3
      %p436 = por %p434, %p435
      %p438 = scmp.ne.s32.totalorder %s421, %s437
      %p439 = scmp.eq.s32.totalorder %s46, 0
      %p440 = por %p438, %p439
      %s441 = ssub.s32 %s47, %s59
      %s442 = ssub.s32 %s48, %s55
      %s443 = sor.u32 %s441, %s442
      %p444 = scmp.eq.s32.totalorder %s443, 0
      %s446 = sadd.s32 %s445, 1
      %s447 = scalar_select %p444, %s445, %s446
      %p450 = pneg %p444
      %p451 = scmp.eq.s32.totalorder %s40, 3
      %p452 = por %p450, %p451
      %p453 = scmp.ne.s32.totalorder %s445, %s448
      %p454 = scmp.eq.s32.totalorder %s40, 0
      %p455 = por %p453, %p454
      %p456 = scmp.ne.s32.totalorder %s445, %s448
      %p457 = scmp.eq.s32.totalorder %s45, 3
      %p458 = por %p456, %p457
      %p459 = scmp.ne.s32.totalorder %s448, %s449
      %p460 = scmp.eq.s32.totalorder %s45, 0
      %p461 = por %p459, %p460
      %p462 = scmp.ne.s32.totalorder %s448, %s449
      %p463 = scmp.eq.s32.totalorder %s46, 3
      %p464 = por %p462, %p463
      %p466 = scmp.ne.s32.totalorder %s449, %s465
      %p467 = scmp.eq.s32.totalorder %s46, 0
      %p468 = por %p466, %p467
      %p469 = scmp.le.s32.totalorder 1, %s40
      %p470 = scmp.lt.s32.totalorder %s40, 5
      %p471 = pnand %p469, %p470
      %p472 = pneg %p471
      // Predicated region
      $region9: #{tpu_custom_call.1} parent=5 // pred_check
        _
      $region10: #{tpu_custom_call.1} parent=5 // pred_check_branch
        %474 = sbr.rel (%p471) target = $region12
      $region11: #{tpu_custom_call.1} parent=5 // pred_region
        %s475 = ssub.s32 %s40, 1
        // Predicated region
        $region13: #{tpu_custom_call.1} parent=11 // pred_check
          %p476 = pneg %p101
        $region14: #{tpu_custom_call.1} parent=11 // pred_check_branch
          %478 = sbr.rel (%p476) target = $region16
        $region15: #{tpu_custom_call.1} parent=11 // pred_region
          %s480 = ssub.s32 512, 512
          %481 = vsyncadd [#allocation6], %s480
          %s482 = sshll.u32 [#allocation5], 4
          %s483 = int_to_ptr.vmem [resolvable:$true] %s482
          %488 = dma.hbm_to_vmem [thread:$0]  %s1, 512, %s483, [#allocation6], 128, 128, 8
        $region16: #{tpu_custom_call.1} parent=11 // pred_fallthru
          _
        // Predicated region
        $region17: #{tpu_custom_call.1} parent=11 // pred_check
          %p489 = pneg %p122
        $region18: #{tpu_custom_call.1} parent=11 // pred_check_branch
          %491 = sbr.rel (%p489) target = $region20
        $region19: #{tpu_custom_call.1} parent=11 // pred_region
          %s493 = ssub.s32 1024, 1024
          %494 = vsyncadd [#allocation6], %s493
          %s495 = sshll.u32 [#allocation7], 4
          %s496 = int_to_ptr.vmem [resolvable:$true] %s495
          %501 = dma.hbm_to_vmem [thread:$0]  %s2, 1024, %s496, [#allocation6], 128, 128, 8
        $region20: #{tpu_custom_call.1} parent=11 // pred_fallthru
          _
        // Predicated region
        $region21: #{tpu_custom_call.1} parent=11 // pred_check
          %p502 = pneg %p143
        $region22: #{tpu_custom_call.1} parent=11 // pred_check_branch
          %504 = sbr.rel (%p502) target = $region24
        $region23: #{tpu_custom_call.1} parent=11 // pred_region
          %s506 = ssub.s32 1024, 1024
          %507 = vsyncadd [#allocation9], %s506
          %s508 = sshll.u32 [#allocation8], 4
          %s509 = int_to_ptr.vmem [resolvable:$true] %s508
          %514 = dma.hbm_to_vmem [thread:$0]  %s3, 1024, %s509, [#allocation9], 128, 128, 8
        $region24: #{tpu_custom_call.1} parent=11 // pred_fallthru
          _
        // Predicated region
        $region25: #{tpu_custom_call.1} parent=11 // pred_check
          %p515 = pneg %p164
        $region26: #{tpu_custom_call.1} parent=11 // pred_check_branch
          %517 = sbr.rel (%p515) target = $region28
        $region27: #{tpu_custom_call.1} parent=11 // pred_region
          %s519 = ssub.s32 1024, 1024
          %520 = vsyncadd [#allocation9], %s519
          %s521 = sshll.u32 [#allocation10], 4
          %s522 = int_to_ptr.vmem [resolvable:$true] %s521
          %527 = dma.hbm_to_vmem [thread:$0]  %s4, 1024, %s522, [#allocation9], 128, 128, 8
        $region28: #{tpu_custom_call.1} parent=11 // pred_fallthru
          _
        // Predicated region
        $region29: #{tpu_custom_call.1} parent=11 // pred_check
          %p528 = pneg %p185
        $region30: #{tpu_custom_call.1} parent=11 // pred_check_branch
          %530 = sbr.rel (%p528) target = $region32
        $region31: #{tpu_custom_call.1} parent=11 // pred_region
          %s532 = ssub.s32 512, 512
          %533 = vsyncadd [#allocation12], %s532
          %s534 = sshll.u32 [#allocation11], 4
          %s535 = int_to_ptr.vmem [resolvable:$true] %s534
          %540 = dma.hbm_to_vmem [thread:$0]  %s5, 512, %s535, [#allocation12], 128, 128, 8
        $region32: #{tpu_custom_call.1} parent=11 // pred_fallthru
          _
        // Predicated region
        $region33: #{tpu_custom_call.1} parent=11 // pred_check
          %p541 = pneg %p206
        $region34: #{tpu_custom_call.1} parent=11 // pred_check_branch
          %543 = sbr.rel (%p541) target = $region36
        $region35: #{tpu_custom_call.1} parent=11 // pred_region
          %s545 = ssub.s32 512, 512
          %546 = vsyncadd [#allocation12], %s545
          %s547 = sshll.u32 [#allocation13], 4
          %s548 = int_to_ptr.vmem [resolvable:$true] %s547
          %553 = dma.hbm_to_vmem [thread:$0]  %s6, 512, %s548, [#allocation12], 128, 128, 8
        $region36: #{tpu_custom_call.1} parent=11 // pred_fallthru
          _
        // Predicated region
        $region37: #{tpu_custom_call.1} parent=11 // pred_check
          %p554 = pneg %p227
        $region38: #{tpu_custom_call.1} parent=11 // pred_check_branch
          %556 = sbr.rel (%p554) target = $region40
        $region39: #{tpu_custom_call.1} parent=11 // pred_region
          %s558 = ssub.s32 512, 512
          %559 = vsyncadd [#allocation15], %s558
          %s560 = sshll.u32 [#allocation14], 4
          %s561 = int_to_ptr.vmem [resolvable:$true] %s560
          %566 = dma.hbm_to_vmem [thread:$0]  %s7, 512, %s561, [#allocation15], 128, 128, 8
        $region40: #{tpu_custom_call.1} parent=11 // pred_fallthru
          _
        // Predicated region
        $region41: #{tpu_custom_call.1} parent=11 // pred_check
          %p567 = pneg %p248
        $region42: #{tpu_custom_call.1} parent=11 // pred_check_branch
          %569 = sbr.rel (%p567) target = $region44
        $region43: #{tpu_custom_call.1} parent=11 // pred_region
          %s571 = ssub.s32 1024, 1024
          %572 = vsyncadd [#allocation15], %s571
          %s573 = sshll.u32 [#allocation16], 4
          %s574 = int_to_ptr.vmem [resolvable:$true] %s573
          %579 = dma.hbm_to_vmem [thread:$0]  %s8, 1024, %s574, [#allocation15], 128, 128, 8
        $region44: #{tpu_custom_call.1} parent=11 // pred_fallthru
          _
        // Predicated region
        $region45: #{tpu_custom_call.1} parent=11 // pred_check
          %p580 = pneg %p269
        $region46: #{tpu_custom_call.1} parent=11 // pred_check_branch
          %582 = sbr.rel (%p580) target = $region48
        $region47: #{tpu_custom_call.1} parent=11 // pred_region
          %s584 = ssub.s32 1024, 1024
          %585 = vsyncadd [#allocation18], %s584
          %s586 = sshll.u32 [#allocation17], 4
          %s587 = int_to_ptr.vmem [resolvable:$true] %s586
          %592 = dma.hbm_to_vmem [thread:$0]  %s9, 1024, %s587, [#allocation18], 128, 128, 8
        $region48: #{tpu_custom_call.1} parent=11 // pred_fallthru
          _
      $region12: #{tpu_custom_call.1} parent=5 // pred_fallthru
        _
      %p593 = scmp.lt.s32.totalorder %s40, 4
      // Predicated region
      $region49: #{tpu_custom_call.1} parent=5 // pred_check
        %p594 = pneg %p593
      $region50: #{tpu_custom_call.1} parent=5 // pred_check_branch
        %596 = sbr.rel (%p594) target = $region52
      $region51: #{tpu_custom_call.1} parent=5 // pred_region
        // Predicated region
        $region53: #{tpu_custom_call.1} parent=51 // pred_check
          %p597 = pneg %p74
        $region54: #{tpu_custom_call.1} parent=51 // pred_check_branch
          %599 = sbr.rel (%p597) target = $region56
        $region55: #{tpu_custom_call.1} parent=51 // pred_region
          %s600 = sand.u32 %s40, 1
          %s601 = scalar_lea.sflag [#allocation3], %s600
          %s602 = sand.u32 %s64, 1
          %s603 = smul.addr %s602, 8
          %s604 = scalar_lea.vmem [#allocation2], %s603
          %s606 = ssub.s32 128, 128
          %607 = vsyncadd %s601, %s606
          %s608 = smul.addr %s47, 2
          %s609 = sadd.s32 %s48, %s608
          %s610 = smul.addr %s609, 128
          %s611 = scalar_lea.hbm %s0, %s610
          %s613 = sshll.u32 %s604, 4
          %s614 = int_to_ptr.vmem [resolvable:$true] %s613
          %616 = dma.hbm_to_vmem [thread:$0]  %s611, 128, %s614, %s601
        $region56: #{tpu_custom_call.1} parent=51 // pred_fallthru
          _
        // Predicated region
        $region57: #{tpu_custom_call.1} parent=51 // pred_check
          %p617 = pneg %p289
        $region58: #{tpu_custom_call.1} parent=51 // pred_check_branch
          %619 = sbr.rel (%p617) target = $region60
        $region59: #{tpu_custom_call.1} parent=51 // pred_region
          %s620 = sand.u32 %s40, 1
          %s621 = scalar_lea.sflag [#allocation3], %s620
          %s622 = sand.u32 %s279, 1
          %s623 = smul.addr %s622, 8
          %s624 = scalar_lea.vmem [#allocation19], %s623
          %s626 = ssub.s32 128, 128
          %627 = vsyncadd %s621, %s626
          %s628 = smul.addr %s48, 128
          %s629 = scalar_lea.hbm %s10, %s628
          %s631 = sshll.u32 %s624, 4
          %s632 = int_to_ptr.vmem [resolvable:$true] %s631
          %634 = dma.hbm_to_vmem [thread:$0]  %s629, 128, %s632, %s621
        $region60: #{tpu_custom_call.1} parent=51 // pred_fallthru
          _
        // Predicated region
        $region61: #{tpu_custom_call.1} parent=51 // pred_check
          %p635 = pneg %p315
        $region62: #{tpu_custom_call.1} parent=51 // pred_check_branch
          %637 = sbr.rel (%p635) target = $region64
        $region63: #{tpu_custom_call.1} parent=51 // pred_region
          %s638 = sand.u32 %s40, 1
          %s639 = scalar_lea.sflag [#allocation3], %s638
          %s640 = sand.u32 %s305, 1
          %s641 = smul.addr %s640, 8
          %s642 = scalar_lea.vmem [#allocation20], %s641
          %s644 = ssub.s32 128, 128
          %645 = vsyncadd %s639, %s644
          %s646 = smul.addr %s48, 128
          %s647 = scalar_lea.hbm %s11, %s646
          %s649 = sshll.u32 %s642, 4
          %s650 = int_to_ptr.vmem [resolvable:$true] %s649
          %652 = dma.hbm_to_vmem [thread:$0]  %s647, 128, %s650, %s639
        $region64: #{tpu_custom_call.1} parent=51 // pred_fallthru
          _
      $region52: #{tpu_custom_call.1} parent=5 // pred_fallthru
        _
      %p653 = scmp.le.s32.totalorder 1, %s40
      %p654 = scmp.lt.s32.totalorder %s40, 5
      %p655 = pnand %p653, %p654
      %p656 = pneg %p655
      // Predicated region
      $region65: #{tpu_custom_call.1} parent=5 // pred_check
        _
      $region66: #{tpu_custom_call.1} parent=5 // pred_check_branch
        %658 = sbr.rel (%p655) target = $region68
      $region67: #{tpu_custom_call.1} parent=5 // pred_region
        %s659 = ssub.s32 %s40, 1
        %s660 = sand.u32 %s45, 1
        %s661 = scalar_lea.sflag [#allocation3], %s660
        %s662 = sand.u32 %s67, 1
        %s663 = smul.addr %s662, 8
        %s664 = scalar_lea.vmem [#allocation2], %s663
        // Predicated region
        $region69: #{tpu_custom_call.1} parent=67 // pred_check
          %p665 = pneg %p80
        $region70: #{tpu_custom_call.1} parent=67 // pred_check_branch
          %667 = sbr.rel (%p665) target = $region72
        $region71: #{tpu_custom_call.1} parent=67 // pred_region
          %668 = dma.done %s661, 128
        $region72: #{tpu_custom_call.1} parent=67 // pred_fallthru
          _
        // Predicated region
        $region73: #{tpu_custom_call.1} parent=67 // pred_check
          %p669 = pneg %p101
        $region74: #{tpu_custom_call.1} parent=67 // pred_check_branch
          %671 = sbr.rel (%p669) target = $region76
        $region75: #{tpu_custom_call.1} parent=67 // pred_region
          %672 = dma.done [#allocation6], 512
        $region76: #{tpu_custom_call.1} parent=67 // pred_fallthru
          _
        // Predicated region
        $region77: #{tpu_custom_call.1} parent=67 // pred_check
          %p673 = pneg %p122
        $region78: #{tpu_custom_call.1} parent=67 // pred_check_branch
          %675 = sbr.rel (%p673) target = $region80
        $region79: #{tpu_custom_call.1} parent=67 // pred_region
          %676 = dma.done [#allocation6], 1024
        $region80: #{tpu_custom_call.1} parent=67 // pred_fallthru
          _
        // Predicated region
        $region81: #{tpu_custom_call.1} parent=67 // pred_check
          %p677 = pneg %p143
        $region82: #{tpu_custom_call.1} parent=67 // pred_check_branch
          %679 = sbr.rel (%p677) target = $region84
        $region83: #{tpu_custom_call.1} parent=67 // pred_region
          %680 = dma.done [#allocation9], 1024
        $region84: #{tpu_custom_call.1} parent=67 // pred_fallthru
          _
        // Predicated region
        $region85: #{tpu_custom_call.1} parent=67 // pred_check
          %p681 = pneg %p164
        $region86: #{tpu_custom_call.1} parent=67 // pred_check_branch
          %683 = sbr.rel (%p681) target = $region88
        $region87: #{tpu_custom_call.1} parent=67 // pred_region
          %684 = dma.done [#allocation9], 1024
        $region88: #{tpu_custom_call.1} parent=67 // pred_fallthru
          _
        // Predicated region
        $region89: #{tpu_custom_call.1} parent=67 // pred_check
          %p685 = pneg %p185
        $region90: #{tpu_custom_call.1} parent=67 // pred_check_branch
          %687 = sbr.rel (%p685) target = $region92
        $region91: #{tpu_custom_call.1} parent=67 // pred_region
          %688 = dma.done [#allocation12], 512
        $region92: #{tpu_custom_call.1} parent=67 // pred_fallthru
          _
        // Predicated region
        $region93: #{tpu_custom_call.1} parent=67 // pred_check
          %p689 = pneg %p206
        $region94: #{tpu_custom_call.1} parent=67 // pred_check_branch
          %691 = sbr.rel (%p689) target = $region96
        $region95: #{tpu_custom_call.1} parent=67 // pred_region
          %692 = dma.done [#allocation12], 512
        $region96: #{tpu_custom_call.1} parent=67 // pred_fallthru
          _
        // Predicated region
        $region97: #{tpu_custom_call.1} parent=67 // pred_check
          %p693 = pneg %p227
        $region98: #{tpu_custom_call.1} parent=67 // pred_check_branch
          %695 = sbr.rel (%p693) target = $region100
        $region99: #{tpu_custom_call.1} parent=67 // pred_region
          %696 = dma.done [#allocation15], 512
        $region100: #{tpu_custom_call.1} parent=67 // pred_fallthru
          _
        // Predicated region
        $region101: #{tpu_custom_call.1} parent=67 // pred_check
          %p697 = pneg %p248
        $region102: #{tpu_custom_call.1} parent=67 // pred_check_branch
          %699 = sbr.rel (%p697) target = $region104
        $region103: #{tpu_custom_call.1} parent=67 // pred_region
          %700 = dma.done [#allocation15], 1024
        $region104: #{tpu_custom_call.1} parent=67 // pred_fallthru
          _
        // Predicated region
        $region105: #{tpu_custom_call.1} parent=67 // pred_check
          %p701 = pneg %p269
        $region106: #{tpu_custom_call.1} parent=67 // pred_check_branch
          %703 = sbr.rel (%p701) target = $region108
        $region107: #{tpu_custom_call.1} parent=67 // pred_region
          %704 = dma.done [#allocation18], 1024
        $region108: #{tpu_custom_call.1} parent=67 // pred_fallthru
          _
        %s705 = sand.u32 %s45, 1
        %s706 = scalar_lea.sflag [#allocation3], %s705
        %s707 = sand.u32 %s282, 1
        %s708 = smul.addr %s707, 8
        %s709 = scalar_lea.vmem [#allocation19], %s708
        // Predicated region
        $region109: #{tpu_custom_call.1} parent=67 // pred_check
          %p710 = pneg %p295
        $region110: #{tpu_custom_call.1} parent=67 // pred_check_branch
          %712 = sbr.rel (%p710) target = $region112
        $region111: #{tpu_custom_call.1} parent=67 // pred_region
          %713 = dma.done %s706, 128
        $region112: #{tpu_custom_call.1} parent=67 // pred_fallthru
          _
        %s714 = sand.u32 %s45, 1
        %s715 = scalar_lea.sflag [#allocation3], %s714
        %s716 = sand.u32 %s308, 1
        %s717 = smul.addr %s716, 8
        %s718 = scalar_lea.vmem [#allocation20], %s717
        // Predicated region
        $region113: #{tpu_custom_call.1} parent=67 // pred_check
          %p719 = pneg %p321
        $region114: #{tpu_custom_call.1} parent=67 // pred_check_branch
          %721 = sbr.rel (%p719) target = $region116
        $region115: #{tpu_custom_call.1} parent=67 // pred_region
          %722 = dma.done %s715, 128
        $region116: #{tpu_custom_call.1} parent=67 // pred_fallthru
          _
        %s723 = sand.u32 %s45, 1
        %s724 = scalar_lea.sflag [#allocation3], %s723
        %s725 = sand.u32 %s67, 1
        %s726 = smul.addr %s725, 8
        %s727 = scalar_lea.vmem [#allocation2], %s726
        %p728 = pneg %p80
        %p729 = pneg %p77
        %p730 = pneg %p101
        %p731 = pneg %p98
        %p732 = pneg %p122
        %p733 = pneg %p119
        %p734 = pneg %p143
        %p735 = pneg %p140
        %p736 = pneg %p164
        %p737 = pneg %p161
        %p738 = pneg %p185
        %p739 = pneg %p182
        %p740 = pneg %p206
        %p741 = pneg %p203
        %p742 = pneg %p227
        %p743 = pneg %p224
        %p744 = pneg %p248
        %p745 = pneg %p245
        %p746 = pneg %p269
        %p747 = pneg %p266
        %s748 = sand.u32 %s45, 1
        %s749 = scalar_lea.sflag [#allocation3], %s748
        %s750 = sand.u32 %s282, 1
        %s751 = smul.addr %s750, 8
        %s752 = scalar_lea.vmem [#allocation19], %s751
        %p753 = pneg %p295
        %p754 = pneg %p292
        %s755 = sand.u32 %s45, 1
        %s756 = scalar_lea.sflag [#allocation3], %s755
        %s757 = sand.u32 %s308, 1
        %s758 = smul.addr %s757, 8
        %s759 = scalar_lea.vmem [#allocation20], %s758
        %p760 = pneg %p321
        %p761 = pneg %p318
        %p762 = pneg %p349
        %p763 = pneg %p346
        %s764 = sand.u32 %s336, 1
        %s765 = scalar_lea.sflag [#allocation4], %s764
        %s766 = sand.u32 %s336, 1
        %s767 = smul.addr %s766, 8
        %s768 = scalar_lea.vmem [#allocation21], %s767
        %p769 = pneg %p377
        %p770 = pneg %p374
        %s771 = sand.u32 %s45, 1
        %s772 = scalar_lea.sflag [#allocation23], %s771
        %s773 = sand.u32 %s364, 1
        %s774 = smul.addr %s773, 8
        %s775 = scalar_lea.vmem [#allocation22], %s774
        %p776 = pneg %p405
        %p777 = pneg %p402
        %s778 = sand.u32 %s45, 1
        %s779 = scalar_lea.sflag [#allocation23], %s778
        %s780 = sand.u32 %s392, 1
        %s781 = smul.addr %s780, 8
        %s782 = scalar_lea.vmem [#allocation24], %s781
        %p783 = pneg %p433
        %p784 = pneg %p430
        %s785 = sand.u32 %s45, 1
        %s786 = scalar_lea.sflag [#allocation26], %s785
        %s787 = sand.u32 %s420, 1
        %s788 = smul.addr %s787, 8
        %s789 = scalar_lea.vmem [#allocation25], %s788
        %p790 = pneg %p461
        %p791 = pneg %p458
        %s792 = sand.u32 %s45, 1
        %s793 = scalar_lea.sflag [#allocation26], %s792
        %s794 = sand.u32 %s448, 1
        %s795 = smul.addr %s794, 8
        %s796 = scalar_lea.vmem [#allocation27], %s795
        %v797 = vld [vmem:[%s664] sm:$0xff]
        %v798 = vld [vmem:[#allocation5] sm:$0xff]
        %v799 = vld [vmem:[#allocation5 + $0x8] sm:$0xff]
        %v800 = vld [vmem:[#allocation5 + $0x10] sm:$0xff]
        %v801 = vld [vmem:[#allocation5 + $0x18] sm:$0xff]
        %vm802 = vcmask 261120
        %v804 = vsel %vm802, %v797, 0
        %806 = vmatprep.subr.mxu0 0.0
        %v807 = vand.u32 %v798, 4294901760
        %808 = vmatpush1.msra.mxu0 %v807
        %809 = vmatprep.subr.mxu0 0.0
        %v810 = vand.u32 %v799, 4294901760
        %811 = vmatpush1.msra.mxu0 %v810
        %812 = vmatprep.subr.mxu0 0.0
        %v813 = vand.u32 %v800, 4294901760
        %814 = vmatpush1.msra.mxu0 %v813
        %815 = vmatprep.subr.mxu0 0.0
        %v816 = vand.u32 %v801, 4294901760
        %817 = vmatpush1.msra.mxu0 %v816
        %818 = vmatprep.subr.mxu0 0.0
        %819 = vmatpush1.msra.mxu0 0.0
        %820 = vmatprep.subr.mxu0 0.0
        %821 = vmatpush1.msra.mxu0 0.0
        %822 = vmatprep.subr.mxu0 0.0
        %823 = vmatpush1.msra.mxu0 0.0
        %824 = vmatprep.subr.mxu0 0.0
        %825 = vmatpush1.msra.mxu0 0.0
        %826 = vmatprep.subr.mxu0 0.0
        %827 = vmatpush1.msra.mxu0 0.0
        %828 = vmatprep.subr.mxu0 0.0
        %829 = vmatpush1.msra.mxu0 0.0
        %830 = vmatprep.subr.mxu0 0.0
        %831 = vmatpush1.msra.mxu0 0.0
        %832 = vmatprep.subr.mxu0 0.0
        %833 = vmatpush1.msra.mxu0 0.0
        %834 = vmatprep.subr.mxu0 0.0
        %835 = vmatpush1.msra.mxu0 0.0
        %836 = vmatprep.subr.mxu0 0.0
        %837 = vmatpush1.msra.mxu0 0.0
        %838 = vmatprep.subr.mxu0 0.0
        %839 = vmatpush1.msra.mxu0 0.0
        %840 = vmatprep.subr.mxu0 0.0
        %841 = vmatpush1.msra.mxu0 0.0
        %842 = vmatprep.subr.mxu0 0.0
        %843 = vmatpush1.msra.mxu0 0.0
        %844 = vmatprep.subr.mxu0 0.0
        %845 = vmatpush1.msra.mxu0 0.0
        %846 = vmatprep.subr.mxu0 0.0
        %847 = vmatpush1.msra.mxu0 0.0
        %848 = vmatprep.subr.mxu0 0.0
        %849 = vmatpush1.msra.mxu0 0.0
        %850 = vmatprep.subr.mxu0 0.0
        %851 = vmatpush1.msra.mxu0 0.0
        %852 = vmatprep.subr.mxu0 0.0
        %853 = vmatpush1.msra.mxu0 0.0
        %854 = vmatprep.subr.mxu0 0.0
        %855 = vmatpush1.msra.mxu0 0.0
        %856 = vmatprep.subr.mxu0 0.0
        %857 = vmatpush1.msra.mxu0 0.0
        %858 = vmatprep.subr.mxu0 0.0
        %859 = vmatpush1.msra.mxu0 0.0
        %860 = vmatprep.subr.mxu0 0.0
        %861 = vmatpush1.msra.mxu0 0.0
        %862 = vmatprep.subr.mxu0 0.0
        %863 = vmatpush1.msra.mxu0 0.0
        %864 = vmatprep.subr.mxu0 0.0
        %865 = vmatpush1.msra.mxu0 0.0
        %866 = vmatprep.subr.mxu0 0.0
        %867 = vmatpush1.msra.mxu0 0.0
        %868 = vmatprep.subr.mxu0 0.0
        %869 = vmatpush1.msra.mxu0 0.0
        %870 = vmatprep.subr.mxu0 0.0
        %871 = vmatpush1.msra.mxu0 0.0
        %872 = vmatprep.subr.mxu0 0.0
        %873 = vmatpush1.msra.mxu0 0.0
        %874 = vmatprep.mubr.f32.mxu0 0.0
        %v875 = vand.u32 %v804, 4294901760
        %v876 = vsub.f32 %v804, %v875
        %v877 = vand.u32 %v876, 4294901760
        %v878 = vsub.f32 %v876, %v877
        %v879 = vand.u32 %v878, 4294901760
        %880 = vmatmul.mubr.f32.gmra.mrb[0].mxu0 %v879
        %v881 = vpop.f32.mrb[0].mxu0
        %v882 = vadd.f32 0.0, %v881
        %v883 = vpop.f32.mrb[0].mxu0
        %884 = vdwg.mxu0
        %885 = vmatprep.subr.mxu0 0.0
        %v886 = vand.u32 %v798, 4294901760
        %v887 = vsub.f32 %v798, %v886
        %v888 = vand.u32 %v887, 4294901760
        %v889 = vsub.f32 %v887, %v888
        %v890 = vand.u32 %v889, 4294901760
        %891 = vmatpush1.msra.mxu0 %v890
        %892 = vmatprep.subr.mxu0 0.0
        %v893 = vand.u32 %v799, 4294901760
        %v894 = vsub.f32 %v799, %v893
        %v895 = vand.u32 %v894, 4294901760
        %v896 = vsub.f32 %v894, %v895
        %v897 = vand.u32 %v896, 4294901760
        %898 = vmatpush1.msra.mxu0 %v897
        %899 = vmatprep.subr.mxu0 0.0
        %v900 = vand.u32 %v800, 4294901760
        %v901 = vsub.f32 %v800, %v900
        %v902 = vand.u32 %v901, 4294901760
        %v903 = vsub.f32 %v901, %v902
        %v904 = vand.u32 %v903, 4294901760
        %905 = vmatpush1.msra.mxu0 %v904
        %906 = vmatprep.subr.mxu0 0.0
        %v907 = vand.u32 %v801, 4294901760
        %v908 = vsub.f32 %v801, %v907
        %v909 = vand.u32 %v908, 4294901760
        %v910 = vsub.f32 %v908, %v909
        %v911 = vand.u32 %v910, 4294901760
        %912 = vmatpush1.msra.mxu0 %v911
        %913 = vmatprep.subr.mxu0 0.0
        %914 = vmatpush1.msra.mxu0 0.0
        %915 = vmatprep.subr.mxu0 0.0
        %916 = vmatpush1.msra.mxu0 0.0
        %917 = vmatprep.subr.mxu0 0.0
        %918 = vmatpush1.msra.mxu0 0.0
        %919 = vmatprep.subr.mxu0 0.0
        %920 = vmatpush1.msra.mxu0 0.0
        %921 = vmatprep.subr.mxu0 0.0
        %922 = vmatpush1.msra.mxu0 0.0
        %923 = vmatprep.subr.mxu0 0.0
        %924 = vmatpush1.msra.mxu0 0.0
        %925 = vmatprep.subr.mxu0 0.0
        %926 = vmatpush1.msra.mxu0 0.0
        %927 = vmatprep.subr.mxu0 0.0
        %928 = vmatpush1.msra.mxu0 0.0
        %929 = vmatprep.subr.mxu0 0.0
        %930 = vmatpush1.msra.mxu0 0.0
        %931 = vmatprep.subr.mxu0 0.0
        %932 = vmatpush1.msra.mxu0 0.0
        %933 = vmatprep.subr.mxu0 0.0
        %934 = vmatpush1.msra.mxu0 0.0
        %935 = vmatprep.subr.mxu0 0.0
        %936 = vmatpush1.msra.mxu0 0.0
        %937 = vmatprep.subr.mxu0 0.0
        %938 = vmatpush1.msra.mxu0 0.0
        %939 = vmatprep.subr.mxu0 0.0
        %940 = vmatpush1.msra.mxu0 0.0
        %941 = vmatprep.subr.mxu0 0.0
        %942 = vmatpush1.msra.mxu0 0.0
        %943 = vmatprep.subr.mxu0 0.0
        %944 = vmatpush1.msra.mxu0 0.0
        %945 = vmatprep.subr.mxu0 0.0
        %946 = vmatpush1.msra.mxu0 0.0
        %947 = vmatprep.subr.mxu0 0.0
        %948 = vmatpush1.msra.mxu0 0.0
        %949 = vmatprep.subr.mxu0 0.0
        %950 = vmatpush1.msra.mxu0 0.0
        %951 = vmatprep.subr.mxu0 0.0
        %952 = vmatpush1.msra.mxu0 0.0
        %953 = vmatprep.subr.mxu0 0.0
        %954 = vmatpush1.msra.mxu0 0.0
        %955 = vmatprep.subr.mxu0 0.0
        %956 = vmatpush1.msra.mxu0 0.0
        %957 = vmatprep.subr.mxu0 0.0
        %958 = vmatpush1.msra.mxu0 0.0
        %959 = vmatprep.subr.mxu0 0.0
        %960 = vmatpush1.msra.mxu0 0.0
        %961 = vmatprep.subr.mxu0 0.0
        %962 = vmatpush1.msra.mxu0 0.0
        %963 = vmatprep.subr.mxu0 0.0
        %964 = vmatpush1.msra.mxu0 0.0
        %965 = vmatprep.subr.mxu0 0.0
        %966 = vmatpush1.msra.mxu0 0.0
        %967 = vmatprep.subr.mxu0 0.0
        %968 = vmatpush1.msra.mxu0 0.0
        %969 = vmatprep.mubr.f32.mxu0 0.0
        %v970 = vand.u32 %v804, 4294901760
        %971 = vmatmul.mubr.f32.gmra.mrb[0].mxu0 %v970
        %v972 = vpop.f32.mrb[0].mxu0
        %v973 = vadd.f32 %v882, %v972
        %v974 = vpop.f32.mrb[0].mxu0
        %975 = vdwg.mxu0
        %976 = vmatprep.subr.mxu0 0.0
        %v977 = vand.u32 %v798, 4294901760
        %v978 = vsub.f32 %v798, %v977
        %979 = vmatpush1.msra.mxu0 %v978
        %980 = vmatprep.subr.mxu0 0.0
        %v981 = vand.u32 %v799, 4294901760
        %v982 = vsub.f32 %v799, %v981
        %983 = vmatpush1.msra.mxu0 %v982
        %984 = vmatprep.subr.mxu0 0.0
        %v985 = vand.u32 %v800, 4294901760
        %v986 = vsub.f32 %v800, %v985
        %987 = vmatpush1.msra.mxu0 %v986
        %988 = vmatprep.subr.mxu0 0.0
        %v989 = vand.u32 %v801, 4294901760
        %v990 = vsub.f32 %v801, %v989
        %991 = vmatpush1.msra.mxu0 %v990
        %992 = vmatprep.subr.mxu0 0.0
        %993 = vmatpush1.msra.mxu0 0.0
        %994 = vmatprep.subr.mxu0 0.0
        %995 = vmatpush1.msra.mxu0 0.0
        %996 = vmatprep.subr.mxu0 0.0
        %997 = vmatpush1.msra.mxu0 0.0
        %998 = vmatprep.subr.mxu0 0.0
        %999 = vmatpush1.msra.mxu0 0.0
        %1000 = vmatprep.subr.mxu0 0.0
        %1001 = vmatpush1.msra.mxu0 0.0
        %1002 = vmatprep.subr.mxu0 0.0
        %1003 = vmatpush1.msra.mxu0 0.0
        %1004 = vmatprep.subr.mxu0 0.0
        %1005 = vmatpush1.msra.mxu0 0.0
        %1006 = vmatprep.subr.mxu0 0.0
        %1007 = vmatpush1.msra.mxu0 0.0
        %1008 = vmatprep.subr.mxu0 0.0
        %1009 = vmatpush1.msra.mxu0 0.0
        %1010 = vmatprep.subr.mxu0 0.0
        %1011 = vmatpush1.msra.mxu0 0.0
        %1012 = vmatprep.subr.mxu0 0.0
        %1013 = vmatpush1.msra.mxu0 0.0
        %1014 = vmatprep.subr.mxu0 0.0
        %1015 = vmatpush1.msra.mxu0 0.0
        %1016 = vmatprep.subr.mxu0 0.0
        %1017 = vmatpush1.msra.mxu0 0.0
        %1018 = vmatprep.subr.mxu0 0.0
        %1019 = vmatpush1.msra.mxu0 0.0
        %1020 = vmatprep.subr.mxu0 0.0
        %1021 = vmatpush1.msra.mxu0 0.0
        %1022 = vmatprep.subr.mxu0 0.0
        %1023 = vmatpush1.msra.mxu0 0.0
        %1024 = vmatprep.subr.mxu0 0.0
        %1025 = vmatpush1.msra.mxu0 0.0
        %1026 = vmatprep.subr.mxu0 0.0
        %1027 = vmatpush1.msra.mxu0 0.0
        %1028 = vmatprep.subr.mxu0 0.0
        %1029 = vmatpush1.msra.mxu0 0.0
        %1030 = vmatprep.subr.mxu0 0.0
        %1031 = vmatpush1.msra.mxu0 0.0
        %1032 = vmatprep.subr.mxu0 0.0
        %1033 = vmatpush1.msra.mxu0 0.0
        %1034 = vmatprep.subr.mxu0 0.0
        %1035 = vmatpush1.msra.mxu0 0.0
        %1036 = vmatprep.subr.mxu0 0.0
        %1037 = vmatpush1.msra.mxu0 0.0
        %1038 = vmatprep.subr.mxu0 0.0
        %1039 = vmatpush1.msra.mxu0 0.0
        %1040 = vmatprep.subr.mxu0 0.0
        %1041 = vmatpush1.msra.mxu0 0.0
        %1042 = vmatprep.subr.mxu0 0.0
        %1043 = vmatpush1.msra.mxu0 0.0
        %1044 = vmatprep.subr.mxu0 0.0
        %1045 = vmatpush1.msra.mxu0 0.0
        %1046 = vmatprep.subr.mxu0 0.0
        %1047 = vmatpush1.msra.mxu0 0.0
        %1048 = vmatprep.mubr.f32.mxu0 0.0
        %v1049 = vand.u32 %v804, 4294901760
        %v1050 = vsub.f32 %v804, %v1049
        %1051 = vmatmul.mubr.f32.gmra.mrb[0].mxu0 %v1050
        %v1052 = vpop.f32.mrb[0].mxu0
        %v1053 = vadd.f32 %v973, %v1052
        %v1054 = vpop.f32.mrb[0].mxu0
        %1055 = vdwg.mxu0
        %1056 = vmatprep.subr.mxu0 0.0
        %v1057 = vand.u32 %v798, 4294901760
        %1058 = vmatpush1.msra.mxu0 %v1057
        %1059 = vmatprep.subr.mxu0 0.0
        %v1060 = vand.u32 %v799, 4294901760
        %1061 = vmatpush1.msra.mxu0 %v1060
        %1062 = vmatprep.subr.mxu0 0.0
        %v1063 = vand.u32 %v800, 4294901760
        %1064 = vmatpush1.msra.mxu0 %v1063
        %1065 = vmatprep.subr.mxu0 0.0
        %v1066 = vand.u32 %v801, 4294901760
        %1067 = vmatpush1.msra.mxu0 %v1066
        %1068 = vmatprep.subr.mxu0 0.0
        %1069 = vmatpush1.msra.mxu0 0.0
        %1070 = vmatprep.subr.mxu0 0.0
        %1071 = vmatpush1.msra.mxu0 0.0
        %1072 = vmatprep.subr.mxu0 0.0
        %1073 = vmatpush1.msra.mxu0 0.0
        %1074 = vmatprep.subr.mxu0 0.0
        %1075 = vmatpush1.msra.mxu0 0.0
        %1076 = vmatprep.subr.mxu0 0.0
        %1077 = vmatpush1.msra.mxu0 0.0
        %1078 = vmatprep.subr.mxu0 0.0
        %1079 = vmatpush1.msra.mxu0 0.0
        %1080 = vmatprep.subr.mxu0 0.0
        %1081 = vmatpush1.msra.mxu0 0.0
        %1082 = vmatprep.subr.mxu0 0.0
        %1083 = vmatpush1.msra.mxu0 0.0
        %1084 = vmatprep.subr.mxu0 0.0
        %1085 = vmatpush1.msra.mxu0 0.0
        %1086 = vmatprep.subr.mxu0 0.0
        %1087 = vmatpush1.msra.mxu0 0.0
        %1088 = vmatprep.subr.mxu0 0.0
        %1089 = vmatpush1.msra.mxu0 0.0
        %1090 = vmatprep.subr.mxu0 0.0
        %1091 = vmatpush1.msra.mxu0 0.0
        %1092 = vmatprep.subr.mxu0 0.0
        %1093 = vmatpush1.msra.mxu0 0.0
        %1094 = vmatprep.subr.mxu0 0.0
        %1095 = vmatpush1.msra.mxu0 0.0
        %1096 = vmatprep.subr.mxu0 0.0
        %1097 = vmatpush1.msra.mxu0 0.0
        %1098 = vmatprep.subr.mxu0 0.0
        %1099 = vmatpush1.msra.mxu0 0.0
        %1100 = vmatprep.subr.mxu0 0.0
        %1101 = vmatpush1.msra.mxu0 0.0
        %1102 = vmatprep.subr.mxu0 0.0
        %1103 = vmatpush1.msra.mxu0 0.0
        %1104 = vmatprep.subr.mxu0 0.0
        %1105 = vmatpush1.msra.mxu0 0.0
        %1106 = vmatprep.subr.mxu0 0.0
        %1107 = vmatpush1.msra.mxu0 0.0
        %1108 = vmatprep.subr.mxu0 0.0
        %1109 = vmatpush1.msra.mxu0 0.0
        %1110 = vmatprep.subr.mxu0 0.0
        %1111 = vmatpush1.msra.mxu0 0.0
        %1112 = vmatprep.subr.mxu0 0.0
        %1113 = vmatpush1.msra.mxu0 0.0
        %1114 = vmatprep.subr.mxu0 0.0
        %1115 = vmatpush1.msra.mxu0 0.0
        %1116 = vmatprep.subr.mxu0 0.0
        %1117 = vmatpush1.msra.mxu0 0.0
        %1118 = vmatprep.subr.mxu0 0.0
        %1119 = vmatpush1.msra.mxu0 0.0
        %1120 = vmatprep.subr.mxu0 0.0
        %1121 = vmatpush1.msra.mxu0 0.0
        %1122 = vmatprep.subr.mxu0 0.0
        %1123 = vmatpush1.msra.mxu0 0.0
        %1124 = vmatprep.mubr.f32.mxu0 0.0
        %v1125 = vand.u32 %v804, 4294901760
        %v1126 = vsub.f32 %v804, %v1125
        %v1127 = vand.u32 %v1126, 4294901760
        %1128 = vmatmul.mubr.f32.gmra.mrb[0].mxu0 %v1127
        %v1129 = vpop.f32.mrb[0].mxu0
        %v1130 = vadd.f32 %v1053, %v1129
        %v1131 = vpop.f32.mrb[0].mxu0
        %1132 = vdwg.mxu0
        %1133 = vmatprep.subr.mxu0 0.0
        %v1134 = vand.u32 %v798, 4294901760
        %v1135 = vsub.f32 %v798, %v1134
        %v1136 = vand.u32 %v1135, 4294901760
        %1137 = vmatpush1.msra.mxu0 %v1136
        %1138 = vmatprep.subr.mxu0 0.0
        %v1139 = vand.u32 %v799, 4294901760
        %v1140 = vsub.f32 %v799, %v1139
        %v1141 = vand.u32 %v1140, 4294901760
        %1142 = vmatpush1.msra.mxu0 %v1141
        %1143 = vmatprep.subr.mxu0 0.0
        %v1144 = vand.u32 %v800, 4294901760
        %v1145 = vsub.f32 %v800, %v1144
        %v1146 = vand.u32 %v1145, 4294901760
        %1147 = vmatpush1.msra.mxu0 %v1146
        %1148 = vmatprep.subr.mxu0 0.0
        %v1149 = vand.u32 %v801, 4294901760
        %v1150 = vsub.f32 %v801, %v1149
        %v1151 = vand.u32 %v1150, 4294901760
        %1152 = vmatpush1.msra.mxu0 %v1151
        %1153 = vmatprep.subr.mxu0 0.0
        %1154 = vmatpush1.msra.mxu0 0.0
        %1155 = vmatprep.subr.mxu0 0.0
        %1156 = vmatpush1.msra.mxu0 0.0
        %1157 = vmatprep.subr.mxu0 0.0
        %1158 = vmatpush1.msra.mxu0 0.0
        %1159 = vmatprep.subr.mxu0 0.0
        %1160 = vmatpush1.msra.mxu0 0.0
        %1161 = vmatprep.subr.mxu0 0.0
        %1162 = vmatpush1.msra.mxu0 0.0
        %1163 = vmatprep.subr.mxu0 0.0
        %1164 = vmatpush1.msra.mxu0 0.0
        %1165 = vmatprep.subr.mxu0 0.0
        %1166 = vmatpush1.msra.mxu0 0.0
        %1167 = vmatprep.subr.mxu0 0.0
        %1168 = vmatpush1.msra.mxu0 0.0
        %1169 = vmatprep.subr.mxu0 0.0
        %1170 = vmatpush1.msra.mxu0 0.0
        %1171 = vmatprep.subr.mxu0 0.0
        %1172 = vmatpush1.msra.mxu0 0.0
        %1173 = vmatprep.subr.mxu0 0.0
        %1174 = vmatpush1.msra.mxu0 0.0
        %1175 = vmatprep.subr.mxu0 0.0
        %1176 = vmatpush1.msra.mxu0 0.0
        %1177 = vmatprep.subr.mxu0 0.0
        %1178 = vmatpush1.msra.mxu0 0.0
        %1179 = vmatprep.subr.mxu0 0.0
        %1180 = vmatpush1.msra.mxu0 0.0
        %1181 = vmatprep.subr.mxu0 0.0
        %1182 = vmatpush1.msra.mxu0 0.0
        %1183 = vmatprep.subr.mxu0 0.0
        %1184 = vmatpush1.msra.mxu0 0.0
        %1185 = vmatprep.subr.mxu0 0.0
        %1186 = vmatpush1.msra.mxu0 0.0
        %1187 = vmatprep.subr.mxu0 0.0
        %1188 = vmatpush1.msra.mxu0 0.0
        %1189 = vmatprep.subr.mxu0 0.0
        %1190 = vmatpush1.msra.mxu0 0.0
        %1191 = vmatprep.subr.mxu0 0.0
        %1192 = vmatpush1.msra.mxu0 0.0
        %1193 = vmatprep.subr.mxu0 0.0
        %1194 = vmatpush1.msra.mxu0 0.0
        %1195 = vmatprep.subr.mxu0 0.0
        %1196 = vmatpush1.msra.mxu0 0.0
        %1197 = vmatprep.subr.mxu0 0.0
        %1198 = vmatpush1.msra.mxu0 0.0
        %1199 = vmatprep.subr.mxu0 0.0
        %1200 = vmatpush1.msra.mxu0 0.0
        %1201 = vmatprep.subr.mxu0 0.0
        %1202 = vmatpush1.msra.mxu0 0.0
        %1203 = vmatprep.subr.mxu0 0.0
        %1204 = vmatpush1.msra.mxu0 0.0
        %1205 = vmatprep.subr.mxu0 0.0
        %1206 = vmatpush1.msra.mxu0 0.0
        %1207 = vmatprep.subr.mxu0 0.0
        %1208 = vmatpush1.msra.mxu0 0.0
        %1209 = vmatprep.mubr.f32.mxu0 0.0
        %v1210 = vand.u32 %v804, 4294901760
        %1211 = vmatmul.mubr.f32.gmra.mrb[0].mxu0 %v1210
        %v1212 = vpop.f32.mrb[0].mxu0
        %v1213 = vadd.f32 %v1130, %v1212
        %v1214 = vpop.f32.mrb[0].mxu0
        %1215 = vdwg.mxu0
        %1216 = vmatprep.subr.mxu0 0.0
        %v1217 = vand.u32 %v798, 4294901760
        %1218 = vmatpush1.msra.mxu0 %v1217
        %1219 = vmatprep.subr.mxu0 0.0
        %v1220 = vand.u32 %v799, 4294901760
        %1221 = vmatpush1.msra.mxu0 %v1220
        %1222 = vmatprep.subr.mxu0 0.0
        %v1223 = vand.u32 %v800, 4294901760
        %1224 = vmatpush1.msra.mxu0 %v1223
        %1225 = vmatprep.subr.mxu0 0.0
        %v1226 = vand.u32 %v801, 4294901760
        %1227 = vmatpush1.msra.mxu0 %v1226
        %1228 = vmatprep.subr.mxu0 0.0
        %1229 = vmatpush1.msra.mxu0 0.0
        %1230 = vmatprep.subr.mxu0 0.0
        %1231 = vmatpush1.msra.mxu0 0.0
        %1232 = vmatprep.subr.mxu0 0.0
        %1233 = vmatpush1.msra.mxu0 0.0
        %1234 = vmatprep.subr.mxu0 0.0
        %1235 = vmatpush1.msra.mxu0 0.0
        %1236 = vmatprep.subr.mxu0 0.0
        %1237 = vmatpush1.msra.mxu0 0.0
        %1238 = vmatprep.subr.mxu0 0.0
        %1239 = vmatpush1.msra.mxu0 0.0
        %1240 = vmatprep.subr.mxu0 0.0
        %1241 = vmatpush1.msra.mxu0 0.0
        %1242 = vmatprep.subr.mxu0 0.0
        %1243 = vmatpush1.msra.mxu0 0.0
        %1244 = vmatprep.subr.mxu0 0.0
        %1245 = vmatpush1.msra.mxu0 0.0
        %1246 = vmatprep.subr.mxu0 0.0
        %1247 = vmatpush1.msra.mxu0 0.0
        %1248 = vmatprep.subr.mxu0 0.0
        %1249 = vmatpush1.msra.mxu0 0.0
        %1250 = vmatprep.subr.mxu0 0.0
        %1251 = vmatpush1.msra.mxu0 0.0
        %1252 = vmatprep.subr.mxu0 0.0
        %1253 = vmatpush1.msra.mxu0 0.0
        %1254 = vmatprep.subr.mxu0 0.0
        %1255 = vmatpush1.msra.mxu0 0.0
        %1256 = vmatprep.subr.mxu0 0.0
        %1257 = vmatpush1.msra.mxu0 0.0
        %1258 = vmatprep.subr.mxu0 0.0
        %1259 = vmatpush1.msra.mxu0 0.0
        %1260 = vmatprep.subr.mxu0 0.0
        %1261 = vmatpush1.msra.mxu0 0.0
        %1262 = vmatprep.subr.mxu0 0.0
        %1263 = vmatpush1.msra.mxu0 0.0
        %1264 = vmatprep.subr.mxu0 0.0
        %1265 = vmatpush1.msra.mxu0 0.0
        %1266 = vmatprep.subr.mxu0 0.0
        %1267 = vmatpush1.msra.mxu0 0.0
        %1268 = vmatprep.subr.mxu0 0.0
        %1269 = vmatpush1.msra.mxu0 0.0
        %1270 = vmatprep.subr.mxu0 0.0
        %1271 = vmatpush1.msra.mxu0 0.0
        %1272 = vmatprep.subr.mxu0 0.0
        %1273 = vmatpush1.msra.mxu0 0.0
        %1274 = vmatprep.subr.mxu0 0.0
        %1275 = vmatpush1.msra.mxu0 0.0
        %1276 = vmatprep.subr.mxu0 0.0
        %1277 = vmatpush1.msra.mxu0 0.0
        %1278 = vmatprep.subr.mxu0 0.0
        %1279 = vmatpush1.msra.mxu0 0.0
        %1280 = vmatprep.subr.mxu0 0.0
        %1281 = vmatpush1.msra.mxu0 0.0
        %1282 = vmatprep.subr.mxu0 0.0
        %1283 = vmatpush1.msra.mxu0 0.0
        %1284 = vmatprep.mubr.f32.mxu0 0.0
        %v1285 = vand.u32 %v804, 4294901760
        %1286 = vmatmul.mubr.f32.gmra.mrb[0].mxu0 %v1285
        %v1287 = vpop.f32.mrb[0].mxu0
        %v1288 = vadd.f32 %v1213, %v1287
        %v1289 = vpop.f32.mrb[0].mxu0
        %1290 = vdwg.mxu0
        %v1291 = vld [vmem:[#allocation7] sm:$0xff]
        %v1292 = vld [vmem:[#allocation7 + $0x8] sm:$0xff]
        %v1293 = vld [vmem:[#allocation7 + $0x10] sm:$0xff]
        %v1294 = vld [vmem:[#allocation7 + $0x18] sm:$0xff]
        %v1295 = vld [vmem:[#allocation7 + $0x20] sm:$0xff]
        %v1296 = vld [vmem:[#allocation7 + $0x28] sm:$0xff]
        %v1297 = vld [vmem:[#allocation7 + $0x30] sm:$0xff]
        %v1298 = vld [vmem:[#allocation7 + $0x38] sm:$0xff]
        %vm1299 = vcmask 523264
        %v1301 = vsel %vm1299, %v1288, 0
        %1303 = vmatprep.subr.mxu0 0.0
        %v1304 = vand.u32 %v1291, 4294901760
        %1305 = vmatpush1.msra.mxu0 %v1304
        %1306 = vmatprep.subr.mxu0 0.0
        %v1307 = vand.u32 %v1292, 4294901760
        %1308 = vmatpush1.msra.mxu0 %v1307
        %1309 = vmatprep.subr.mxu0 0.0
        %v1310 = vand.u32 %v1293, 4294901760
        %1311 = vmatpush1.msra.mxu0 %v1310
        %1312 = vmatprep.subr.mxu0 0.0
        %v1313 = vand.u32 %v1294, 4294901760
        %1314 = vmatpush1.msra.mxu0 %v1313
        %1315 = vmatprep.subr.mxu0 0.0
        %v1316 = vand.u32 %v1295, 4294901760
        %1317 = vmatpush1.msra.mxu0 %v1316
        %1318 = vmatprep.subr.mxu0 0.0
        %v1319 = vand.u32 %v1296, 4294901760
        %1320 = vmatpush1.msra.mxu0 %v1319
        %1321 = vmatprep.subr.mxu0 0.0
        %v1322 = vand.u32 %v1297, 4294901760
        %1323 = vmatpush1.msra.mxu0 %v1322
        %1324 = vmatprep.subr.mxu0 0.0
        %v1325 = vand.u32 %v1298, 4294901760
        %1326 = vmatpush1.msra.mxu0 %v1325
        %1327 = vmatprep.subr.mxu0 0.0
        %1328 = vmatpush1.msra.mxu0 0.0
        %1329 = vmatprep.subr.mxu0 0.0
        %1330 = vmatpush1.msra.mxu0 0.0
        %1331 = vmatprep.subr.mxu0 0.0
        %1332 = vmatpush1.msra.mxu0 0.0
        %1333 = vmatprep.subr.mxu0 0.0
        %1334 = vmatpush1.msra.mxu0 0.0
        %1335 = vmatprep.subr.mxu0 0.0
        %1336 = vmatpush1.msra.mxu0 0.0
        %1337 = vmatprep.subr.mxu0 0.0
        %1338 = vmatpush1.msra.mxu0 0.0
        %1339 = vmatprep.subr.mxu0 0.0
        %1340 = vmatpush1.msra.mxu0 0.0
        %1341 = vmatprep.subr.mxu0 0.0
        %1342 = vmatpush1.msra.mxu0 0.0
        %1343 = vmatprep.subr.mxu0 0.0
        %1344 = vmatpush1.msra.mxu0 0.0
        %1345 = vmatprep.subr.mxu0 0.0
        %1346 = vmatpush1.msra.mxu0 0.0
        %1347 = vmatprep.subr.mxu0 0.0
        %1348 = vmatpush1.msra.mxu0 0.0
        %1349 = vmatprep.subr.mxu0 0.0
        %1350 = vmatpush1.msra.mxu0 0.0
        %1351 = vmatprep.subr.mxu0 0.0
        %1352 = vmatpush1.msra.mxu0 0.0
        %1353 = vmatprep.subr.mxu0 0.0
        %1354 = vmatpush1.msra.mxu0 0.0
        %1355 = vmatprep.subr.mxu0 0.0
        %1356 = vmatpush1.msra.mxu0 0.0
        %1357 = vmatprep.subr.mxu0 0.0
        %1358 = vmatpush1.msra.mxu0 0.0
        %1359 = vmatprep.subr.mxu0 0.0
        %1360 = vmatpush1.msra.mxu0 0.0
        %1361 = vmatprep.subr.mxu0 0.0
        %1362 = vmatpush1.msra.mxu0 0.0
        %1363 = vmatprep.subr.mxu0 0.0
        %1364 = vmatpush1.msra.mxu0 0.0
        %1365 = vmatprep.subr.mxu0 0.0
        %1366 = vmatpush1.msra.mxu0 0.0
        %1367 = vmatprep.subr.mxu0 0.0
        %1368 = vmatpush1.msra.mxu0 0.0
        %1369 = vmatprep.subr.mxu0 0.0
        %1370 = vmatpush1.msra.mxu0 0.0
        %1371 = vmatprep.subr.mxu0 0.0
        %1372 = vmatpush1.msra.mxu0 0.0
        %1373 = vmatprep.subr.mxu0 0.0
        %1374 = vmatpush1.msra.mxu0 0.0
        %1375 = vmatprep.mubr.f32.mxu0 0.0
        %v1376 = vand.u32 %v1301, 4294901760
        %v1377 = vsub.f32 %v1301, %v1376
        %v1378 = vand.u32 %v1377, 4294901760
        %v1379 = vsub.f32 %v1377, %v1378
        %v1380 = vand.u32 %v1379, 4294901760
        %1381 = vmatmul.mubr.f32.gmra.mrb[0].mxu0 %v1380
        %v1382 = vpop.f32.mrb[0].mxu0
        %v1383 = vadd.f32 0.0, %v1382
        %v1384 = vpop.f32.mrb[0].mxu0
        %1385 = vdwg.mxu0
        %1386 = vmatprep.subr.mxu0 0.0
        %v1387 = vand.u32 %v1291, 4294901760
        %v1388 = vsub.f32 %v1291, %v1387
        %v1389 = vand.u32 %v1388, 4294901760
        %v1390 = vsub.f32 %v1388, %v1389
        %v1391 = vand.u32 %v1390, 4294901760
        %1392 = vmatpush1.msra.mxu0 %v1391
        %1393 = vmatprep.subr.mxu0 0.0
        %v1394 = vand.u32 %v1292, 4294901760
        %v1395 = vsub.f32 %v1292, %v1394
        %v1396 = vand.u32 %v1395, 4294901760
        %v1397 = vsub.f32 %v1395, %v1396
        %v1398 = vand.u32 %v1397, 4294901760
        %1399 = vmatpush1.msra.mxu0 %v1398
        %1400 = vmatprep.subr.mxu0 0.0
        %v1401 = vand.u32 %v1293, 4294901760
        %v1402 = vsub.f32 %v1293, %v1401
        %v1403 = vand.u32 %v1402, 4294901760
        %v1404 = vsub.f32 %v1402, %v1403
        %v1405 = vand.u32 %v1404, 4294901760
        %1406 = vmatpush1.msra.mxu0 %v1405
        %1407 = vmatprep.subr.mxu0 0.0
        %v1408 = vand.u32 %v1294, 4294901760
        %v1409 = vsub.f32 %v1294, %v1408
        %v1410 = vand.u32 %v1409, 4294901760
        %v1411 = vsub.f32 %v1409, %v1410
        %v1412 = vand.u32 %v1411, 4294901760
        %1413 = vmatpush1.msra.mxu0 %v1412
        %1414 = vmatprep.subr.mxu0 0.0
        %v1415 = vand.u32 %v1295, 4294901760
        %v1416 = vsub.f32 %v1295, %v1415
        %v1417 = vand.u32 %v1416, 4294901760
        %v1418 = vsub.f32 %v1416, %v1417
        %v1419 = vand.u32 %v1418, 4294901760
        %1420 = vmatpush1.msra.mxu0 %v1419
        %1421 = vmatprep.subr.mxu0 0.0
        %v1422 = vand.u32 %v1296, 4294901760
        %v1423 = vsub.f32 %v1296, %v1422
        %v1424 = vand.u32 %v1423, 4294901760
        %v1425 = vsub.f32 %v1423, %v1424
        %v1426 = vand.u32 %v1425, 4294901760
        %1427 = vmatpush1.msra.mxu0 %v1426
        %1428 = vmatprep.subr.mxu0 0.0
        %v1429 = vand.u32 %v1297, 4294901760
        %v1430 = vsub.f32 %v1297, %v1429
        %v1431 = vand.u32 %v1430, 4294901760
        %v1432 = vsub.f32 %v1430, %v1431
        %v1433 = vand.u32 %v1432, 4294901760
        %1434 = vmatpush1.msra.mxu0 %v1433
        %1435 = vmatprep.subr.mxu0 0.0
        %v1436 = vand.u32 %v1298, 4294901760
        %v1437 = vsub.f32 %v1298, %v1436
        %v1438 = vand.u32 %v1437, 4294901760
        %v1439 = vsub.f32 %v1437, %v1438
        %v1440 = vand.u32 %v1439, 4294901760
        %1441 = vmatpush1.msra.mxu0 %v1440
        %1442 = vmatprep.subr.mxu0 0.0
        %1443 = vmatpush1.msra.mxu0 0.0
        %1444 = vmatprep.subr.mxu0 0.0
        %1445 = vmatpush1.msra.mxu0 0.0
        %1446 = vmatprep.subr.mxu0 0.0
        %1447 = vmatpush1.msra.mxu0 0.0
        %1448 = vmatprep.subr.mxu0 0.0
        %1449 = vmatpush1.msra.mxu0 0.0
        %1450 = vmatprep.subr.mxu0 0.0
        %1451 = vmatpush1.msra.mxu0 0.0
        %1452 = vmatprep.subr.mxu0 0.0
        %1453 = vmatpush1.msra.mxu0 0.0
        %1454 = vmatprep.subr.mxu0 0.0
        %1455 = vmatpush1.msra.mxu0 0.0
        %1456 = vmatprep.subr.mxu0 0.0
        %1457 = vmatpush1.msra.mxu0 0.0
        %1458 = vmatprep.subr.mxu0 0.0
        %1459 = vmatpush1.msra.mxu0 0.0
        %1460 = vmatprep.subr.mxu0 0.0
        %1461 = vmatpush1.msra.mxu0 0.0
        %1462 = vmatprep.subr.mxu0 0.0
        %1463 = vmatpush1.msra.mxu0 0.0
        %1464 = vmatprep.subr.mxu0 0.0
        %1465 = vmatpush1.msra.mxu0 0.0
        %1466 = vmatprep.subr.mxu0 0.0
        %1467 = vmatpush1.msra.mxu0 0.0
        %1468 = vmatprep.subr.mxu0 0.0
        %1469 = vmatpush1.msra.mxu0 0.0
        %1470 = vmatprep.subr.mxu0 0.0
        %1471 = vmatpush1.msra.mxu0 0.0
        %1472 = vmatprep.subr.mxu0 0.0
        %1473 = vmatpush1.msra.mxu0 0.0
        %1474 = vmatprep.subr.mxu0 0.0
        %1475 = vmatpush1.msra.mxu0 0.0
        %1476 = vmatprep.subr.mxu0 0.0
        %1477 = vmatpush1.msra.mxu0 0.0
        %1478 = vmatprep.subr.mxu0 0.0
        %1479 = vmatpush1.msra.mxu0 0.0
        %1480 = vmatprep.subr.mxu0 0.0
        %1481 = vmatpush1.msra.mxu0 0.0
        %1482 = vmatprep.subr.mxu0 0.0
        %1483 = vmatpush1.msra.mxu0 0.0
        %1484 = vmatprep.subr.mxu0 0.0
        %1485 = vmatpush1.msra.mxu0 0.0
        %1486 = vmatprep.subr.mxu0 0.0
        %1487 = vmatpush1.msra.mxu0 0.0
        %1488 = vmatprep.subr.mxu0 0.0
        %1489 = vmatpush1.msra.mxu0 0.0
        %1490 = vmatprep.mubr.f32.mxu0 0.0
        %v1491 = vand.u32 %v1301, 4294901760
        %1492 = vmatmul.mubr.f32.gmra.mrb[0].mxu0 %v1491
        %v1493 = vpop.f32.mrb[0].mxu0
        %v1494 = vadd.f32 %v1383, %v1493
        %v1495 = vpop.f32.mrb[0].mxu0
        %1496 = vdwg.mxu0
        %1497 = vmatprep.subr.mxu0 0.0
        %v1498 = vand.u32 %v1291, 4294901760
        %v1499 = vsub.f32 %v1291, %v1498
        %1500 = vmatpush1.msra.mxu0 %v1499
        %1501 = vmatprep.subr.mxu0 0.0
        %v1502 = vand.u32 %v1292, 4294901760
        %v1503 = vsub.f32 %v1292, %v1502
        %1504 = vmatpush1.msra.mxu0 %v1503
        %1505 = vmatprep.subr.mxu0 0.0
        %v1506 = vand.u32 %v1293, 4294901760
        %v1507 = vsub.f32 %v1293, %v1506
        %1508 = vmatpush1.msra.mxu0 %v1507
        %1509 = vmatprep.subr.mxu0 0.0
        %v1510 = vand.u32 %v1294, 4294901760
        %v1511 = vsub.f32 %v1294, %v1510
        %1512 = vmatpush1.msra.mxu0 %v1511
        %1513 = vmatprep.subr.mxu0 0.0
        %v1514 = vand.u32 %v1295, 4294901760
        %v1515 = vsub.f32 %v1295, %v1514
        %1516 = vmatpush1.msra.mxu0 %v1515
        %1517 = vmatprep.subr.mxu0 0.0
        %v1518 = vand.u32 %v1296, 4294901760
        %v1519 = vsub.f32 %v1296, %v1518
        %1520 = vmatpush1.msra.mxu0 %v1519
        %1521 = vmatprep.subr.mxu0 0.0
        %v1522 = vand.u32 %v1297, 4294901760
        %v1523 = vsub.f32 %v1297, %v1522
        %1524 = vmatpush1.msra.mxu0 %v1523
        %1525 = vmatprep.subr.mxu0 0.0
        %v1526 = vand.u32 %v1298, 4294901760
        %v1527 = vsub.f32 %v1298, %v1526
        %1528 = vmatpush1.msra.mxu0 %v1527
        %1529 = vmatprep.subr.mxu0 0.0
        %1530 = vmatpush1.msra.mxu0 0.0
        %1531 = vmatprep.subr.mxu0 0.0
        %1532 = vmatpush1.msra.mxu0 0.0
        %1533 = vmatprep.subr.mxu0 0.0
        %1534 = vmatpush1.msra.mxu0 0.0
        %1535 = vmatprep.subr.mxu0 0.0
        %1536 = vmatpush1.msra.mxu0 0.0
        %1537 = vmatprep.subr.mxu0 0.0
        %1538 = vmatpush1.msra.mxu0 0.0
        %1539 = vmatprep.subr.mxu0 0.0
        %1540 = vmatpush1.msra.mxu0 0.0
        %1541 = vmatprep.subr.mxu0 0.0
        %1542 = vmatpush1.msra.mxu0 0.0
        %1543 = vmatprep.subr.mxu0 0.0
        %1544 = vmatpush1.msra.mxu0 0.0
        %1545 = vmatprep.subr.mxu0 0.0
        %1546 = vmatpush1.msra.mxu0 0.0
        %1547 = vmatprep.subr.mxu0 0.0
        %1548 = vmatpush1.msra.mxu0 0.0
        %1549 = vmatprep.subr.mxu0 0.0
        %1550 = vmatpush1.msra.mxu0 0.0
        %1551 = vmatprep.subr.mxu0 0.0
        %1552 = vmatpush1.msra.mxu0 0.0
        %1553 = vmatprep.subr.mxu0 0.0
        %1554 = vmatpush1.msra.mxu0 0.0
        %1555 = vmatprep.subr.mxu0 0.0
        %1556 = vmatpush1.msra.mxu0 0.0
        %1557 = vmatprep.subr.mxu0 0.0
        %1558 = vmatpush1.msra.mxu0 0.0
        %1559 = vmatprep.subr.mxu0 0.0
        %1560 = vmatpush1.msra.mxu0 0.0
        %1561 = vmatprep.subr.mxu0 0.0
        %1562 = vmatpush1.msra.mxu0 0.0
        %1563 = vmatprep.subr.mxu0 0.0
        %1564 = vmatpush1.msra.mxu0 0.0
        %1565 = vmatprep.subr.mxu0 0.0
        %1566 = vmatpush1.msra.mxu0 0.0
        %1567 = vmatprep.subr.mxu0 0.0
        %1568 = vmatpush1.msra.mxu0 0.0
        %1569 = vmatprep.subr.mxu0 0.0
        %1570 = vmatpush1.msra.mxu0 0.0
        %1571 = vmatprep.subr.mxu0 0.0
        %1572 = vmatpush1.msra.mxu0 0.0
        %1573 = vmatprep.subr.mxu0 0.0
        %1574 = vmatpush1.msra.mxu0 0.0
        %1575 = vmatprep.subr.mxu0 0.0
        %1576 = vmatpush1.msra.mxu0 0.0
        %1577 = vmatprep.mubr.f32.mxu0 0.0
        %v1578 = vand.u32 %v1301, 4294901760
        %v1579 = vsub.f32 %v1301, %v1578
        %1580 = vmatmul.mubr.f32.gmra.mrb[0].mxu0 %v1579
        %v1581 = vpop.f32.mrb[0].mxu0
        %v1582 = vadd.f32 %v1494, %v1581
        %v1583 = vpop.f32.mrb[0].mxu0
        %1584 = vdwg.mxu0
        %1585 = vmatprep.subr.mxu0 0.0
        %v1586 = vand.u32 %v1291, 4294901760
        %1587 = vmatpush1.msra.mxu0 %v1586
        %1588 = vmatprep.subr.mxu0 0.0
        %v1589 = vand.u32 %v1292, 4294901760
        %1590 = vmatpush1.msra.mxu0 %v1589
        %1591 = vmatprep.subr.mxu0 0.0
        %v1592 = vand.u32 %v1293, 4294901760
        %1593 = vmatpush1.msra.mxu0 %v1592
        %1594 = vmatprep.subr.mxu0 0.0
        %v1595 = vand.u32 %v1294, 4294901760
        %1596 = vmatpush1.msra.mxu0 %v1595
        %1597 = vmatprep.subr.mxu0 0.0
        %v1598 = vand.u32 %v1295, 4294901760
        %1599 = vmatpush1.msra.mxu0 %v1598
        %1600 = vmatprep.subr.mxu0 0.0
        %v1601 = vand.u32 %v1296, 4294901760
        %1602 = vmatpush1.msra.mxu0 %v1601
        %1603 = vmatprep.subr.mxu0 0.0
        %v1604 = vand.u32 %v1297, 4294901760
        %1605 = vmatpush1.msra.mxu0 %v1604
        %1606 = vmatprep.subr.mxu0 0.0
        %v1607 = vand.u32 %v1298, 4294901760
        %1608 = vmatpush1.msra.mxu0 %v1607
        %1609 = vmatprep.subr.mxu0 0.0
        %1610 = vmatpush1.msra.mxu0 0.0
        %1611 = vmatprep.subr.mxu0 0.0
        %1612 = vmatpush1.msra.mxu0 0.0
        %1613 = vmatprep.subr.mxu0 0.0
        %1614 = vmatpush1.msra.mxu0 0.0
        %1615 = vmatprep.subr.mxu0 0.0
        %1616 = vmatpush1.msra.mxu0 0.0
        %1617 = vmatprep.subr.mxu0 0.0
        %1618 = vmatpush1.msra.mxu0 0.0
        %1619 = vmatprep.subr.mxu0 0.0
        %1620 = vmatpush1.msra.mxu0 0.0
        %1621 = vmatprep.subr.mxu0 0.0
        %1622 = vmatpush1.msra.mxu0 0.0
        %1623 = vmatprep.subr.mxu0 0.0
        %1624 = vmatpush1.msra.mxu0 0.0
        %1625 = vmatprep.subr.mxu0 0.0
        %1626 = vmatpush1.msra.mxu0 0.0
        %1627 = vmatprep.subr.mxu0 0.0
        %1628 = vmatpush1.msra.mxu0 0.0
        %1629 = vmatprep.subr.mxu0 0.0
        %1630 = vmatpush1.msra.mxu0 0.0
        %1631 = vmatprep.subr.mxu0 0.0
        %1632 = vmatpush1.msra.mxu0 0.0
        %1633 = vmatprep.subr.mxu0 0.0
        %1634 = vmatpush1.msra.mxu0 0.0
        %1635 = vmatprep.subr.mxu0 0.0
        %1636 = vmatpush1.msra.mxu0 0.0
        %1637 = vmatprep.subr.mxu0 0.0
        %1638 = vmatpush1.msra.mxu0 0.0
        %1639 = vmatprep.subr.mxu0 0.0
        %1640 = vmatpush1.msra.mxu0 0.0
        %1641 = vmatprep.subr.mxu0 0.0
        %1642 = vmatpush1.msra.mxu0 0.0
        %1643 = vmatprep.subr.mxu0 0.0
        %1644 = vmatpush1.msra.mxu0 0.0
        %1645 = vmatprep.subr.mxu0 0.0
        %1646 = vmatpush1.msra.mxu0 0.0
        %1647 = vmatprep.subr.mxu0 0.0
        %1648 = vmatpush1.msra.mxu0 0.0
        %1649 = vmatprep.subr.mxu0 0.0
        %1650 = vmatpush1.msra.mxu0 0.0
        %1651 = vmatprep.subr.mxu0 0.0
        %1652 = vmatpush1.msra.mxu0 0.0
        %1653 = vmatprep.subr.mxu0 0.0
        %1654 = vmatpush1.msra.mxu0 0.0
        %1655 = vmatprep.subr.mxu0 0.0
        %1656 = vmatpush1.msra.mxu0 0.0
        %1657 = vmatprep.mubr.f32.mxu0 0.0
        %v1658 = vand.u32 %v1301, 4294901760
        %v1659 = vsub.f32 %v1301, %v1658
        %v1660 = vand.u32 %v1659, 4294901760
        %1661 = vmatmul.mubr.f32.gmra.mrb[0].mxu0 %v1660
        %v1662 = vpop.f32.mrb[0].mxu0
        %v1663 = vadd.f32 %v1582, %v1662
        %v1664 = vpop.f32.mrb[0].mxu0
        %1665 = vdwg.mxu0
        %1666 = vmatprep.subr.mxu0 0.0
        %v1667 = vand.u32 %v1291, 4294901760
        %v1668 = vsub.f32 %v1291, %v1667
        %v1669 = vand.u32 %v1668, 4294901760
        %1670 = vmatpush1.msra.mxu0 %v1669
        %1671 = vmatprep.subr.mxu0 0.0
        %v1672 = vand.u32 %v1292, 4294901760
        %v1673 = vsub.f32 %v1292, %v1672
        %v1674 = vand.u32 %v1673, 4294901760
        %1675 = vmatpush1.msra.mxu0 %v1674
        %1676 = vmatprep.subr.mxu0 0.0
        %v1677 = vand.u32 %v1293, 4294901760
        %v1678 = vsub.f32 %v1293, %v1677
        %v1679 = vand.u32 %v1678, 4294901760
        %1680 = vmatpush1.msra.mxu0 %v1679
        %1681 = vmatprep.subr.mxu0 0.0
        %v1682 = vand.u32 %v1294, 4294901760
        %v1683 = vsub.f32 %v1294, %v1682
        %v1684 = vand.u32 %v1683, 4294901760
        %1685 = vmatpush1.msra.mxu0 %v1684
        %1686 = vmatprep.subr.mxu0 0.0
        %v1687 = vand.u32 %v1295, 4294901760
        %v1688 = vsub.f32 %v1295, %v1687
        %v1689 = vand.u32 %v1688, 4294901760
        %1690 = vmatpush1.msra.mxu0 %v1689
        %1691 = vmatprep.subr.mxu0 0.0
        %v1692 = vand.u32 %v1296, 4294901760
        %v1693 = vsub.f32 %v1296, %v1692
        %v1694 = vand.u32 %v1693, 4294901760
        %1695 = vmatpush1.msra.mxu0 %v1694
        %1696 = vmatprep.subr.mxu0 0.0
        %v1697 = vand.u32 %v1297, 4294901760
        %v1698 = vsub.f32 %v1297, %v1697
        %v1699 = vand.u32 %v1698, 4294901760
        %1700 = vmatpush1.msra.mxu0 %v1699
        %1701 = vmatprep.subr.mxu0 0.0
        %v1702 = vand.u32 %v1298, 4294901760
        %v1703 = vsub.f32 %v1298, %v1702
        %v1704 = vand.u32 %v1703, 4294901760
        %1705 = vmatpush1.msra.mxu0 %v1704
        %1706 = vmatprep.subr.mxu0 0.0
        %1707 = vmatpush1.msra.mxu0 0.0
        %1708 = vmatprep.subr.mxu0 0.0
        %1709 = vmatpush1.msra.mxu0 0.0
        %1710 = vmatprep.subr.mxu0 0.0
        %1711 = vmatpush1.msra.mxu0 0.0
        %1712 = vmatprep.subr.mxu0 0.0
        %1713 = vmatpush1.msra.mxu0 0.0
        %1714 = vmatprep.subr.mxu0 0.0
        %1715 = vmatpush1.msra.mxu0 0.0
        %1716 = vmatprep.subr.mxu0 0.0
        %1717 = vmatpush1.msra.mxu0 0.0
        %1718 = vmatprep.subr.mxu0 0.0
        %1719 = vmatpush1.msra.mxu0 0.0
        %1720 = vmatprep.subr.mxu0 0.0
        %1721 = vmatpush1.msra.mxu0 0.0
        %1722 = vmatprep.subr.mxu0 0.0
        %1723 = vmatpush1.msra.mxu0 0.0
        %1724 = vmatprep.subr.mxu0 0.0
        %1725 = vmatpush1.msra.mxu0 0.0
        %1726 = vmatprep.subr.mxu0 0.0
        %1727 = vmatpush1.msra.mxu0 0.0
        %1728 = vmatprep.subr.mxu0 0.0
        %1729 = vmatpush1.msra.mxu0 0.0
        %1730 = vmatprep.subr.mxu0 0.0
        %1731 = vmatpush1.msra.mxu0 0.0
        %1732 = vmatprep.subr.mxu0 0.0
        %1733 = vmatpush1.msra.mxu0 0.0
        %1734 = vmatprep.subr.mxu0 0.0
        %1735 = vmatpush1.msra.mxu0 0.0
        %1736 = vmatprep.subr.mxu0 0.0
        %1737 = vmatpush1.msra.mxu0 0.0
        %1738 = vmatprep.subr.mxu0 0.0
        %1739 = vmatpush1.msra.mxu0 0.0
        %1740 = vmatprep.subr.mxu0 0.0
        %1741 = vmatpush1.msra.mxu0 0.0
        %1742 = vmatprep.subr.mxu0 0.0
        %1743 = vmatpush1.msra.mxu0 0.0
        %1744 = vmatprep.subr.mxu0 0.0
        %1745 = vmatpush1.msra.mxu0 0.0
        %1746 = vmatprep.subr.mxu0 0.0
        %1747 = vmatpush1.msra.mxu0 0.0
        %1748 = vmatprep.subr.mxu0 0.0
        %1749 = vmatpush1.msra.mxu0 0.0
        %1750 = vmatprep.subr.mxu0 0.0
        %1751 = vmatpush1.msra.mxu0 0.0
        %1752 = vmatprep.subr.mxu0 0.0
        %1753 = vmatpush1.msra.mxu0 0.0
        %1754 = vmatprep.mubr.f32.mxu0 0.0
        %v1755 = vand.u32 %v1301, 4294901760
        %1756 = vmatmul.mubr.f32.gmra.mrb[0].mxu0 %v1755
        %v1757 = vpop.f32.mrb[0].mxu0
        %v1758 = vadd.f32 %v1663, %v1757
        %v1759 = vpop.f32.mrb[0].mxu0
        %1760 = vdwg.mxu0
        %1761 = vmatprep.subr.mxu0 0.0
        %v1762 = vand.u32 %v1291, 4294901760
        %1763 = vmatpush1.msra.mxu0 %v1762
        %1764 = vmatprep.subr.mxu0 0.0
        %v1765 = vand.u32 %v1292, 4294901760
        %1766 = vmatpush1.msra.mxu0 %v1765
        %1767 = vmatprep.subr.mxu0 0.0
        %v1768 = vand.u32 %v1293, 4294901760
        %1769 = vmatpush1.msra.mxu0 %v1768
        %1770 = vmatprep.subr.mxu0 0.0
        %v1771 = vand.u32 %v1294, 4294901760
        %1772 = vmatpush1.msra.mxu0 %v1771
        %1773 = vmatprep.subr.mxu0 0.0
        %v1774 = vand.u32 %v1295, 4294901760
        %1775 = vmatpush1.msra.mxu0 %v1774
        %1776 = vmatprep.subr.mxu0 0.0
        %v1777 = vand.u32 %v1296, 4294901760
        %1778 = vmatpush1.msra.mxu0 %v1777
        %1779 = vmatprep.subr.mxu0 0.0
        %v1780 = vand.u32 %v1297, 4294901760
        %1781 = vmatpush1.msra.mxu0 %v1780
        %1782 = vmatprep.subr.mxu0 0.0
        %v1783 = vand.u32 %v1298, 4294901760
        %1784 = vmatpush1.msra.mxu0 %v1783
        %1785 = vmatprep.subr.mxu0 0.0
        %1786 = vmatpush1.msra.mxu0 0.0
        %1787 = vmatprep.subr.mxu0 0.0
        %1788 = vmatpush1.msra.mxu0 0.0
        %1789 = vmatprep.subr.mxu0 0.0
        %1790 = vmatpush1.msra.mxu0 0.0
        %1791 = vmatprep.subr.mxu0 0.0
        %1792 = vmatpush1.msra.mxu0 0.0
        %1793 = vmatprep.subr.mxu0 0.0
        %1794 = vmatpush1.msra.mxu0 0.0
        %1795 = vmatprep.subr.mxu0 0.0
        %1796 = vmatpush1.msra.mxu0 0.0
        %1797 = vmatprep.subr.mxu0 0.0
        %1798 = vmatpush1.msra.mxu0 0.0
        %1799 = vmatprep.subr.mxu0 0.0
        %1800 = vmatpush1.msra.mxu0 0.0
        %1801 = vmatprep.subr.mxu0 0.0
        %1802 = vmatpush1.msra.mxu0 0.0
        %1803 = vmatprep.subr.mxu0 0.0
        %1804 = vmatpush1.msra.mxu0 0.0
        %1805 = vmatprep.subr.mxu0 0.0
        %1806 = vmatpush1.msra.mxu0 0.0
        %1807 = vmatprep.subr.mxu0 0.0
        %1808 = vmatpush1.msra.mxu0 0.0
        %1809 = vmatprep.subr.mxu0 0.0
        %1810 = vmatpush1.msra.mxu0 0.0
        %1811 = vmatprep.subr.mxu0 0.0
        %1812 = vmatpush1.msra.mxu0 0.0
        %1813 = vmatprep.subr.mxu0 0.0
        %1814 = vmatpush1.msra.mxu0 0.0
        %1815 = vmatprep.subr.mxu0 0.0
        %1816 = vmatpush1.msra.mxu0 0.0
        %1817 = vmatprep.subr.mxu0 0.0
        %1818 = vmatpush1.msra.mxu0 0.0
        %1819 = vmatprep.subr.mxu0 0.0
        %1820 = vmatpush1.msra.mxu0 0.0
        %1821 = vmatprep.subr.mxu0 0.0
        %1822 = vmatpush1.msra.mxu0 0.0
        %1823 = vmatprep.subr.mxu0 0.0
        %1824 = vmatpush1.msra.mxu0 0.0
        %1825 = vmatprep.subr.mxu0 0.0
        %1826 = vmatpush1.msra.mxu0 0.0
        %1827 = vmatprep.subr.mxu0 0.0
        %1828 = vmatpush1.msra.mxu0 0.0
        %1829 = vmatprep.subr.mxu0 0.0
        %1830 = vmatpush1.msra.mxu0 0.0
        %1831 = vmatprep.subr.mxu0 0.0
        %1832 = vmatpush1.msra.mxu0 0.0
        %1833 = vmatprep.mubr.f32.mxu0 0.0
        %v1834 = vand.u32 %v1301, 4294901760
        %1835 = vmatmul.mubr.f32.gmra.mrb[0].mxu0 %v1834
        %v1836 = vpop.f32.mrb[0].mxu0
        %v1837 = vadd.f32 %v1758, %v1836
        %v1838 = vpop.f32.mrb[0].mxu0
        %1839 = vdwg.mxu0
        %1840 = vst.msk [vmem:[%s768] sm:$0xff] %vm802, %v1837
        %v1841 = vld [vmem:[#allocation8] sm:$0xff]
        %v1842 = vld [vmem:[#allocation8 + $0x8] sm:$0xff]
        %v1843 = vld [vmem:[#allocation8 + $0x10] sm:$0xff]
        %v1844 = vld [vmem:[#allocation8 + $0x18] sm:$0xff]
        %v1845 = vld [vmem:[#allocation8 + $0x20] sm:$0xff]
        %v1846 = vld [vmem:[#allocation8 + $0x28] sm:$0xff]
        %v1847 = vld [vmem:[#allocation8 + $0x30] sm:$0xff]
        %v1848 = vld [vmem:[#allocation8 + $0x38] sm:$0xff]
        %1849 = vmatprep.subr.mxu0 0.0
        %v1850 = vand.u32 %v1841, 4294901760
        %1851 = vmatpush1.msra.mxu0 %v1850
        %1852 = vmatprep.subr.mxu0 0.0
        %v1853 = vand.u32 %v1842, 4294901760
        %1854 = vmatpush1.msra.mxu0 %v1853
        %1855 = vmatprep.subr.mxu0 0.0
        %v1856 = vand.u32 %v1843, 4294901760
        %1857 = vmatpush1.msra.mxu0 %v1856
        %1858 = vmatprep.subr.mxu0 0.0
        %v1859 = vand.u32 %v1844, 4294901760
        %1860 = vmatpush1.msra.mxu0 %v1859
        %1861 = vmatprep.subr.mxu0 0.0
        %v1862 = vand.u32 %v1845, 4294901760
        %1863 = vmatpush1.msra.mxu0 %v1862
        %1864 = vmatprep.subr.mxu0 0.0
        %v1865 = vand.u32 %v1846, 4294901760
        %1866 = vmatpush1.msra.mxu0 %v1865
        %1867 = vmatprep.subr.mxu0 0.0
        %v1868 = vand.u32 %v1847, 4294901760
        %1869 = vmatpush1.msra.mxu0 %v1868
        %1870 = vmatprep.subr.mxu0 0.0
        %v1871 = vand.u32 %v1848, 4294901760
        %1872 = vmatpush1.msra.mxu0 %v1871
        %1873 = vmatprep.subr.mxu0 0.0
        %1874 = vmatpush1.msra.mxu0 0.0
        %1875 = vmatprep.subr.mxu0 0.0
        %1876 = vmatpush1.msra.mxu0 0.0
        %1877 = vmatprep.subr.mxu0 0.0
        %1878 = vmatpush1.msra.mxu0 0.0
        %1879 = vmatprep.subr.mxu0 0.0
        %1880 = vmatpush1.msra.mxu0 0.0
        %1881 = vmatprep.subr.mxu0 0.0
        %1882 = vmatpush1.msra.mxu0 0.0
        %1883 = vmatprep.subr.mxu0 0.0
        %1884 = vmatpush1.msra.mxu0 0.0
        %1885 = vmatprep.subr.mxu0 0.0
        %1886 = vmatpush1.msra.mxu0 0.0
        %1887 = vmatprep.subr.mxu0 0.0
        %1888 = vmatpush1.msra.mxu0 0.0
        %1889 = vmatprep.subr.mxu0 0.0
        %1890 = vmatpush1.msra.mxu0 0.0
        %1891 = vmatprep.subr.mxu0 0.0
        %1892 = vmatpush1.msra.mxu0 0.0
        %1893 = vmatprep.subr.mxu0 0.0
        %1894 = vmatpush1.msra.mxu0 0.0
        %1895 = vmatprep.subr.mxu0 0.0
        %1896 = vmatpush1.msra.mxu0 0.0
        %1897 = vmatprep.subr.mxu0 0.0
        %1898 = vmatpush1.msra.mxu0 0.0
        %1899 = vmatprep.subr.mxu0 0.0
        %1900 = vmatpush1.msra.mxu0 0.0
        %1901 = vmatprep.subr.mxu0 0.0
        %1902 = vmatpush1.msra.mxu0 0.0
        %1903 = vmatprep.subr.mxu0 0.0
        %1904 = vmatpush1.msra.mxu0 0.0
        %1905 = vmatprep.subr.mxu0 0.0
        %1906 = vmatpush1.msra.mxu0 0.0
        %1907 = vmatprep.subr.mxu0 0.0
        %1908 = vmatpush1.msra.mxu0 0.0
        %1909 = vmatprep.subr.mxu0 0.0
        %1910 = vmatpush1.msra.mxu0 0.0
        %1911 = vmatprep.subr.mxu0 0.0
        %1912 = vmatpush1.msra.mxu0 0.0
        %1913 = vmatprep.subr.mxu0 0.0
        %1914 = vmatpush1.msra.mxu0 0.0
        %1915 = vmatprep.subr.mxu0 0.0
        %1916 = vmatpush1.msra.mxu0 0.0
        %1917 = vmatprep.subr.mxu0 0.0
        %1918 = vmatpush1.msra.mxu0 0.0
        %1919 = vmatprep.subr.mxu0 0.0
        %1920 = vmatpush1.msra.mxu0 0.0
        %1921 = vmatprep.mubr.f32.mxu0 0.0
        %v1922 = vand.u32 %v1301, 4294901760
        %v1923 = vsub.f32 %v1301, %v1922
        %v1924 = vand.u32 %v1923, 4294901760
        %v1925 = vsub.f32 %v1923, %v1924
        %v1926 = vand.u32 %v1925, 4294901760
        %1927 = vmatmul.mubr.f32.gmra.mrb[0].mxu0 %v1926
        %v1928 = vpop.f32.mrb[0].mxu0
        %v1929 = vadd.f32 0.0, %v1928
        %v1930 = vpop.f32.mrb[0].mxu0
        %1931 = vdwg.mxu0
        %1932 = vmatprep.subr.mxu0 0.0
        %v1933 = vand.u32 %v1841, 4294901760
        %v1934 = vsub.f32 %v1841, %v1933
        %v1935 = vand.u32 %v1934, 4294901760
        %v1936 = vsub.f32 %v1934, %v1935
        %v1937 = vand.u32 %v1936, 4294901760
        %1938 = vmatpush1.msra.mxu0 %v1937
        %1939 = vmatprep.subr.mxu0 0.0
        %v1940 = vand.u32 %v1842, 4294901760
        %v1941 = vsub.f32 %v1842, %v1940
        %v1942 = vand.u32 %v1941, 4294901760
        %v1943 = vsub.f32 %v1941, %v1942
        %v1944 = vand.u32 %v1943, 4294901760
        %1945 = vmatpush1.msra.mxu0 %v1944
        %1946 = vmatprep.subr.mxu0 0.0
        %v1947 = vand.u32 %v1843, 4294901760
        %v1948 = vsub.f32 %v1843, %v1947
        %v1949 = vand.u32 %v1948, 4294901760
        %v1950 = vsub.f32 %v1948, %v1949
        %v1951 = vand.u32 %v1950, 4294901760
        %1952 = vmatpush1.msra.mxu0 %v1951
        %1953 = vmatprep.subr.mxu0 0.0
        %v1954 = vand.u32 %v1844, 4294901760
        %v1955 = vsub.f32 %v1844, %v1954
        %v1956 = vand.u32 %v1955, 4294901760
        %v1957 = vsub.f32 %v1955, %v1956
        %v1958 = vand.u32 %v1957, 4294901760
        %1959 = vmatpush1.msra.mxu0 %v1958
        %1960 = vmatprep.subr.mxu0 0.0
        %v1961 = vand.u32 %v1845, 4294901760
        %v1962 = vsub.f32 %v1845, %v1961
        %v1963 = vand.u32 %v1962, 4294901760
        %v1964 = vsub.f32 %v1962, %v1963
        %v1965 = vand.u32 %v1964, 4294901760
        %1966 = vmatpush1.msra.mxu0 %v1965
        %1967 = vmatprep.subr.mxu0 0.0
        %v1968 = vand.u32 %v1846, 4294901760
        %v1969 = vsub.f32 %v1846, %v1968
        %v1970 = vand.u32 %v1969, 4294901760
        %v1971 = vsub.f32 %v1969, %v1970
        %v1972 = vand.u32 %v1971, 4294901760
        %1973 = vmatpush1.msra.mxu0 %v1972
        %1974 = vmatprep.subr.mxu0 0.0
        %v1975 = vand.u32 %v1847, 4294901760
        %v1976 = vsub.f32 %v1847, %v1975
        %v1977 = vand.u32 %v1976, 4294901760
        %v1978 = vsub.f32 %v1976, %v1977
        %v1979 = vand.u32 %v1978, 4294901760
        %1980 = vmatpush1.msra.mxu0 %v1979
        %1981 = vmatprep.subr.mxu0 0.0
        %v1982 = vand.u32 %v1848, 4294901760
        %v1983 = vsub.f32 %v1848, %v1982
        %v1984 = vand.u32 %v1983, 4294901760
        %v1985 = vsub.f32 %v1983, %v1984
        %v1986 = vand.u32 %v1985, 4294901760
        %1987 = vmatpush1.msra.mxu0 %v1986
        %1988 = vmatprep.subr.mxu0 0.0
        %1989 = vmatpush1.msra.mxu0 0.0
        %1990 = vmatprep.subr.mxu0 0.0
        %1991 = vmatpush1.msra.mxu0 0.0
        %1992 = vmatprep.subr.mxu0 0.0
        %1993 = vmatpush1.msra.mxu0 0.0
        %1994 = vmatprep.subr.mxu0 0.0
        %1995 = vmatpush1.msra.mxu0 0.0
        %1996 = vmatprep.subr.mxu0 0.0
        %1997 = vmatpush1.msra.mxu0 0.0
        %1998 = vmatprep.subr.mxu0 0.0
        %1999 = vmatpush1.msra.mxu0 0.0
        %2000 = vmatprep.subr.mxu0 0.0
        %2001 = vmatpush1.msra.mxu0 0.0
        %2002 = vmatprep.subr.mxu0 0.0
        %2003 = vmatpush1.msra.mxu0 0.0
        %2004 = vmatprep.subr.mxu0 0.0
        %2005 = vmatpush1.msra.mxu0 0.0
        %2006 = vmatprep.subr.mxu0 0.0
        %2007 = vmatpush1.msra.mxu0 0.0
        %2008 = vmatprep.subr.mxu0 0.0
        %2009 = vmatpush1.msra.mxu0 0.0
        %2010 = vmatprep.subr.mxu0 0.0
        %2011 = vmatpush1.msra.mxu0 0.0
        %2012 = vmatprep.subr.mxu0 0.0
        %2013 = vmatpush1.msra.mxu0 0.0
        %2014 = vmatprep.subr.mxu0 0.0
        %2015 = vmatpush1.msra.mxu0 0.0
        %2016 = vmatprep.subr.mxu0 0.0
        %2017 = vmatpush1.msra.mxu0 0.0
        %2018 = vmatprep.subr.mxu0 0.0
        %2019 = vmatpush1.msra.mxu0 0.0
        %2020 = vmatprep.subr.mxu0 0.0
        %2021 = vmatpush1.msra.mxu0 0.0
        %2022 = vmatprep.subr.mxu0 0.0
        %2023 = vmatpush1.msra.mxu0 0.0
        %2024 = vmatprep.subr.mxu0 0.0
        %2025 = vmatpush1.msra.mxu0 0.0
        %2026 = vmatprep.subr.mxu0 0.0
        %2027 = vmatpush1.msra.mxu0 0.0
        %2028 = vmatprep.subr.mxu0 0.0
        %2029 = vmatpush1.msra.mxu0 0.0
        %2030 = vmatprep.subr.mxu0 0.0
        %2031 = vmatpush1.msra.mxu0 0.0
        %2032 = vmatprep.subr.mxu0 0.0
        %2033 = vmatpush1.msra.mxu0 0.0
        %2034 = vmatprep.subr.mxu0 0.0
        %2035 = vmatpush1.msra.mxu0 0.0
        %2036 = vmatprep.mubr.f32.mxu0 0.0
        %v2037 = vand.u32 %v1301, 4294901760
        %2038 = vmatmul.mubr.f32.gmra.mrb[0].mxu0 %v2037
        %v2039 = vpop.f32.mrb[0].mxu0
        %v2040 = vadd.f32 %v1929, %v2039
        %v2041 = vpop.f32.mrb[0].mxu0
        %2042 = vdwg.mxu0
        %2043 = vmatprep.subr.mxu0 0.0
        %v2044 = vand.u32 %v1841, 4294901760
        %v2045 = vsub.f32 %v1841, %v2044
        %2046 = vmatpush1.msra.mxu0 %v2045
        %2047 = vmatprep.subr.mxu0 0.0
        %v2048 = vand.u32 %v1842, 4294901760
        %v2049 = vsub.f32 %v1842, %v2048
        %2050 = vmatpush1.msra.mxu0 %v2049
        %2051 = vmatprep.subr.mxu0 0.0
        %v2052 = vand.u32 %v1843, 4294901760
        %v2053 = vsub.f32 %v1843, %v2052
        %2054 = vmatpush1.msra.mxu0 %v2053
        %2055 = vmatprep.subr.mxu0 0.0
        %v2056 = vand.u32 %v1844, 4294901760
        %v2057 = vsub.f32 %v1844, %v2056
        %2058 = vmatpush1.msra.mxu0 %v2057
        %2059 = vmatprep.subr.mxu0 0.0
        %v2060 = vand.u32 %v1845, 4294901760
        %v2061 = vsub.f32 %v1845, %v2060
        %2062 = vmatpush1.msra.mxu0 %v2061
        %2063 = vmatprep.subr.mxu0 0.0
        %v2064 = vand.u32 %v1846, 4294901760
        %v2065 = vsub.f32 %v1846, %v2064
        %2066 = vmatpush1.msra.mxu0 %v2065
        %2067 = vmatprep.subr.mxu0 0.0
        %v2068 = vand.u32 %v1847, 4294901760
        %v2069 = vsub.f32 %v1847, %v2068
        %2070 = vmatpush1.msra.mxu0 %v2069
        %2071 = vmatprep.subr.mxu0 0.0
        %v2072 = vand.u32 %v1848, 4294901760
        %v2073 = vsub.f32 %v1848, %v2072
        %2074 = vmatpush1.msra.mxu0 %v2073
        %2075 = vmatprep.subr.mxu0 0.0
        %2076 = vmatpush1.msra.mxu0 0.0
        %2077 = vmatprep.subr.mxu0 0.0
        %2078 = vmatpush1.msra.mxu0 0.0
        %2079 = vmatprep.subr.mxu0 0.0
        %2080 = vmatpush1.msra.mxu0 0.0
        %2081 = vmatprep.subr.mxu0 0.0
        %2082 = vmatpush1.msra.mxu0 0.0
        %2083 = vmatprep.subr.mxu0 0.0
        %2084 = vmatpush1.msra.mxu0 0.0
        %2085 = vmatprep.subr.mxu0 0.0
        %2086 = vmatpush1.msra.mxu0 0.0
        %2087 = vmatprep.subr.mxu0 0.0
        %2088 = vmatpush1.msra.mxu0 0.0
        %2089 = vmatprep.subr.mxu0 0.0
        %2090 = vmatpush1.msra.mxu0 0.0
        %2091 = vmatprep.subr.mxu0 0.0
        %2092 = vmatpush1.msra.mxu0 0.0
        %2093 = vmatprep.subr.mxu0 0.0
        %2094 = vmatpush1.msra.mxu0 0.0
        %2095 = vmatprep.subr.mxu0 0.0
        %2096 = vmatpush1.msra.mxu0 0.0
        %2097 = vmatprep.subr.mxu0 0.0
        %2098 = vmatpush1.msra.mxu0 0.0
        %2099 = vmatprep.subr.mxu0 0.0
        %2100 = vmatpush1.msra.mxu0 0.0
        %2101 = vmatprep.subr.mxu0 0.0
        %2102 = vmatpush1.msra.mxu0 0.0
        %2103 = vmatprep.subr.mxu0 0.0
        %2104 = vmatpush1.msra.mxu0 0.0
        %2105 = vmatprep.subr.mxu0 0.0
        %2106 = vmatpush1.msra.mxu0 0.0
        %2107 = vmatprep.subr.mxu0 0.0
        %2108 = vmatpush1.msra.mxu0 0.0
        %2109 = vmatprep.subr.mxu0 0.0
        %2110 = vmatpush1.msra.mxu0 0.0
        %2111 = vmatprep.subr.mxu0 0.0
        %2112 = vmatpush1.msra.mxu0 0.0
        %2113 = vmatprep.subr.mxu0 0.0
        %2114 = vmatpush1.msra.mxu0 0.0
        %2115 = vmatprep.subr.mxu0 0.0
        %2116 = vmatpush1.msra.mxu0 0.0
        %2117 = vmatprep.subr.mxu0 0.0
        %2118 = vmatpush1.msra.mxu0 0.0
        %2119 = vmatprep.subr.mxu0 0.0
        %2120 = vmatpush1.msra.mxu0 0.0
        %2121 = vmatprep.subr.mxu0 0.0
        %2122 = vmatpush1.msra.mxu0 0.0
        %2123 = vmatprep.mubr.f32.mxu0 0.0
        %v2124 = vand.u32 %v1301, 4294901760
        %v2125 = vsub.f32 %v1301, %v2124
        %2126 = vmatmul.mubr.f32.gmra.mrb[0].mxu0 %v2125
        %v2127 = vpop.f32.mrb[0].mxu0
        %v2128 = vadd.f32 %v2040, %v2127
        %v2129 = vpop.f32.mrb[0].mxu0
        %2130 = vdwg.mxu0
        %2131 = vmatprep.subr.mxu0 0.0
        %v2132 = vand.u32 %v1841, 4294901760
        %2133 = vmatpush1.msra.mxu0 %v2132
        %2134 = vmatprep.subr.mxu0 0.0
        %v2135 = vand.u32 %v1842, 4294901760
        %2136 = vmatpush1.msra.mxu0 %v2135
        %2137 = vmatprep.subr.mxu0 0.0
        %v2138 = vand.u32 %v1843, 4294901760
        %2139 = vmatpush1.msra.mxu0 %v2138
        %2140 = vmatprep.subr.mxu0 0.0
        %v2141 = vand.u32 %v1844, 4294901760
        %2142 = vmatpush1.msra.mxu0 %v2141
        %2143 = vmatprep.subr.mxu0 0.0
        %v2144 = vand.u32 %v1845, 4294901760
        %2145 = vmatpush1.msra.mxu0 %v2144
        %2146 = vmatprep.subr.mxu0 0.0
        %v2147 = vand.u32 %v1846, 4294901760
        %2148 = vmatpush1.msra.mxu0 %v2147
        %2149 = vmatprep.subr.mxu0 0.0
        %v2150 = vand.u32 %v1847, 4294901760
        %2151 = vmatpush1.msra.mxu0 %v2150
        %2152 = vmatprep.subr.mxu0 0.0
        %v2153 = vand.u32 %v1848, 4294901760
        %2154 = vmatpush1.msra.mxu0 %v2153
        %2155 = vmatprep.subr.mxu0 0.0
        %2156 = vmatpush1.msra.mxu0 0.0
        %2157 = vmatprep.subr.mxu0 0.0
        %2158 = vmatpush1.msra.mxu0 0.0
        %2159 = vmatprep.subr.mxu0 0.0
        %2160 = vmatpush1.msra.mxu0 0.0
        %2161 = vmatprep.subr.mxu0 0.0
        %2162 = vmatpush1.msra.mxu0 0.0
        %2163 = vmatprep.subr.mxu0 0.0
        %2164 = vmatpush1.msra.mxu0 0.0
        %2165 = vmatprep.subr.mxu0 0.0
        %2166 = vmatpush1.msra.mxu0 0.0
        %2167 = vmatprep.subr.mxu0 0.0
        %2168 = vmatpush1.msra.mxu0 0.0
        %2169 = vmatprep.subr.mxu0 0.0
        %2170 = vmatpush1.msra.mxu0 0.0
        %2171 = vmatprep.subr.mxu0 0.0
        %2172 = vmatpush1.msra.mxu0 0.0
        %2173 = vmatprep.subr.mxu0 0.0
        %2174 = vmatpush1.msra.mxu0 0.0
        %2175 = vmatprep.subr.mxu0 0.0
        %2176 = vmatpush1.msra.mxu0 0.0
        %2177 = vmatprep.subr.mxu0 0.0
        %2178 = vmatpush1.msra.mxu0 0.0
        %2179 = vmatprep.subr.mxu0 0.0
        %2180 = vmatpush1.msra.mxu0 0.0
        %2181 = vmatprep.subr.mxu0 0.0
        %2182 = vmatpush1.msra.mxu0 0.0
        %2183 = vmatprep.subr.mxu0 0.0
        %2184 = vmatpush1.msra.mxu0 0.0
        %2185 = vmatprep.subr.mxu0 0.0
        %2186 = vmatpush1.msra.mxu0 0.0
        %2187 = vmatprep.subr.mxu0 0.0
        %2188 = vmatpush1.msra.mxu0 0.0
        %2189 = vmatprep.subr.mxu0 0.0
        %2190 = vmatpush1.msra.mxu0 0.0
        %2191 = vmatprep.subr.mxu0 0.0
        %2192 = vmatpush1.msra.mxu0 0.0
        %2193 = vmatprep.subr.mxu0 0.0
        %2194 = vmatpush1.msra.mxu0 0.0
        %2195 = vmatprep.subr.mxu0 0.0
        %2196 = vmatpush1.msra.mxu0 0.0
        %2197 = vmatprep.subr.mxu0 0.0
        %2198 = vmatpush1.msra.mxu0 0.0
        %2199 = vmatprep.subr.mxu0 0.0
        %2200 = vmatpush1.msra.mxu0 0.0
        %2201 = vmatprep.subr.mxu0 0.0
        %2202 = vmatpush1.msra.mxu0 0.0
        %2203 = vmatprep.mubr.f32.mxu0 0.0
        %v2204 = vand.u32 %v1301, 4294901760
        %v2205 = vsub.f32 %v1301, %v2204
        %v2206 = vand.u32 %v2205, 4294901760
        %2207 = vmatmul.mubr.f32.gmra.mrb[0].mxu0 %v2206
        %v2208 = vpop.f32.mrb[0].mxu0
        %v2209 = vadd.f32 %v2128, %v2208
        %v2210 = vpop.f32.mrb[0].mxu0
        %2211 = vdwg.mxu0
        %2212 = vmatprep.subr.mxu0 0.0
        %v2213 = vand.u32 %v1841, 4294901760
        %v2214 = vsub.f32 %v1841, %v2213
        %v2215 = vand.u32 %v2214, 4294901760
        %2216 = vmatpush1.msra.mxu0 %v2215
        %2217 = vmatprep.subr.mxu0 0.0
        %v2218 = vand.u32 %v1842, 4294901760
        %v2219 = vsub.f32 %v1842, %v2218
        %v2220 = vand.u32 %v2219, 4294901760
        %2221 = vmatpush1.msra.mxu0 %v2220
        %2222 = vmatprep.subr.mxu0 0.0
        %v2223 = vand.u32 %v1843, 4294901760
        %v2224 = vsub.f32 %v1843, %v2223
        %v2225 = vand.u32 %v2224, 4294901760
        %2226 = vmatpush1.msra.mxu0 %v2225
        %2227 = vmatprep.subr.mxu0 0.0
        %v2228 = vand.u32 %v1844, 4294901760
        %v2229 = vsub.f32 %v1844, %v2228
        %v2230 = vand.u32 %v2229, 4294901760
        %2231 = vmatpush1.msra.mxu0 %v2230
        %2232 = vmatprep.subr.mxu0 0.0
        %v2233 = vand.u32 %v1845, 4294901760
        %v2234 = vsub.f32 %v1845, %v2233
        %v2235 = vand.u32 %v2234, 4294901760
        %2236 = vmatpush1.msra.mxu0 %v2235
        %2237 = vmatprep.subr.mxu0 0.0
        %v2238 = vand.u32 %v1846, 4294901760
        %v2239 = vsub.f32 %v1846, %v2238
        %v2240 = vand.u32 %v2239, 4294901760
        %2241 = vmatpush1.msra.mxu0 %v2240
        %2242 = vmatprep.subr.mxu0 0.0
        %v2243 = vand.u32 %v1847, 4294901760
        %v2244 = vsub.f32 %v1847, %v2243
        %v2245 = vand.u32 %v2244, 4294901760
        %2246 = vmatpush1.msra.mxu0 %v2245
        %2247 = vmatprep.subr.mxu0 0.0
        %v2248 = vand.u32 %v1848, 4294901760
        %v2249 = vsub.f32 %v1848, %v2248
        %v2250 = vand.u32 %v2249, 4294901760
        %2251 = vmatpush1.msra.mxu0 %v2250
        %2252 = vmatprep.subr.mxu0 0.0
        %2253 = vmatpush1.msra.mxu0 0.0
        %2254 = vmatprep.subr.mxu0 0.0
        %2255 = vmatpush1.msra.mxu0 0.0
        %2256 = vmatprep.subr.mxu0 0.0
        %2257 = vmatpush1.msra.mxu0 0.0
        %2258 = vmatprep.subr.mxu0 0.0
        %2259 = vmatpush1.msra.mxu0 0.0
        %2260 = vmatprep.subr.mxu0 0.0
        %2261 = vmatpush1.msra.mxu0 0.0
        %2262 = vmatprep.subr.mxu0 0.0
        %2263 = vmatpush1.msra.mxu0 0.0
        %2264 = vmatprep.subr.mxu0 0.0
        %2265 = vmatpush1.msra.mxu0 0.0
        %2266 = vmatprep.subr.mxu0 0.0
        %2267 = vmatpush1.msra.mxu0 0.0
        %2268 = vmatprep.subr.mxu0 0.0
        %2269 = vmatpush1.msra.mxu0 0.0
        %2270 = vmatprep.subr.mxu0 0.0
        %2271 = vmatpush1.msra.mxu0 0.0
        %2272 = vmatprep.subr.mxu0 0.0
        %2273 = vmatpush1.msra.mxu0 0.0
        %2274 = vmatprep.subr.mxu0 0.0
        %2275 = vmatpush1.msra.mxu0 0.0
        %2276 = vmatprep.subr.mxu0 0.0
        %2277 = vmatpush1.msra.mxu0 0.0
        %2278 = vmatprep.subr.mxu0 0.0
        %2279 = vmatpush1.msra.mxu0 0.0
        %2280 = vmatprep.subr.mxu0 0.0
        %2281 = vmatpush1.msra.mxu0 0.0
        %2282 = vmatprep.subr.mxu0 0.0
        %2283 = vmatpush1.msra.mxu0 0.0
        %2284 = vmatprep.subr.mxu0 0.0
        %2285 = vmatpush1.msra.mxu0 0.0
        %2286 = vmatprep.subr.mxu0 0.0
        %2287 = vmatpush1.msra.mxu0 0.0
        %2288 = vmatprep.subr.mxu0 0.0
        %2289 = vmatpush1.msra.mxu0 0.0
        %2290 = vmatprep.subr.mxu0 0.0
        %2291 = vmatpush1.msra.mxu0 0.0
        %2292 = vmatprep.subr.mxu0 0.0
        %2293 = vmatpush1.msra.mxu0 0.0
        %2294 = vmatprep.subr.mxu0 0.0
        %2295 = vmatpush1.msra.mxu0 0.0
        %2296 = vmatprep.subr.mxu0 0.0
        %2297 = vmatpush1.msra.mxu0 0.0
        %2298 = vmatprep.subr.mxu0 0.0
        %2299 = vmatpush1.msra.mxu0 0.0
        %2300 = vmatprep.mubr.f32.mxu0 0.0
        %v2301 = vand.u32 %v1301, 4294901760
        %2302 = vmatmul.mubr.f32.gmra.mrb[0].mxu0 %v2301
        %v2303 = vpop.f32.mrb[0].mxu0
        %v2304 = vadd.f32 %v2209, %v2303
        %v2305 = vpop.f32.mrb[0].mxu0
        %2306 = vdwg.mxu0
        %2307 = vmatprep.subr.mxu0 0.0
        %v2308 = vand.u32 %v1841, 4294901760
        %2309 = vmatpush1.msra.mxu0 %v2308
        %2310 = vmatprep.subr.mxu0 0.0
        %v2311 = vand.u32 %v1842, 4294901760
        %2312 = vmatpush1.msra.mxu0 %v2311
        %2313 = vmatprep.subr.mxu0 0.0
        %v2314 = vand.u32 %v1843, 4294901760
        %2315 = vmatpush1.msra.mxu0 %v2314
        %2316 = vmatprep.subr.mxu0 0.0
        %v2317 = vand.u32 %v1844, 4294901760
        %2318 = vmatpush1.msra.mxu0 %v2317
        %2319 = vmatprep.subr.mxu0 0.0
        %v2320 = vand.u32 %v1845, 4294901760
        %2321 = vmatpush1.msra.mxu0 %v2320
        %2322 = vmatprep.subr.mxu0 0.0
        %v2323 = vand.u32 %v1846, 4294901760
        %2324 = vmatpush1.msra.mxu0 %v2323
        %2325 = vmatprep.subr.mxu0 0.0
        %v2326 = vand.u32 %v1847, 4294901760
        %2327 = vmatpush1.msra.mxu0 %v2326
        %2328 = vmatprep.subr.mxu0 0.0
        %v2329 = vand.u32 %v1848, 4294901760
        %2330 = vmatpush1.msra.mxu0 %v2329
        %2331 = vmatprep.subr.mxu0 0.0
        %2332 = vmatpush1.msra.mxu0 0.0
        %2333 = vmatprep.subr.mxu0 0.0
        %2334 = vmatpush1.msra.mxu0 0.0
        %2335 = vmatprep.subr.mxu0 0.0
        %2336 = vmatpush1.msra.mxu0 0.0
        %2337 = vmatprep.subr.mxu0 0.0
        %2338 = vmatpush1.msra.mxu0 0.0
        %2339 = vmatprep.subr.mxu0 0.0
        %2340 = vmatpush1.msra.mxu0 0.0
        %2341 = vmatprep.subr.mxu0 0.0
        %2342 = vmatpush1.msra.mxu0 0.0
        %2343 = vmatprep.subr.mxu0 0.0
        %2344 = vmatpush1.msra.mxu0 0.0
        %2345 = vmatprep.subr.mxu0 0.0
        %2346 = vmatpush1.msra.mxu0 0.0
        %2347 = vmatprep.subr.mxu0 0.0
        %2348 = vmatpush1.msra.mxu0 0.0
        %2349 = vmatprep.subr.mxu0 0.0
        %2350 = vmatpush1.msra.mxu0 0.0
        %2351 = vmatprep.subr.mxu0 0.0
        %2352 = vmatpush1.msra.mxu0 0.0
        %2353 = vmatprep.subr.mxu0 0.0
        %2354 = vmatpush1.msra.mxu0 0.0
        %2355 = vmatprep.subr.mxu0 0.0
        %2356 = vmatpush1.msra.mxu0 0.0
        %2357 = vmatprep.subr.mxu0 0.0
        %2358 = vmatpush1.msra.mxu0 0.0
        %2359 = vmatprep.subr.mxu0 0.0
        %2360 = vmatpush1.msra.mxu0 0.0
        %2361 = vmatprep.subr.mxu0 0.0
        %2362 = vmatpush1.msra.mxu0 0.0
        %2363 = vmatprep.subr.mxu0 0.0
        %2364 = vmatpush1.msra.mxu0 0.0
        %2365 = vmatprep.subr.mxu0 0.0
        %2366 = vmatpush1.msra.mxu0 0.0
        %2367 = vmatprep.subr.mxu0 0.0
        %2368 = vmatpush1.msra.mxu0 0.0
        %2369 = vmatprep.subr.mxu0 0.0
        %2370 = vmatpush1.msra.mxu0 0.0
        %2371 = vmatprep.subr.mxu0 0.0
        %2372 = vmatpush1.msra.mxu0 0.0
        %2373 = vmatprep.subr.mxu0 0.0
        %2374 = vmatpush1.msra.mxu0 0.0
        %2375 = vmatprep.subr.mxu0 0.0
        %2376 = vmatpush1.msra.mxu0 0.0
        %2377 = vmatprep.subr.mxu0 0.0
        %2378 = vmatpush1.msra.mxu0 0.0
        %2379 = vmatprep.mubr.f32.mxu0 0.0
        %v2380 = vand.u32 %v1301, 4294901760
        %2381 = vmatmul.mubr.f32.gmra.mrb[0].mxu0 %v2380
        %v2382 = vpop.f32.mrb[0].mxu0
        %v2383 = vadd.f32 %v2304, %v2382
        %v2384 = vpop.f32.mrb[0].mxu0
        %2385 = vdwg.mxu0
        %v2386 = vld [vmem:[#allocation10] sm:$0xff]
        %v2387 = vld [vmem:[#allocation10 + $0x8] sm:$0xff]
        %v2388 = vld [vmem:[#allocation10 + $0x10] sm:$0xff]
        %v2389 = vld [vmem:[#allocation10 + $0x18] sm:$0xff]
        %v2390 = vld [vmem:[#allocation10 + $0x20] sm:$0xff]
        %v2391 = vld [vmem:[#allocation10 + $0x28] sm:$0xff]
        %v2392 = vld [vmem:[#allocation10 + $0x30] sm:$0xff]
        %v2393 = vld [vmem:[#allocation10 + $0x38] sm:$0xff]
        %2394 = vmatprep.subr.mxu0 0.0
        %v2395 = vand.u32 %v2386, 4294901760
        %2396 = vmatpush1.msra.mxu0 %v2395
        %2397 = vmatprep.subr.mxu0 0.0
        %v2398 = vand.u32 %v2387, 4294901760
        %2399 = vmatpush1.msra.mxu0 %v2398
        %2400 = vmatprep.subr.mxu0 0.0
        %v2401 = vand.u32 %v2388, 4294901760
        %2402 = vmatpush1.msra.mxu0 %v2401
        %2403 = vmatprep.subr.mxu0 0.0
        %v2404 = vand.u32 %v2389, 4294901760
        %2405 = vmatpush1.msra.mxu0 %v2404
        %2406 = vmatprep.subr.mxu0 0.0
        %v2407 = vand.u32 %v2390, 4294901760
        %2408 = vmatpush1.msra.mxu0 %v2407
        %2409 = vmatprep.subr.mxu0 0.0
        %v2410 = vand.u32 %v2391, 4294901760
        %2411 = vmatpush1.msra.mxu0 %v2410
        %2412 = vmatprep.subr.mxu0 0.0
        %v2413 = vand.u32 %v2392, 4294901760
        %2414 = vmatpush1.msra.mxu0 %v2413
        %2415 = vmatprep.subr.mxu0 0.0
        %v2416 = vand.u32 %v2393, 4294901760
        %2417 = vmatpush1.msra.mxu0 %v2416
        %2418 = vmatprep.subr.mxu0 0.0
        %2419 = vmatpush1.msra.mxu0 0.0
        %2420 = vmatprep.subr.mxu0 0.0
        %2421 = vmatpush1.msra.mxu0 0.0
        %2422 = vmatprep.subr.mxu0 0.0
        %2423 = vmatpush1.msra.mxu0 0.0
        %2424 = vmatprep.subr.mxu0 0.0
        %2425 = vmatpush1.msra.mxu0 0.0
        %2426 = vmatprep.subr.mxu0 0.0
        %2427 = vmatpush1.msra.mxu0 0.0
        %2428 = vmatprep.subr.mxu0 0.0
        %2429 = vmatpush1.msra.mxu0 0.0
        %2430 = vmatprep.subr.mxu0 0.0
        %2431 = vmatpush1.msra.mxu0 0.0
        %2432 = vmatprep.subr.mxu0 0.0
        %2433 = vmatpush1.msra.mxu0 0.0
        %2434 = vmatprep.subr.mxu0 0.0
        %2435 = vmatpush1.msra.mxu0 0.0
        %2436 = vmatprep.subr.mxu0 0.0
        %2437 = vmatpush1.msra.mxu0 0.0
        %2438 = vmatprep.subr.mxu0 0.0
        %2439 = vmatpush1.msra.mxu0 0.0
        %2440 = vmatprep.subr.mxu0 0.0
        %2441 = vmatpush1.msra.mxu0 0.0
        %2442 = vmatprep.subr.mxu0 0.0
        %2443 = vmatpush1.msra.mxu0 0.0
        %2444 = vmatprep.subr.mxu0 0.0
        %2445 = vmatpush1.msra.mxu0 0.0
        %2446 = vmatprep.subr.mxu0 0.0
        %2447 = vmatpush1.msra.mxu0 0.0
        %2448 = vmatprep.subr.mxu0 0.0
        %2449 = vmatpush1.msra.mxu0 0.0
        %2450 = vmatprep.subr.mxu0 0.0
        %2451 = vmatpush1.msra.mxu0 0.0
        %2452 = vmatprep.subr.mxu0 0.0
        %2453 = vmatpush1.msra.mxu0 0.0
        %2454 = vmatprep.subr.mxu0 0.0
        %2455 = vmatpush1.msra.mxu0 0.0
        %2456 = vmatprep.subr.mxu0 0.0
        %2457 = vmatpush1.msra.mxu0 0.0
        %2458 = vmatprep.subr.mxu0 0.0
        %2459 = vmatpush1.msra.mxu0 0.0
        %2460 = vmatprep.subr.mxu0 0.0
        %2461 = vmatpush1.msra.mxu0 0.0
        %2462 = vmatprep.subr.mxu0 0.0
        %2463 = vmatpush1.msra.mxu0 0.0
        %2464 = vmatprep.subr.mxu0 0.0
        %2465 = vmatpush1.msra.mxu0 0.0
        %2466 = vmatprep.mubr.f32.mxu0 0.0
        %v2467 = vand.u32 %v1301, 4294901760
        %v2468 = vsub.f32 %v1301, %v2467
        %v2469 = vand.u32 %v2468, 4294901760
        %v2470 = vsub.f32 %v2468, %v2469
        %v2471 = vand.u32 %v2470, 4294901760
        %2472 = vmatmul.mubr.f32.gmra.mrb[0].mxu0 %v2471
        %v2473 = vpop.f32.mrb[0].mxu0
        %v2474 = vadd.f32 0.0, %v2473
        %v2475 = vpop.f32.mrb[0].mxu0
        %2476 = vdwg.mxu0
        %2477 = vmatprep.subr.mxu0 0.0
        %v2478 = vand.u32 %v2386, 4294901760
        %v2479 = vsub.f32 %v2386, %v2478
        %v2480 = vand.u32 %v2479, 4294901760
        %v2481 = vsub.f32 %v2479, %v2480
        %v2482 = vand.u32 %v2481, 4294901760
        %2483 = vmatpush1.msra.mxu0 %v2482
        %2484 = vmatprep.subr.mxu0 0.0
        %v2485 = vand.u32 %v2387, 4294901760
        %v2486 = vsub.f32 %v2387, %v2485
        %v2487 = vand.u32 %v2486, 4294901760
        %v2488 = vsub.f32 %v2486, %v2487
        %v2489 = vand.u32 %v2488, 4294901760
        %2490 = vmatpush1.msra.mxu0 %v2489
        %2491 = vmatprep.subr.mxu0 0.0
        %v2492 = vand.u32 %v2388, 4294901760
        %v2493 = vsub.f32 %v2388, %v2492
        %v2494 = vand.u32 %v2493, 4294901760
        %v2495 = vsub.f32 %v2493, %v2494
        %v2496 = vand.u32 %v2495, 4294901760
        %2497 = vmatpush1.msra.mxu0 %v2496
        %2498 = vmatprep.subr.mxu0 0.0
        %v2499 = vand.u32 %v2389, 4294901760
        %v2500 = vsub.f32 %v2389, %v2499
        %v2501 = vand.u32 %v2500, 4294901760
        %v2502 = vsub.f32 %v2500, %v2501
        %v2503 = vand.u32 %v2502, 4294901760
        %2504 = vmatpush1.msra.mxu0 %v2503
        %2505 = vmatprep.subr.mxu0 0.0
        %v2506 = vand.u32 %v2390, 4294901760
        %v2507 = vsub.f32 %v2390, %v2506
        %v2508 = vand.u32 %v2507, 4294901760
        %v2509 = vsub.f32 %v2507, %v2508
        %v2510 = vand.u32 %v2509, 4294901760
        %2511 = vmatpush1.msra.mxu0 %v2510
        %2512 = vmatprep.subr.mxu0 0.0
        %v2513 = vand.u32 %v2391, 4294901760
        %v2514 = vsub.f32 %v2391, %v2513
        %v2515 = vand.u32 %v2514, 4294901760
        %v2516 = vsub.f32 %v2514, %v2515
        %v2517 = vand.u32 %v2516, 4294901760
        %2518 = vmatpush1.msra.mxu0 %v2517
        %2519 = vmatprep.subr.mxu0 0.0
        %v2520 = vand.u32 %v2392, 4294901760
        %v2521 = vsub.f32 %v2392, %v2520
        %v2522 = vand.u32 %v2521, 4294901760
        %v2523 = vsub.f32 %v2521, %v2522
        %v2524 = vand.u32 %v2523, 4294901760
        %2525 = vmatpush1.msra.mxu0 %v2524
        %2526 = vmatprep.subr.mxu0 0.0
        %v2527 = vand.u32 %v2393, 4294901760
        %v2528 = vsub.f32 %v2393, %v2527
        %v2529 = vand.u32 %v2528, 4294901760
        %v2530 = vsub.f32 %v2528, %v2529
        %v2531 = vand.u32 %v2530, 4294901760
        %2532 = vmatpush1.msra.mxu0 %v2531
        %2533 = vmatprep.subr.mxu0 0.0
        %2534 = vmatpush1.msra.mxu0 0.0
        %2535 = vmatprep.subr.mxu0 0.0
        %2536 = vmatpush1.msra.mxu0 0.0
        %2537 = vmatprep.subr.mxu0 0.0
        %2538 = vmatpush1.msra.mxu0 0.0
        %2539 = vmatprep.subr.mxu0 0.0
        %2540 = vmatpush1.msra.mxu0 0.0
        %2541 = vmatprep.subr.mxu0 0.0
        %2542 = vmatpush1.msra.mxu0 0.0
        %2543 = vmatprep.subr.mxu0 0.0
        %2544 = vmatpush1.msra.mxu0 0.0
        %2545 = vmatprep.subr.mxu0 0.0
        %2546 = vmatpush1.msra.mxu0 0.0
        %2547 = vmatprep.subr.mxu0 0.0
        %2548 = vmatpush1.msra.mxu0 0.0
        %2549 = vmatprep.subr.mxu0 0.0
        %2550 = vmatpush1.msra.mxu0 0.0
        %2551 = vmatprep.subr.mxu0 0.0
        %2552 = vmatpush1.msra.mxu0 0.0
        %2553 = vmatprep.subr.mxu0 0.0
        %2554 = vmatpush1.msra.mxu0 0.0
        %2555 = vmatprep.subr.mxu0 0.0
        %2556 = vmatpush1.msra.mxu0 0.0
        %2557 = vmatprep.subr.mxu0 0.0
        %2558 = vmatpush1.msra.mxu0 0.0
        %2559 = vmatprep.subr.mxu0 0.0
        %2560 = vmatpush1.msra.mxu0 0.0
        %2561 = vmatprep.subr.mxu0 0.0
        %2562 = vmatpush1.msra.mxu0 0.0
        %2563 = vmatprep.subr.mxu0 0.0
        %2564 = vmatpush1.msra.mxu0 0.0
        %2565 = vmatprep.subr.mxu0 0.0
        %2566 = vmatpush1.msra.mxu0 0.0
        %2567 = vmatprep.subr.mxu0 0.0
        %2568 = vmatpush1.msra.mxu0 0.0
        %2569 = vmatprep.subr.mxu0 0.0
        %2570 = vmatpush1.msra.mxu0 0.0
        %2571 = vmatprep.subr.mxu0 0.0
        %2572 = vmatpush1.msra.mxu0 0.0
        %2573 = vmatprep.subr.mxu0 0.0
        %2574 = vmatpush1.msra.mxu0 0.0
        %2575 = vmatprep.subr.mxu0 0.0
        %2576 = vmatpush1.msra.mxu0 0.0
        %2577 = vmatprep.subr.mxu0 0.0
        %2578 = vmatpush1.msra.mxu0 0.0
        %2579 = vmatprep.subr.mxu0 0.0
        %2580 = vmatpush1.msra.mxu0 0.0
        %2581 = vmatprep.mubr.f32.mxu0 0.0
        %v2582 = vand.u32 %v1301, 4294901760
        %2583 = vmatmul.mubr.f32.gmra.mrb[0].mxu0 %v2582
        %v2584 = vpop.f32.mrb[0].mxu0
        %v2585 = vadd.f32 %v2474, %v2584
        %v2586 = vpop.f32.mrb[0].mxu0
        %2587 = vdwg.mxu0
        %2588 = vmatprep.subr.mxu0 0.0
        %v2589 = vand.u32 %v2386, 4294901760
        %v2590 = vsub.f32 %v2386, %v2589
        %2591 = vmatpush1.msra.mxu0 %v2590
        %2592 = vmatprep.subr.mxu0 0.0
        %v2593 = vand.u32 %v2387, 4294901760
        %v2594 = vsub.f32 %v2387, %v2593
        %2595 = vmatpush1.msra.mxu0 %v2594
        %2596 = vmatprep.subr.mxu0 0.0
        %v2597 = vand.u32 %v2388, 4294901760
        %v2598 = vsub.f32 %v2388, %v2597
        %2599 = vmatpush1.msra.mxu0 %v2598
        %2600 = vmatprep.subr.mxu0 0.0
        %v2601 = vand.u32 %v2389, 4294901760
        %v2602 = vsub.f32 %v2389, %v2601
        %2603 = vmatpush1.msra.mxu0 %v2602
        %2604 = vmatprep.subr.mxu0 0.0
        %v2605 = vand.u32 %v2390, 4294901760
        %v2606 = vsub.f32 %v2390, %v2605
        %2607 = vmatpush1.msra.mxu0 %v2606
        %2608 = vmatprep.subr.mxu0 0.0
        %v2609 = vand.u32 %v2391, 4294901760
        %v2610 = vsub.f32 %v2391, %v2609
        %2611 = vmatpush1.msra.mxu0 %v2610
        %2612 = vmatprep.subr.mxu0 0.0
        %v2613 = vand.u32 %v2392, 4294901760
        %v2614 = vsub.f32 %v2392, %v2613
        %2615 = vmatpush1.msra.mxu0 %v2614
        %2616 = vmatprep.subr.mxu0 0.0
        %v2617 = vand.u32 %v2393, 4294901760
        %v2618 = vsub.f32 %v2393, %v2617
        %2619 = vmatpush1.msra.mxu0 %v2618
        %2620 = vmatprep.subr.mxu0 0.0
        %2621 = vmatpush1.msra.mxu0 0.0
        %2622 = vmatprep.subr.mxu0 0.0
        %2623 = vmatpush1.msra.mxu0 0.0
        %2624 = vmatprep.subr.mxu0 0.0
        %2625 = vmatpush1.msra.mxu0 0.0
        %2626 = vmatprep.subr.mxu0 0.0
        %2627 = vmatpush1.msra.mxu0 0.0
        %2628 = vmatprep.subr.mxu0 0.0
        %2629 = vmatpush1.msra.mxu0 0.0
        %2630 = vmatprep.subr.mxu0 0.0
        %2631 = vmatpush1.msra.mxu0 0.0
        %2632 = vmatprep.subr.mxu0 0.0
        %2633 = vmatpush1.msra.mxu0 0.0
        %2634 = vmatprep.subr.mxu0 0.0
        %2635 = vmatpush1.msra.mxu0 0.0
        %2636 = vmatprep.subr.mxu0 0.0
        %2637 = vmatpush1.msra.mxu0 0.0
        %2638 = vmatprep.subr.mxu0 0.0
        %2639 = vmatpush1.msra.mxu0 0.0
        %2640 = vmatprep.subr.mxu0 0.0
        %2641 = vmatpush1.msra.mxu0 0.0
        %2642 = vmatprep.subr.mxu0 0.0
        %2643 = vmatpush1.msra.mxu0 0.0
        %2644 = vmatprep.subr.mxu0 0.0
        %2645 = vmatpush1.msra.mxu0 0.0
        %2646 = vmatprep.subr.mxu0 0.0
        %2647 = vmatpush1.msra.mxu0 0.0
        %2648 = vmatprep.subr.mxu0 0.0
        %2649 = vmatpush1.msra.mxu0 0.0
        %2650 = vmatprep.subr.mxu0 0.0
        %2651 = vmatpush1.msra.mxu0 0.0
        %2652 = vmatprep.subr.mxu0 0.0
        %2653 = vmatpush1.msra.mxu0 0.0
        %2654 = vmatprep.subr.mxu0 0.0
        %2655 = vmatpush1.msra.mxu0 0.0
        %2656 = vmatprep.subr.mxu0 0.0
        %2657 = vmatpush1.msra.mxu0 0.0
        %2658 = vmatprep.subr.mxu0 0.0
        %2659 = vmatpush1.msra.mxu0 0.0
        %2660 = vmatprep.subr.mxu0 0.0
        %2661 = vmatpush1.msra.mxu0 0.0
        %2662 = vmatprep.subr.mxu0 0.0
        %2663 = vmatpush1.msra.mxu0 0.0
        %2664 = vmatprep.subr.mxu0 0.0
        %2665 = vmatpush1.msra.mxu0 0.0
        %2666 = vmatprep.subr.mxu0 0.0
        %2667 = vmatpush1.msra.mxu0 0.0
        %2668 = vmatprep.mubr.f32.mxu0 0.0
        %v2669 = vand.u32 %v1301, 4294901760
        %v2670 = vsub.f32 %v1301, %v2669
        %2671 = vmatmul.mubr.f32.gmra.mrb[0].mxu0 %v2670
        %v2672 = vpop.f32.mrb[0].mxu0
        %v2673 = vadd.f32 %v2585, %v2672
        %v2674 = vpop.f32.mrb[0].mxu0
        %2675 = vdwg.mxu0
        %2676 = vmatprep.subr.mxu0 0.0
        %v2677 = vand.u32 %v2386, 4294901760
        %2678 = vmatpush1.msra.mxu0 %v2677
        %2679 = vmatprep.subr.mxu0 0.0
        %v2680 = vand.u32 %v2387, 4294901760
        %2681 = vmatpush1.msra.mxu0 %v2680
        %2682 = vmatprep.subr.mxu0 0.0
        %v2683 = vand.u32 %v2388, 4294901760
        %2684 = vmatpush1.msra.mxu0 %v2683
        %2685 = vmatprep.subr.mxu0 0.0
        %v2686 = vand.u32 %v2389, 4294901760
        %2687 = vmatpush1.msra.mxu0 %v2686
        %2688 = vmatprep.subr.mxu0 0.0
        %v2689 = vand.u32 %v2390, 4294901760
        %2690 = vmatpush1.msra.mxu0 %v2689
        %2691 = vmatprep.subr.mxu0 0.0
        %v2692 = vand.u32 %v2391, 4294901760
        %2693 = vmatpush1.msra.mxu0 %v2692
        %2694 = vmatprep.subr.mxu0 0.0
        %v2695 = vand.u32 %v2392, 4294901760
        %2696 = vmatpush1.msra.mxu0 %v2695
        %2697 = vmatprep.subr.mxu0 0.0
        %v2698 = vand.u32 %v2393, 4294901760
        %2699 = vmatpush1.msra.mxu0 %v2698
        %2700 = vmatprep.subr.mxu0 0.0
        %2701 = vmatpush1.msra.mxu0 0.0
        %2702 = vmatprep.subr.mxu0 0.0
        %2703 = vmatpush1.msra.mxu0 0.0
        %2704 = vmatprep.subr.mxu0 0.0
        %2705 = vmatpush1.msra.mxu0 0.0
        %2706 = vmatprep.subr.mxu0 0.0
        %2707 = vmatpush1.msra.mxu0 0.0
        %2708 = vmatprep.subr.mxu0 0.0
        %2709 = vmatpush1.msra.mxu0 0.0
        %2710 = vmatprep.subr.mxu0 0.0
        %2711 = vmatpush1.msra.mxu0 0.0
        %2712 = vmatprep.subr.mxu0 0.0
        %2713 = vmatpush1.msra.mxu0 0.0
        %2714 = vmatprep.subr.mxu0 0.0
        %2715 = vmatpush1.msra.mxu0 0.0
        %2716 = vmatprep.subr.mxu0 0.0
        %2717 = vmatpush1.msra.mxu0 0.0
        %2718 = vmatprep.subr.mxu0 0.0
        %2719 = vmatpush1.msra.mxu0 0.0
        %2720 = vmatprep.subr.mxu0 0.0
        %2721 = vmatpush1.msra.mxu0 0.0
        %2722 = vmatprep.subr.mxu0 0.0
        %2723 = vmatpush1.msra.mxu0 0.0
        %2724 = vmatprep.subr.mxu0 0.0
        %2725 = vmatpush1.msra.mxu0 0.0
        %2726 = vmatprep.subr.mxu0 0.0
        %2727 = vmatpush1.msra.mxu0 0.0
        %2728 = vmatprep.subr.mxu0 0.0
        %2729 = vmatpush1.msra.mxu0 0.0
        %2730 = vmatprep.subr.mxu0 0.0
        %2731 = vmatpush1.msra.mxu0 0.0
        %2732 = vmatprep.subr.mxu0 0.0
        %2733 = vmatpush1.msra.mxu0 0.0
        %2734 = vmatprep.subr.mxu0 0.0
        %2735 = vmatpush1.msra.mxu0 0.0
        %2736 = vmatprep.subr.mxu0 0.0
        %2737 = vmatpush1.msra.mxu0 0.0
        %2738 = vmatprep.subr.mxu0 0.0
        %2739 = vmatpush1.msra.mxu0 0.0
        %2740 = vmatprep.subr.mxu0 0.0
        %2741 = vmatpush1.msra.mxu0 0.0
        %2742 = vmatprep.subr.mxu0 0.0
        %2743 = vmatpush1.msra.mxu0 0.0
        %2744 = vmatprep.subr.mxu0 0.0
        %2745 = vmatpush1.msra.mxu0 0.0
        %2746 = vmatprep.subr.mxu0 0.0
        %2747 = vmatpush1.msra.mxu0 0.0
        %2748 = vmatprep.mubr.f32.mxu0 0.0
        %v2749 = vand.u32 %v1301, 4294901760
        %v2750 = vsub.f32 %v1301, %v2749
        %v2751 = vand.u32 %v2750, 4294901760
        %2752 = vmatmul.mubr.f32.gmra.mrb[0].mxu0 %v2751
        %v2753 = vpop.f32.mrb[0].mxu0
        %v2754 = vadd.f32 %v2673, %v2753
        %v2755 = vpop.f32.mrb[0].mxu0
        %2756 = vdwg.mxu0
        %2757 = vmatprep.subr.mxu0 0.0
        %v2758 = vand.u32 %v2386, 4294901760
        %v2759 = vsub.f32 %v2386, %v2758
        %v2760 = vand.u32 %v2759, 4294901760
        %2761 = vmatpush1.msra.mxu0 %v2760
        %2762 = vmatprep.subr.mxu0 0.0
        %v2763 = vand.u32 %v2387, 4294901760
        %v2764 = vsub.f32 %v2387, %v2763
        %v2765 = vand.u32 %v2764, 4294901760
        %2766 = vmatpush1.msra.mxu0 %v2765
        %2767 = vmatprep.subr.mxu0 0.0
        %v2768 = vand.u32 %v2388, 4294901760
        %v2769 = vsub.f32 %v2388, %v2768
        %v2770 = vand.u32 %v2769, 4294901760
        %2771 = vmatpush1.msra.mxu0 %v2770
        %2772 = vmatprep.subr.mxu0 0.0
        %v2773 = vand.u32 %v2389, 4294901760
        %v2774 = vsub.f32 %v2389, %v2773
        %v2775 = vand.u32 %v2774, 4294901760
        %2776 = vmatpush1.msra.mxu0 %v2775
        %2777 = vmatprep.subr.mxu0 0.0
        %v2778 = vand.u32 %v2390, 4294901760
        %v2779 = vsub.f32 %v2390, %v2778
        %v2780 = vand.u32 %v2779, 4294901760
        %2781 = vmatpush1.msra.mxu0 %v2780
        %2782 = vmatprep.subr.mxu0 0.0
        %v2783 = vand.u32 %v2391, 4294901760
        %v2784 = vsub.f32 %v2391, %v2783
        %v2785 = vand.u32 %v2784, 4294901760
        %2786 = vmatpush1.msra.mxu0 %v2785
        %2787 = vmatprep.subr.mxu0 0.0
        %v2788 = vand.u32 %v2392, 4294901760
        %v2789 = vsub.f32 %v2392, %v2788
        %v2790 = vand.u32 %v2789, 4294901760
        %2791 = vmatpush1.msra.mxu0 %v2790
        %2792 = vmatprep.subr.mxu0 0.0
        %v2793 = vand.u32 %v2393, 4294901760
        %v2794 = vsub.f32 %v2393, %v2793
        %v2795 = vand.u32 %v2794, 4294901760
        %2796 = vmatpush1.msra.mxu0 %v2795
        %2797 = vmatprep.subr.mxu0 0.0
        %2798 = vmatpush1.msra.mxu0 0.0
        %2799 = vmatprep.subr.mxu0 0.0
        %2800 = vmatpush1.msra.mxu0 0.0
        %2801 = vmatprep.subr.mxu0 0.0
        %2802 = vmatpush1.msra.mxu0 0.0
        %2803 = vmatprep.subr.mxu0 0.0
        %2804 = vmatpush1.msra.mxu0 0.0
        %2805 = vmatprep.subr.mxu0 0.0
        %2806 = vmatpush1.msra.mxu0 0.0
        %2807 = vmatprep.subr.mxu0 0.0
        %2808 = vmatpush1.msra.mxu0 0.0
        %2809 = vmatprep.subr.mxu0 0.0
        %2810 = vmatpush1.msra.mxu0 0.0
        %2811 = vmatprep.subr.mxu0 0.0
        %2812 = vmatpush1.msra.mxu0 0.0
        %2813 = vmatprep.subr.mxu0 0.0
        %2814 = vmatpush1.msra.mxu0 0.0
        %2815 = vmatprep.subr.mxu0 0.0
        %2816 = vmatpush1.msra.mxu0 0.0
        %2817 = vmatprep.subr.mxu0 0.0
        %2818 = vmatpush1.msra.mxu0 0.0
        %2819 = vmatprep.subr.mxu0 0.0
        %2820 = vmatpush1.msra.mxu0 0.0
        %2821 = vmatprep.subr.mxu0 0.0
        %2822 = vmatpush1.msra.mxu0 0.0
        %2823 = vmatprep.subr.mxu0 0.0
        %2824 = vmatpush1.msra.mxu0 0.0
        %2825 = vmatprep.subr.mxu0 0.0
        %2826 = vmatpush1.msra.mxu0 0.0
        %2827 = vmatprep.subr.mxu0 0.0
        %2828 = vmatpush1.msra.mxu0 0.0
        %2829 = vmatprep.subr.mxu0 0.0
        %2830 = vmatpush1.msra.mxu0 0.0
        %2831 = vmatprep.subr.mxu0 0.0
        %2832 = vmatpush1.msra.mxu0 0.0
        %2833 = vmatprep.subr.mxu0 0.0
        %2834 = vmatpush1.msra.mxu0 0.0
        %2835 = vmatprep.subr.mxu0 0.0
        %2836 = vmatpush1.msra.mxu0 0.0
        %2837 = vmatprep.subr.mxu0 0.0
        %2838 = vmatpush1.msra.mxu0 0.0
        %2839 = vmatprep.subr.mxu0 0.0
        %2840 = vmatpush1.msra.mxu0 0.0
        %2841 = vmatprep.subr.mxu0 0.0
        %2842 = vmatpush1.msra.mxu0 0.0
        %2843 = vmatprep.subr.mxu0 0.0
        %2844 = vmatpush1.msra.mxu0 0.0
        %2845 = vmatprep.mubr.f32.mxu0 0.0
        %v2846 = vand.u32 %v1301, 4294901760
        %2847 = vmatmul.mubr.f32.gmra.mrb[0].mxu0 %v2846
        %v2848 = vpop.f32.mrb[0].mxu0
        %v2849 = vadd.f32 %v2754, %v2848
        %v2850 = vpop.f32.mrb[0].mxu0
        %2851 = vdwg.mxu0
        %2852 = vmatprep.subr.mxu0 0.0
        %v2853 = vand.u32 %v2386, 4294901760
        %2854 = vmatpush1.msra.mxu0 %v2853
        %2855 = vmatprep.subr.mxu0 0.0
        %v2856 = vand.u32 %v2387, 4294901760
        %2857 = vmatpush1.msra.mxu0 %v2856
        %2858 = vmatprep.subr.mxu0 0.0
        %v2859 = vand.u32 %v2388, 4294901760
        %2860 = vmatpush1.msra.mxu0 %v2859
        %2861 = vmatprep.subr.mxu0 0.0
        %v2862 = vand.u32 %v2389, 4294901760
        %2863 = vmatpush1.msra.mxu0 %v2862
        %2864 = vmatprep.subr.mxu0 0.0
        %v2865 = vand.u32 %v2390, 4294901760
        %2866 = vmatpush1.msra.mxu0 %v2865
        %2867 = vmatprep.subr.mxu0 0.0
        %v2868 = vand.u32 %v2391, 4294901760
        %2869 = vmatpush1.msra.mxu0 %v2868
        %2870 = vmatprep.subr.mxu0 0.0
        %v2871 = vand.u32 %v2392, 4294901760
        %2872 = vmatpush1.msra.mxu0 %v2871
        %2873 = vmatprep.subr.mxu0 0.0
        %v2874 = vand.u32 %v2393, 4294901760
        %2875 = vmatpush1.msra.mxu0 %v2874
        %2876 = vmatprep.subr.mxu0 0.0
        %2877 = vmatpush1.msra.mxu0 0.0
        %2878 = vmatprep.subr.mxu0 0.0
        %2879 = vmatpush1.msra.mxu0 0.0
        %2880 = vmatprep.subr.mxu0 0.0
        %2881 = vmatpush1.msra.mxu0 0.0
        %2882 = vmatprep.subr.mxu0 0.0
        %2883 = vmatpush1.msra.mxu0 0.0
        %2884 = vmatprep.subr.mxu0 0.0
        %2885 = vmatpush1.msra.mxu0 0.0
        %2886 = vmatprep.subr.mxu0 0.0
        %2887 = vmatpush1.msra.mxu0 0.0
        %2888 = vmatprep.subr.mxu0 0.0
        %2889 = vmatpush1.msra.mxu0 0.0
        %2890 = vmatprep.subr.mxu0 0.0
        %2891 = vmatpush1.msra.mxu0 0.0
        %2892 = vmatprep.subr.mxu0 0.0
        %2893 = vmatpush1.msra.mxu0 0.0
        %2894 = vmatprep.subr.mxu0 0.0
        %2895 = vmatpush1.msra.mxu0 0.0
        %2896 = vmatprep.subr.mxu0 0.0
        %2897 = vmatpush1.msra.mxu0 0.0
        %2898 = vmatprep.subr.mxu0 0.0
        %2899 = vmatpush1.msra.mxu0 0.0
        %2900 = vmatprep.subr.mxu0 0.0
        %2901 = vmatpush1.msra.mxu0 0.0
        %2902 = vmatprep.subr.mxu0 0.0
        %2903 = vmatpush1.msra.mxu0 0.0
        %2904 = vmatprep.subr.mxu0 0.0
        %2905 = vmatpush1.msra.mxu0 0.0
        %2906 = vmatprep.subr.mxu0 0.0
        %2907 = vmatpush1.msra.mxu0 0.0
        %2908 = vmatprep.subr.mxu0 0.0
        %2909 = vmatpush1.msra.mxu0 0.0
        %2910 = vmatprep.subr.mxu0 0.0
        %2911 = vmatpush1.msra.mxu0 0.0
        %2912 = vmatprep.subr.mxu0 0.0
        %2913 = vmatpush1.msra.mxu0 0.0
        %2914 = vmatprep.subr.mxu0 0.0
        %2915 = vmatpush1.msra.mxu0 0.0
        %2916 = vmatprep.subr.mxu0 0.0
        %2917 = vmatpush1.msra.mxu0 0.0
        %2918 = vmatprep.subr.mxu0 0.0
        %2919 = vmatpush1.msra.mxu0 0.0
        %2920 = vmatprep.subr.mxu0 0.0
        %2921 = vmatpush1.msra.mxu0 0.0
        %2922 = vmatprep.subr.mxu0 0.0
        %2923 = vmatpush1.msra.mxu0 0.0
        %2924 = vmatprep.mubr.f32.mxu0 0.0
        %v2925 = vand.u32 %v1301, 4294901760
        %2926 = vmatmul.mubr.f32.gmra.mrb[0].mxu0 %v2925
        %v2927 = vpop.f32.mrb[0].mxu0
        %v2928 = vadd.f32 %v2849, %v2927
        %v2929 = vpop.f32.mrb[0].mxu0
        %2930 = vdwg.mxu0
        %v2931 = vld [vmem:[%s709] sm:$0xff]
        %v2932 = vld [vmem:[%s718] sm:$0xff]
        %2934 = vrot.lane.b32.xlu0 %v2931, 16
        %v2935 = vpop.permute.xlu0 %2934
        %vm2937 = vcmask 130048
        %v2938 = vsel %vm2937, %v2931, %v2935
        %2940 = vrot.lane.b32.xlu0 %v2932, 16
        %v2941 = vpop.permute.xlu0 %2940
        %v2943 = vsel %vm2937, %v2932, %v2941
        %v2944 = vmul.f32 %v2383, %v2938
        %v2945 = vmul.f32 %v2928, %v2943
        %v2946 = vadd.f32 %v2944, %v2945
        %2947 = vst.msk [vmem:[%s775] sm:$0xff] %vm802, %v2946
        %v2948 = vld [vmem:[#allocation11] sm:$0xff]
        %v2949 = vld [vmem:[#allocation11 + $0x8] sm:$0xff]
        %v2950 = vld [vmem:[#allocation11 + $0x10] sm:$0xff]
        %v2951 = vld [vmem:[#allocation11 + $0x18] sm:$0xff]
        %2952 = vmatprep.subr.mxu0 0.0
        %v2953 = vand.u32 %v2948, 4294901760
        %2954 = vmatpush1.msra.mxu0 %v2953
        %2955 = vmatprep.subr.mxu0 0.0
        %v2956 = vand.u32 %v2949, 4294901760
        %2957 = vmatpush1.msra.mxu0 %v2956
        %2958 = vmatprep.subr.mxu0 0.0
        %v2959 = vand.u32 %v2950, 4294901760
        %2960 = vmatpush1.msra.mxu0 %v2959
        %2961 = vmatprep.subr.mxu0 0.0
        %v2962 = vand.u32 %v2951, 4294901760
        %2963 = vmatpush1.msra.mxu0 %v2962
        %2964 = vmatprep.subr.mxu0 0.0
        %2965 = vmatpush1.msra.mxu0 0.0
        %2966 = vmatprep.subr.mxu0 0.0
        %2967 = vmatpush1.msra.mxu0 0.0
        %2968 = vmatprep.subr.mxu0 0.0
        %2969 = vmatpush1.msra.mxu0 0.0
        %2970 = vmatprep.subr.mxu0 0.0
        %2971 = vmatpush1.msra.mxu0 0.0
        %2972 = vmatprep.subr.mxu0 0.0
        %2973 = vmatpush1.msra.mxu0 0.0
        %2974 = vmatprep.subr.mxu0 0.0
        %2975 = vmatpush1.msra.mxu0 0.0
        %2976 = vmatprep.subr.mxu0 0.0
        %2977 = vmatpush1.msra.mxu0 0.0
        %2978 = vmatprep.subr.mxu0 0.0
        %2979 = vmatpush1.msra.mxu0 0.0
        %2980 = vmatprep.subr.mxu0 0.0
        %2981 = vmatpush1.msra.mxu0 0.0
        %2982 = vmatprep.subr.mxu0 0.0
        %2983 = vmatpush1.msra.mxu0 0.0
        %2984 = vmatprep.subr.mxu0 0.0
        %2985 = vmatpush1.msra.mxu0 0.0
        %2986 = vmatprep.subr.mxu0 0.0
        %2987 = vmatpush1.msra.mxu0 0.0
        %2988 = vmatprep.subr.mxu0 0.0
        %2989 = vmatpush1.msra.mxu0 0.0
        %2990 = vmatprep.subr.mxu0 0.0
        %2991 = vmatpush1.msra.mxu0 0.0
        %2992 = vmatprep.subr.mxu0 0.0
        %2993 = vmatpush1.msra.mxu0 0.0
        %2994 = vmatprep.subr.mxu0 0.0
        %2995 = vmatpush1.msra.mxu0 0.0
        %2996 = vmatprep.subr.mxu0 0.0
        %2997 = vmatpush1.msra.mxu0 0.0
        %2998 = vmatprep.subr.mxu0 0.0
        %2999 = vmatpush1.msra.mxu0 0.0
        %3000 = vmatprep.subr.mxu0 0.0
        %3001 = vmatpush1.msra.mxu0 0.0
        %3002 = vmatprep.subr.mxu0 0.0
        %3003 = vmatpush1.msra.mxu0 0.0
        %3004 = vmatprep.subr.mxu0 0.0
        %3005 = vmatpush1.msra.mxu0 0.0
        %3006 = vmatprep.subr.mxu0 0.0
        %3007 = vmatpush1.msra.mxu0 0.0
        %3008 = vmatprep.subr.mxu0 0.0
        %3009 = vmatpush1.msra.mxu0 0.0
        %3010 = vmatprep.subr.mxu0 0.0
        %3011 = vmatpush1.msra.mxu0 0.0
        %3012 = vmatprep.subr.mxu0 0.0
        %3013 = vmatpush1.msra.mxu0 0.0
        %3014 = vmatprep.subr.mxu0 0.0
        %3015 = vmatpush1.msra.mxu0 0.0
        %3016 = vmatprep.subr.mxu0 0.0
        %3017 = vmatpush1.msra.mxu0 0.0
        %3018 = vmatprep.subr.mxu0 0.0
        %3019 = vmatpush1.msra.mxu0 0.0
        %3020 = vmatprep.mubr.f32.mxu0 0.0
        %v3021 = vand.u32 %v804, 4294901760
        %v3022 = vsub.f32 %v804, %v3021
        %v3023 = vand.u32 %v3022, 4294901760
        %v3024 = vsub.f32 %v3022, %v3023
        %v3025 = vand.u32 %v3024, 4294901760
        %3026 = vmatmul.mubr.f32.gmra.mrb[0].mxu0 %v3025
        %v3027 = vpop.f32.mrb[0].mxu0
        %v3028 = vadd.f32 0.0, %v3027
        %v3029 = vpop.f32.mrb[0].mxu0
        %3030 = vdwg.mxu0
        %3031 = vmatprep.subr.mxu0 0.0
        %v3032 = vand.u32 %v2948, 4294901760
        %v3033 = vsub.f32 %v2948, %v3032
        %v3034 = vand.u32 %v3033, 4294901760
        %v3035 = vsub.f32 %v3033, %v3034
        %v3036 = vand.u32 %v3035, 4294901760
        %3037 = vmatpush1.msra.mxu0 %v3036
        %3038 = vmatprep.subr.mxu0 0.0
        %v3039 = vand.u32 %v2949, 4294901760
        %v3040 = vsub.f32 %v2949, %v3039
        %v3041 = vand.u32 %v3040, 4294901760
        %v3042 = vsub.f32 %v3040, %v3041
        %v3043 = vand.u32 %v3042, 4294901760
        %3044 = vmatpush1.msra.mxu0 %v3043
        %3045 = vmatprep.subr.mxu0 0.0
        %v3046 = vand.u32 %v2950, 4294901760
        %v3047 = vsub.f32 %v2950, %v3046
        %v3048 = vand.u32 %v3047, 4294901760
        %v3049 = vsub.f32 %v3047, %v3048
        %v3050 = vand.u32 %v3049, 4294901760
        %3051 = vmatpush1.msra.mxu0 %v3050
        %3052 = vmatprep.subr.mxu0 0.0
        %v3053 = vand.u32 %v2951, 4294901760
        %v3054 = vsub.f32 %v2951, %v3053
        %v3055 = vand.u32 %v3054, 4294901760
        %v3056 = vsub.f32 %v3054, %v3055
        %v3057 = vand.u32 %v3056, 4294901760
        %3058 = vmatpush1.msra.mxu0 %v3057
        %3059 = vmatprep.subr.mxu0 0.0
        %3060 = vmatpush1.msra.mxu0 0.0
        %3061 = vmatprep.subr.mxu0 0.0
        %3062 = vmatpush1.msra.mxu0 0.0
        %3063 = vmatprep.subr.mxu0 0.0
        %3064 = vmatpush1.msra.mxu0 0.0
        %3065 = vmatprep.subr.mxu0 0.0
        %3066 = vmatpush1.msra.mxu0 0.0
        %3067 = vmatprep.subr.mxu0 0.0
        %3068 = vmatpush1.msra.mxu0 0.0
        %3069 = vmatprep.subr.mxu0 0.0
        %3070 = vmatpush1.msra.mxu0 0.0
        %3071 = vmatprep.subr.mxu0 0.0
        %3072 = vmatpush1.msra.mxu0 0.0
        %3073 = vmatprep.subr.mxu0 0.0
        %3074 = vmatpush1.msra.mxu0 0.0
        %3075 = vmatprep.subr.mxu0 0.0
        %3076 = vmatpush1.msra.mxu0 0.0
        %3077 = vmatprep.subr.mxu0 0.0
        %3078 = vmatpush1.msra.mxu0 0.0
        %3079 = vmatprep.subr.mxu0 0.0
        %3080 = vmatpush1.msra.mxu0 0.0
        %3081 = vmatprep.subr.mxu0 0.0
        %3082 = vmatpush1.msra.mxu0 0.0
        %3083 = vmatprep.subr.mxu0 0.0
        %3084 = vmatpush1.msra.mxu0 0.0
        %3085 = vmatprep.subr.mxu0 0.0
        %3086 = vmatpush1.msra.mxu0 0.0
        %3087 = vmatprep.subr.mxu0 0.0
        %3088 = vmatpush1.msra.mxu0 0.0
        %3089 = vmatprep.subr.mxu0 0.0
        %3090 = vmatpush1.msra.mxu0 0.0
        %3091 = vmatprep.subr.mxu0 0.0
        %3092 = vmatpush1.msra.mxu0 0.0
        %3093 = vmatprep.subr.mxu0 0.0
        %3094 = vmatpush1.msra.mxu0 0.0
        %3095 = vmatprep.subr.mxu0 0.0
        %3096 = vmatpush1.msra.mxu0 0.0
        %3097 = vmatprep.subr.mxu0 0.0
        %3098 = vmatpush1.msra.mxu0 0.0
        %3099 = vmatprep.subr.mxu0 0.0
        %3100 = vmatpush1.msra.mxu0 0.0
        %3101 = vmatprep.subr.mxu0 0.0
        %3102 = vmatpush1.msra.mxu0 0.0
        %3103 = vmatprep.subr.mxu0 0.0
        %3104 = vmatpush1.msra.mxu0 0.0
        %3105 = vmatprep.subr.mxu0 0.0
        %3106 = vmatpush1.msra.mxu0 0.0
        %3107 = vmatprep.subr.mxu0 0.0
        %3108 = vmatpush1.msra.mxu0 0.0
        %3109 = vmatprep.subr.mxu0 0.0
        %3110 = vmatpush1.msra.mxu0 0.0
        %3111 = vmatprep.subr.mxu0 0.0
        %3112 = vmatpush1.msra.mxu0 0.0
        %3113 = vmatprep.subr.mxu0 0.0
        %3114 = vmatpush1.msra.mxu0 0.0
        %3115 = vmatprep.mubr.f32.mxu0 0.0
        %v3116 = vand.u32 %v804, 4294901760
        %3117 = vmatmul.mubr.f32.gmra.mrb[0].mxu0 %v3116
        %v3118 = vpop.f32.mrb[0].mxu0
        %v3119 = vadd.f32 %v3028, %v3118
        %v3120 = vpop.f32.mrb[0].mxu0
        %3121 = vdwg.mxu0
        %3122 = vmatprep.subr.mxu0 0.0
        %v3123 = vand.u32 %v2948, 4294901760
        %v3124 = vsub.f32 %v2948, %v3123
        %3125 = vmatpush1.msra.mxu0 %v3124
        %3126 = vmatprep.subr.mxu0 0.0
        %v3127 = vand.u32 %v2949, 4294901760
        %v3128 = vsub.f32 %v2949, %v3127
        %3129 = vmatpush1.msra.mxu0 %v3128
        %3130 = vmatprep.subr.mxu0 0.0
        %v3131 = vand.u32 %v2950, 4294901760
        %v3132 = vsub.f32 %v2950, %v3131
        %3133 = vmatpush1.msra.mxu0 %v3132
        %3134 = vmatprep.subr.mxu0 0.0
        %v3135 = vand.u32 %v2951, 4294901760
        %v3136 = vsub.f32 %v2951, %v3135
        %3137 = vmatpush1.msra.mxu0 %v3136
        %3138 = vmatprep.subr.mxu0 0.0
        %3139 = vmatpush1.msra.mxu0 0.0
        %3140 = vmatprep.subr.mxu0 0.0
        %3141 = vmatpush1.msra.mxu0 0.0
        %3142 = vmatprep.subr.mxu0 0.0
        %3143 = vmatpush1.msra.mxu0 0.0
        %3144 = vmatprep.subr.mxu0 0.0
        %3145 = vmatpush1.msra.mxu0 0.0
        %3146 = vmatprep.subr.mxu0 0.0
        %3147 = vmatpush1.msra.mxu0 0.0
        %3148 = vmatprep.subr.mxu0 0.0
        %3149 = vmatpush1.msra.mxu0 0.0
        %3150 = vmatprep.subr.mxu0 0.0
        %3151 = vmatpush1.msra.mxu0 0.0
        %3152 = vmatprep.subr.mxu0 0.0
        %3153 = vmatpush1.msra.mxu0 0.0
        %3154 = vmatprep.subr.mxu0 0.0
        %3155 = vmatpush1.msra.mxu0 0.0
        %3156 = vmatprep.subr.mxu0 0.0
        %3157 = vmatpush1.msra.mxu0 0.0
        %3158 = vmatprep.subr.mxu0 0.0
        %3159 = vmatpush1.msra.mxu0 0.0
        %3160 = vmatprep.subr.mxu0 0.0
        %3161 = vmatpush1.msra.mxu0 0.0
        %3162 = vmatprep.subr.mxu0 0.0
        %3163 = vmatpush1.msra.mxu0 0.0
        %3164 = vmatprep.subr.mxu0 0.0
        %3165 = vmatpush1.msra.mxu0 0.0
        %3166 = vmatprep.subr.mxu0 0.0
        %3167 = vmatpush1.msra.mxu0 0.0
        %3168 = vmatprep.subr.mxu0 0.0
        %3169 = vmatpush1.msra.mxu0 0.0
        %3170 = vmatprep.subr.mxu0 0.0
        %3171 = vmatpush1.msra.mxu0 0.0
        %3172 = vmatprep.subr.mxu0 0.0
        %3173 = vmatpush1.msra.mxu0 0.0
        %3174 = vmatprep.subr.mxu0 0.0
        %3175 = vmatpush1.msra.mxu0 0.0
        %3176 = vmatprep.subr.mxu0 0.0
        %3177 = vmatpush1.msra.mxu0 0.0
        %3178 = vmatprep.subr.mxu0 0.0
        %3179 = vmatpush1.msra.mxu0 0.0
        %3180 = vmatprep.subr.mxu0 0.0
        %3181 = vmatpush1.msra.mxu0 0.0
        %3182 = vmatprep.subr.mxu0 0.0
        %3183 = vmatpush1.msra.mxu0 0.0
        %3184 = vmatprep.subr.mxu0 0.0
        %3185 = vmatpush1.msra.mxu0 0.0
        %3186 = vmatprep.subr.mxu0 0.0
        %3187 = vmatpush1.msra.mxu0 0.0
        %3188 = vmatprep.subr.mxu0 0.0
        %3189 = vmatpush1.msra.mxu0 0.0
        %3190 = vmatprep.subr.mxu0 0.0
        %3191 = vmatpush1.msra.mxu0 0.0
        %3192 = vmatprep.subr.mxu0 0.0
        %3193 = vmatpush1.msra.mxu0 0.0
        %3194 = vmatprep.mubr.f32.mxu0 0.0
        %v3195 = vand.u32 %v804, 4294901760
        %v3196 = vsub.f32 %v804, %v3195
        %3197 = vmatmul.mubr.f32.gmra.mrb[0].mxu0 %v3196
        %v3198 = vpop.f32.mrb[0].mxu0
        %v3199 = vadd.f32 %v3119, %v3198
        %v3200 = vpop.f32.mrb[0].mxu0
        %3201 = vdwg.mxu0
        %3202 = vmatprep.subr.mxu0 0.0
        %v3203 = vand.u32 %v2948, 4294901760
        %3204 = vmatpush1.msra.mxu0 %v3203
        %3205 = vmatprep.subr.mxu0 0.0
        %v3206 = vand.u32 %v2949, 4294901760
        %3207 = vmatpush1.msra.mxu0 %v3206
        %3208 = vmatprep.subr.mxu0 0.0
        %v3209 = vand.u32 %v2950, 4294901760
        %3210 = vmatpush1.msra.mxu0 %v3209
        %3211 = vmatprep.subr.mxu0 0.0
        %v3212 = vand.u32 %v2951, 4294901760
        %3213 = vmatpush1.msra.mxu0 %v3212
        %3214 = vmatprep.subr.mxu0 0.0
        %3215 = vmatpush1.msra.mxu0 0.0
        %3216 = vmatprep.subr.mxu0 0.0
        %3217 = vmatpush1.msra.mxu0 0.0
        %3218 = vmatprep.subr.mxu0 0.0
        %3219 = vmatpush1.msra.mxu0 0.0
        %3220 = vmatprep.subr.mxu0 0.0
        %3221 = vmatpush1.msra.mxu0 0.0
        %3222 = vmatprep.subr.mxu0 0.0
        %3223 = vmatpush1.msra.mxu0 0.0
        %3224 = vmatprep.subr.mxu0 0.0
        %3225 = vmatpush1.msra.mxu0 0.0
        %3226 = vmatprep.subr.mxu0 0.0
        %3227 = vmatpush1.msra.mxu0 0.0
        %3228 = vmatprep.subr.mxu0 0.0
        %3229 = vmatpush1.msra.mxu0 0.0
        %3230 = vmatprep.subr.mxu0 0.0
        %3231 = vmatpush1.msra.mxu0 0.0
        %3232 = vmatprep.subr.mxu0 0.0
        %3233 = vmatpush1.msra.mxu0 0.0
        %3234 = vmatprep.subr.mxu0 0.0
        %3235 = vmatpush1.msra.mxu0 0.0
        %3236 = vmatprep.subr.mxu0 0.0
        %3237 = vmatpush1.msra.mxu0 0.0
        %3238 = vmatprep.subr.mxu0 0.0
        %3239 = vmatpush1.msra.mxu0 0.0
        %3240 = vmatprep.subr.mxu0 0.0
        %3241 = vmatpush1.msra.mxu0 0.0
        %3242 = vmatprep.subr.mxu0 0.0
        %3243 = vmatpush1.msra.mxu0 0.0
        %3244 = vmatprep.subr.mxu0 0.0
        %3245 = vmatpush1.msra.mxu0 0.0
        %3246 = vmatprep.subr.mxu0 0.0
        %3247 = vmatpush1.msra.mxu0 0.0
        %3248 = vmatprep.subr.mxu0 0.0
        %3249 = vmatpush1.msra.mxu0 0.0
        %3250 = vmatprep.subr.mxu0 0.0
        %3251 = vmatpush1.msra.mxu0 0.0
        %3252 = vmatprep.subr.mxu0 0.0
        %3253 = vmatpush1.msra.mxu0 0.0
        %3254 = vmatprep.subr.mxu0 0.0
        %3255 = vmatpush1.msra.mxu0 0.0
        %3256 = vmatprep.subr.mxu0 0.0
        %3257 = vmatpush1.msra.mxu0 0.0
        %3258 = vmatprep.subr.mxu0 0.0
        %3259 = vmatpush1.msra.mxu0 0.0
        %3260 = vmatprep.subr.mxu0 0.0
        %3261 = vmatpush1.msra.mxu0 0.0
        %3262 = vmatprep.subr.mxu0 0.0
        %3263 = vmatpush1.msra.mxu0 0.0
        %3264 = vmatprep.subr.mxu0 0.0
        %3265 = vmatpush1.msra.mxu0 0.0
        %3266 = vmatprep.subr.mxu0 0.0
        %3267 = vmatpush1.msra.mxu0 0.0
        %3268 = vmatprep.subr.mxu0 0.0
        %3269 = vmatpush1.msra.mxu0 0.0
        %3270 = vmatprep.mubr.f32.mxu0 0.0
        %v3271 = vand.u32 %v804, 4294901760
        %v3272 = vsub.f32 %v804, %v3271
        %v3273 = vand.u32 %v3272, 4294901760
        %3274 = vmatmul.mubr.f32.gmra.mrb[0].mxu0 %v3273
        %v3275 = vpop.f32.mrb[0].mxu0
        %v3276 = vadd.f32 %v3199, %v3275
        %v3277 = vpop.f32.mrb[0].mxu0
        %3278 = vdwg.mxu0
        %3279 = vmatprep.subr.mxu0 0.0
        %v3280 = vand.u32 %v2948, 4294901760
        %v3281 = vsub.f32 %v2948, %v3280
        %v3282 = vand.u32 %v3281, 4294901760
        %3283 = vmatpush1.msra.mxu0 %v3282
        %3284 = vmatprep.subr.mxu0 0.0
        %v3285 = vand.u32 %v2949, 4294901760
        %v3286 = vsub.f32 %v2949, %v3285
        %v3287 = vand.u32 %v3286, 4294901760
        %3288 = vmatpush1.msra.mxu0 %v3287
        %3289 = vmatprep.subr.mxu0 0.0
        %v3290 = vand.u32 %v2950, 4294901760
        %v3291 = vsub.f32 %v2950, %v3290
        %v3292 = vand.u32 %v3291, 4294901760
        %3293 = vmatpush1.msra.mxu0 %v3292
        %3294 = vmatprep.subr.mxu0 0.0
        %v3295 = vand.u32 %v2951, 4294901760
        %v3296 = vsub.f32 %v2951, %v3295
        %v3297 = vand.u32 %v3296, 4294901760
        %3298 = vmatpush1.msra.mxu0 %v3297
        %3299 = vmatprep.subr.mxu0 0.0
        %3300 = vmatpush1.msra.mxu0 0.0
        %3301 = vmatprep.subr.mxu0 0.0
        %3302 = vmatpush1.msra.mxu0 0.0
        %3303 = vmatprep.subr.mxu0 0.0
        %3304 = vmatpush1.msra.mxu0 0.0
        %3305 = vmatprep.subr.mxu0 0.0
        %3306 = vmatpush1.msra.mxu0 0.0
        %3307 = vmatprep.subr.mxu0 0.0
        %3308 = vmatpush1.msra.mxu0 0.0
        %3309 = vmatprep.subr.mxu0 0.0
        %3310 = vmatpush1.msra.mxu0 0.0
        %3311 = vmatprep.subr.mxu0 0.0
        %3312 = vmatpush1.msra.mxu0 0.0
        %3313 = vmatprep.subr.mxu0 0.0
        %3314 = vmatpush1.msra.mxu0 0.0
        %3315 = vmatprep.subr.mxu0 0.0
        %3316 = vmatpush1.msra.mxu0 0.0
        %3317 = vmatprep.subr.mxu0 0.0
        %3318 = vmatpush1.msra.mxu0 0.0
        %3319 = vmatprep.subr.mxu0 0.0
        %3320 = vmatpush1.msra.mxu0 0.0
        %3321 = vmatprep.subr.mxu0 0.0
        %3322 = vmatpush1.msra.mxu0 0.0
        %3323 = vmatprep.subr.mxu0 0.0
        %3324 = vmatpush1.msra.mxu0 0.0
        %3325 = vmatprep.subr.mxu0 0.0
        %3326 = vmatpush1.msra.mxu0 0.0
        %3327 = vmatprep.subr.mxu0 0.0
        %3328 = vmatpush1.msra.mxu0 0.0
        %3329 = vmatprep.subr.mxu0 0.0
        %3330 = vmatpush1.msra.mxu0 0.0
        %3331 = vmatprep.subr.mxu0 0.0
        %3332 = vmatpush1.msra.mxu0 0.0
        %3333 = vmatprep.subr.mxu0 0.0
        %3334 = vmatpush1.msra.mxu0 0.0
        %3335 = vmatprep.subr.mxu0 0.0
        %3336 = vmatpush1.msra.mxu0 0.0
        %3337 = vmatprep.subr.mxu0 0.0
        %3338 = vmatpush1.msra.mxu0 0.0
        %3339 = vmatprep.subr.mxu0 0.0
        %3340 = vmatpush1.msra.mxu0 0.0
        %3341 = vmatprep.subr.mxu0 0.0
        %3342 = vmatpush1.msra.mxu0 0.0
        %3343 = vmatprep.subr.mxu0 0.0
        %3344 = vmatpush1.msra.mxu0 0.0
        %3345 = vmatprep.subr.mxu0 0.0
        %3346 = vmatpush1.msra.mxu0 0.0
        %3347 = vmatprep.subr.mxu0 0.0
        %3348 = vmatpush1.msra.mxu0 0.0
        %3349 = vmatprep.subr.mxu0 0.0
        %3350 = vmatpush1.msra.mxu0 0.0
        %3351 = vmatprep.subr.mxu0 0.0
        %3352 = vmatpush1.msra.mxu0 0.0
        %3353 = vmatprep.subr.mxu0 0.0
        %3354 = vmatpush1.msra.mxu0 0.0
        %3355 = vmatprep.mubr.f32.mxu0 0.0
        %v3356 = vand.u32 %v804, 4294901760
        %3357 = vmatmul.mubr.f32.gmra.mrb[0].mxu0 %v3356
        %v3358 = vpop.f32.mrb[0].mxu0
        %v3359 = vadd.f32 %v3276, %v3358
        %v3360 = vpop.f32.mrb[0].mxu0
        %3361 = vdwg.mxu0
        %3362 = vmatprep.subr.mxu0 0.0
        %v3363 = vand.u32 %v2948, 4294901760
        %3364 = vmatpush1.msra.mxu0 %v3363
        %3365 = vmatprep.subr.mxu0 0.0
        %v3366 = vand.u32 %v2949, 4294901760
        %3367 = vmatpush1.msra.mxu0 %v3366
        %3368 = vmatprep.subr.mxu0 0.0
        %v3369 = vand.u32 %v2950, 4294901760
        %3370 = vmatpush1.msra.mxu0 %v3369
        %3371 = vmatprep.subr.mxu0 0.0
        %v3372 = vand.u32 %v2951, 4294901760
        %3373 = vmatpush1.msra.mxu0 %v3372
        %3374 = vmatprep.subr.mxu0 0.0
        %3375 = vmatpush1.msra.mxu0 0.0
        %3376 = vmatprep.subr.mxu0 0.0
        %3377 = vmatpush1.msra.mxu0 0.0
        %3378 = vmatprep.subr.mxu0 0.0
        %3379 = vmatpush1.msra.mxu0 0.0
        %3380 = vmatprep.subr.mxu0 0.0
        %3381 = vmatpush1.msra.mxu0 0.0
        %3382 = vmatprep.subr.mxu0 0.0
        %3383 = vmatpush1.msra.mxu0 0.0
        %3384 = vmatprep.subr.mxu0 0.0
        %3385 = vmatpush1.msra.mxu0 0.0
        %3386 = vmatprep.subr.mxu0 0.0
        %3387 = vmatpush1.msra.mxu0 0.0
        %3388 = vmatprep.subr.mxu0 0.0
        %3389 = vmatpush1.msra.mxu0 0.0
        %3390 = vmatprep.subr.mxu0 0.0
        %3391 = vmatpush1.msra.mxu0 0.0
        %3392 = vmatprep.subr.mxu0 0.0
        %3393 = vmatpush1.msra.mxu0 0.0
        %3394 = vmatprep.subr.mxu0 0.0
        %3395 = vmatpush1.msra.mxu0 0.0
        %3396 = vmatprep.subr.mxu0 0.0
        %3397 = vmatpush1.msra.mxu0 0.0
        %3398 = vmatprep.subr.mxu0 0.0
        %3399 = vmatpush1.msra.mxu0 0.0
        %3400 = vmatprep.subr.mxu0 0.0
        %3401 = vmatpush1.msra.mxu0 0.0
        %3402 = vmatprep.subr.mxu0 0.0
        %3403 = vmatpush1.msra.mxu0 0.0
        %3404 = vmatprep.subr.mxu0 0.0
        %3405 = vmatpush1.msra.mxu0 0.0
        %3406 = vmatprep.subr.mxu0 0.0
        %3407 = vmatpush1.msra.mxu0 0.0
        %3408 = vmatprep.subr.mxu0 0.0
        %3409 = vmatpush1.msra.mxu0 0.0
        %3410 = vmatprep.subr.mxu0 0.0
        %3411 = vmatpush1.msra.mxu0 0.0
        %3412 = vmatprep.subr.mxu0 0.0
        %3413 = vmatpush1.msra.mxu0 0.0
        %3414 = vmatprep.subr.mxu0 0.0
        %3415 = vmatpush1.msra.mxu0 0.0
        %3416 = vmatprep.subr.mxu0 0.0
        %3417 = vmatpush1.msra.mxu0 0.0
        %3418 = vmatprep.subr.mxu0 0.0
        %3419 = vmatpush1.msra.mxu0 0.0
        %3420 = vmatprep.subr.mxu0 0.0
        %3421 = vmatpush1.msra.mxu0 0.0
        %3422 = vmatprep.subr.mxu0 0.0
        %3423 = vmatpush1.msra.mxu0 0.0
        %3424 = vmatprep.subr.mxu0 0.0
        %3425 = vmatpush1.msra.mxu0 0.0
        %3426 = vmatprep.subr.mxu0 0.0
        %3427 = vmatpush1.msra.mxu0 0.0
        %3428 = vmatprep.subr.mxu0 0.0
        %3429 = vmatpush1.msra.mxu0 0.0
        %3430 = vmatprep.mubr.f32.mxu0 0.0
        %v3431 = vand.u32 %v804, 4294901760
        %3432 = vmatmul.mubr.f32.gmra.mrb[0].mxu0 %v3431
        %v3433 = vpop.f32.mrb[0].mxu0
        %v3434 = vadd.f32 %v3359, %v3433
        %v3435 = vpop.f32.mrb[0].mxu0
        %3436 = vdwg.mxu0
        %v3437 = vld [vmem:[#allocation13] sm:$0xff]
        %v3438 = vld [vmem:[#allocation13 + $0x8] sm:$0xff]
        %v3439 = vld [vmem:[#allocation13 + $0x10] sm:$0xff]
        %v3440 = vld [vmem:[#allocation13 + $0x18] sm:$0xff]
        %3441 = vmatprep.subr.mxu0 0.0
        %v3442 = vand.u32 %v3437, 4294901760
        %3443 = vmatpush1.msra.mxu0 %v3442
        %3444 = vmatprep.subr.mxu0 0.0
        %v3445 = vand.u32 %v3438, 4294901760
        %3446 = vmatpush1.msra.mxu0 %v3445
        %3447 = vmatprep.subr.mxu0 0.0
        %v3448 = vand.u32 %v3439, 4294901760
        %3449 = vmatpush1.msra.mxu0 %v3448
        %3450 = vmatprep.subr.mxu0 0.0
        %v3451 = vand.u32 %v3440, 4294901760
        %3452 = vmatpush1.msra.mxu0 %v3451
        %3453 = vmatprep.subr.mxu0 0.0
        %3454 = vmatpush1.msra.mxu0 0.0
        %3455 = vmatprep.subr.mxu0 0.0
        %3456 = vmatpush1.msra.mxu0 0.0
        %3457 = vmatprep.subr.mxu0 0.0
        %3458 = vmatpush1.msra.mxu0 0.0
        %3459 = vmatprep.subr.mxu0 0.0
        %3460 = vmatpush1.msra.mxu0 0.0
        %3461 = vmatprep.subr.mxu0 0.0
        %3462 = vmatpush1.msra.mxu0 0.0
        %3463 = vmatprep.subr.mxu0 0.0
        %3464 = vmatpush1.msra.mxu0 0.0
        %3465 = vmatprep.subr.mxu0 0.0
        %3466 = vmatpush1.msra.mxu0 0.0
        %3467 = vmatprep.subr.mxu0 0.0
        %3468 = vmatpush1.msra.mxu0 0.0
        %3469 = vmatprep.subr.mxu0 0.0
        %3470 = vmatpush1.msra.mxu0 0.0
        %3471 = vmatprep.subr.mxu0 0.0
        %3472 = vmatpush1.msra.mxu0 0.0
        %3473 = vmatprep.subr.mxu0 0.0
        %3474 = vmatpush1.msra.mxu0 0.0
        %3475 = vmatprep.subr.mxu0 0.0
        %3476 = vmatpush1.msra.mxu0 0.0
        %3477 = vmatprep.subr.mxu0 0.0
        %3478 = vmatpush1.msra.mxu0 0.0
        %3479 = vmatprep.subr.mxu0 0.0
        %3480 = vmatpush1.msra.mxu0 0.0
        %3481 = vmatprep.subr.mxu0 0.0
        %3482 = vmatpush1.msra.mxu0 0.0
        %3483 = vmatprep.subr.mxu0 0.0
        %3484 = vmatpush1.msra.mxu0 0.0
        %3485 = vmatprep.subr.mxu0 0.0
        %3486 = vmatpush1.msra.mxu0 0.0
        %3487 = vmatprep.subr.mxu0 0.0
        %3488 = vmatpush1.msra.mxu0 0.0
        %3489 = vmatprep.subr.mxu0 0.0
        %3490 = vmatpush1.msra.mxu0 0.0
        %3491 = vmatprep.subr.mxu0 0.0
        %3492 = vmatpush1.msra.mxu0 0.0
        %3493 = vmatprep.subr.mxu0 0.0
        %3494 = vmatpush1.msra.mxu0 0.0
        %3495 = vmatprep.subr.mxu0 0.0
        %3496 = vmatpush1.msra.mxu0 0.0
        %3497 = vmatprep.subr.mxu0 0.0
        %3498 = vmatpush1.msra.mxu0 0.0
        %3499 = vmatprep.subr.mxu0 0.0
        %3500 = vmatpush1.msra.mxu0 0.0
        %3501 = vmatprep.subr.mxu0 0.0
        %3502 = vmatpush1.msra.mxu0 0.0
        %3503 = vmatprep.subr.mxu0 0.0
        %3504 = vmatpush1.msra.mxu0 0.0
        %3505 = vmatprep.subr.mxu0 0.0
        %3506 = vmatpush1.msra.mxu0 0.0
        %3507 = vmatprep.subr.mxu0 0.0
        %3508 = vmatpush1.msra.mxu0 0.0
        %3509 = vmatprep.mubr.f32.mxu0 0.0
        %v3510 = vand.u32 %v804, 4294901760
        %v3511 = vsub.f32 %v804, %v3510
        %v3512 = vand.u32 %v3511, 4294901760
        %v3513 = vsub.f32 %v3511, %v3512
        %v3514 = vand.u32 %v3513, 4294901760
        %3515 = vmatmul.mubr.f32.gmra.mrb[0].mxu0 %v3514
        %v3516 = vpop.f32.mrb[0].mxu0
        %v3517 = vadd.f32 0.0, %v3516
        %v3518 = vpop.f32.mrb[0].mxu0
        %3519 = vdwg.mxu0
        %3520 = vmatprep.subr.mxu0 0.0
        %v3521 = vand.u32 %v3437, 4294901760
        %v3522 = vsub.f32 %v3437, %v3521
        %v3523 = vand.u32 %v3522, 4294901760
        %v3524 = vsub.f32 %v3522, %v3523
        %v3525 = vand.u32 %v3524, 4294901760
        %3526 = vmatpush1.msra.mxu0 %v3525
        %3527 = vmatprep.subr.mxu0 0.0
        %v3528 = vand.u32 %v3438, 4294901760
        %v3529 = vsub.f32 %v3438, %v3528
        %v3530 = vand.u32 %v3529, 4294901760
        %v3531 = vsub.f32 %v3529, %v3530
        %v3532 = vand.u32 %v3531, 4294901760
        %3533 = vmatpush1.msra.mxu0 %v3532
        %3534 = vmatprep.subr.mxu0 0.0
        %v3535 = vand.u32 %v3439, 4294901760
        %v3536 = vsub.f32 %v3439, %v3535
        %v3537 = vand.u32 %v3536, 4294901760
        %v3538 = vsub.f32 %v3536, %v3537
        %v3539 = vand.u32 %v3538, 4294901760
        %3540 = vmatpush1.msra.mxu0 %v3539
        %3541 = vmatprep.subr.mxu0 0.0
        %v3542 = vand.u32 %v3440, 4294901760
        %v3543 = vsub.f32 %v3440, %v3542
        %v3544 = vand.u32 %v3543, 4294901760
        %v3545 = vsub.f32 %v3543, %v3544
        %v3546 = vand.u32 %v3545, 4294901760
        %3547 = vmatpush1.msra.mxu0 %v3546
        %3548 = vmatprep.subr.mxu0 0.0
        %3549 = vmatpush1.msra.mxu0 0.0
        %3550 = vmatprep.subr.mxu0 0.0
        %3551 = vmatpush1.msra.mxu0 0.0
        %3552 = vmatprep.subr.mxu0 0.0
        %3553 = vmatpush1.msra.mxu0 0.0
        %3554 = vmatprep.subr.mxu0 0.0
        %3555 = vmatpush1.msra.mxu0 0.0
        %3556 = vmatprep.subr.mxu0 0.0
        %3557 = vmatpush1.msra.mxu0 0.0
        %3558 = vmatprep.subr.mxu0 0.0
        %3559 = vmatpush1.msra.mxu0 0.0
        %3560 = vmatprep.subr.mxu0 0.0
        %3561 = vmatpush1.msra.mxu0 0.0
        %3562 = vmatprep.subr.mxu0 0.0
        %3563 = vmatpush1.msra.mxu0 0.0
        %3564 = vmatprep.subr.mxu0 0.0
        %3565 = vmatpush1.msra.mxu0 0.0
        %3566 = vmatprep.subr.mxu0 0.0
        %3567 = vmatpush1.msra.mxu0 0.0
        %3568 = vmatprep.subr.mxu0 0.0
        %3569 = vmatpush1.msra.mxu0 0.0
        %3570 = vmatprep.subr.mxu0 0.0
        %3571 = vmatpush1.msra.mxu0 0.0
        %3572 = vmatprep.subr.mxu0 0.0
        %3573 = vmatpush1.msra.mxu0 0.0
        %3574 = vmatprep.subr.mxu0 0.0
        %3575 = vmatpush1.msra.mxu0 0.0
        %3576 = vmatprep.subr.mxu0 0.0
        %3577 = vmatpush1.msra.mxu0 0.0
        %3578 = vmatprep.subr.mxu0 0.0
        %3579 = vmatpush1.msra.mxu0 0.0
        %3580 = vmatprep.subr.mxu0 0.0
        %3581 = vmatpush1.msra.mxu0 0.0
        %3582 = vmatprep.subr.mxu0 0.0
        %3583 = vmatpush1.msra.mxu0 0.0
        %3584 = vmatprep.subr.mxu0 0.0
        %3585 = vmatpush1.msra.mxu0 0.0
        %3586 = vmatprep.subr.mxu0 0.0
        %3587 = vmatpush1.msra.mxu0 0.0
        %3588 = vmatprep.subr.mxu0 0.0
        %3589 = vmatpush1.msra.mxu0 0.0
        %3590 = vmatprep.subr.mxu0 0.0
        %3591 = vmatpush1.msra.mxu0 0.0
        %3592 = vmatprep.subr.mxu0 0.0
        %3593 = vmatpush1.msra.mxu0 0.0
        %3594 = vmatprep.subr.mxu0 0.0
        %3595 = vmatpush1.msra.mxu0 0.0
        %3596 = vmatprep.subr.mxu0 0.0
        %3597 = vmatpush1.msra.mxu0 0.0
        %3598 = vmatprep.subr.mxu0 0.0
        %3599 = vmatpush1.msra.mxu0 0.0
        %3600 = vmatprep.subr.mxu0 0.0
        %3601 = vmatpush1.msra.mxu0 0.0
        %3602 = vmatprep.subr.mxu0 0.0
        %3603 = vmatpush1.msra.mxu0 0.0
        %3604 = vmatprep.mubr.f32.mxu0 0.0
        %v3605 = vand.u32 %v804, 4294901760
        %3606 = vmatmul.mubr.f32.gmra.mrb[0].mxu0 %v3605
        %v3607 = vpop.f32.mrb[0].mxu0
        %v3608 = vadd.f32 %v3517, %v3607
        %v3609 = vpop.f32.mrb[0].mxu0
        %3610 = vdwg.mxu0
        %3611 = vmatprep.subr.mxu0 0.0
        %v3612 = vand.u32 %v3437, 4294901760
        %v3613 = vsub.f32 %v3437, %v3612
        %3614 = vmatpush1.msra.mxu0 %v3613
        %3615 = vmatprep.subr.mxu0 0.0
        %v3616 = vand.u32 %v3438, 4294901760
        %v3617 = vsub.f32 %v3438, %v3616
        %3618 = vmatpush1.msra.mxu0 %v3617
        %3619 = vmatprep.subr.mxu0 0.0
        %v3620 = vand.u32 %v3439, 4294901760
        %v3621 = vsub.f32 %v3439, %v3620
        %3622 = vmatpush1.msra.mxu0 %v3621
        %3623 = vmatprep.subr.mxu0 0.0
        %v3624 = vand.u32 %v3440, 4294901760
        %v3625 = vsub.f32 %v3440, %v3624
        %3626 = vmatpush1.msra.mxu0 %v3625
        %3627 = vmatprep.subr.mxu0 0.0
        %3628 = vmatpush1.msra.mxu0 0.0
        %3629 = vmatprep.subr.mxu0 0.0
        %3630 = vmatpush1.msra.mxu0 0.0
        %3631 = vmatprep.subr.mxu0 0.0
        %3632 = vmatpush1.msra.mxu0 0.0
        %3633 = vmatprep.subr.mxu0 0.0
        %3634 = vmatpush1.msra.mxu0 0.0
        %3635 = vmatprep.subr.mxu0 0.0
        %3636 = vmatpush1.msra.mxu0 0.0
        %3637 = vmatprep.subr.mxu0 0.0
        %3638 = vmatpush1.msra.mxu0 0.0
        %3639 = vmatprep.subr.mxu0 0.0
        %3640 = vmatpush1.msra.mxu0 0.0
        %3641 = vmatprep.subr.mxu0 0.0
        %3642 = vmatpush1.msra.mxu0 0.0
        %3643 = vmatprep.subr.mxu0 0.0
        %3644 = vmatpush1.msra.mxu0 0.0
        %3645 = vmatprep.subr.mxu0 0.0
        %3646 = vmatpush1.msra.mxu0 0.0
        %3647 = vmatprep.subr.mxu0 0.0
        %3648 = vmatpush1.msra.mxu0 0.0
        %3649 = vmatprep.subr.mxu0 0.0
        %3650 = vmatpush1.msra.mxu0 0.0
        %3651 = vmatprep.subr.mxu0 0.0
        %3652 = vmatpush1.msra.mxu0 0.0
        %3653 = vmatprep.subr.mxu0 0.0
        %3654 = vmatpush1.msra.mxu0 0.0
        %3655 = vmatprep.subr.mxu0 0.0
        %3656 = vmatpush1.msra.mxu0 0.0
        %3657 = vmatprep.subr.mxu0 0.0
        %3658 = vmatpush1.msra.mxu0 0.0
        %3659 = vmatprep.subr.mxu0 0.0
        %3660 = vmatpush1.msra.mxu0 0.0
        %3661 = vmatprep.subr.mxu0 0.0
        %3662 = vmatpush1.msra.mxu0 0.0
        %3663 = vmatprep.subr.mxu0 0.0
        %3664 = vmatpush1.msra.mxu0 0.0
        %3665 = vmatprep.subr.mxu0 0.0
        %3666 = vmatpush1.msra.mxu0 0.0
        %3667 = vmatprep.subr.mxu0 0.0
        %3668 = vmatpush1.msra.mxu0 0.0
        %3669 = vmatprep.subr.mxu0 0.0
        %3670 = vmatpush1.msra.mxu0 0.0
        %3671 = vmatprep.subr.mxu0 0.0
        %3672 = vmatpush1.msra.mxu0 0.0
        %3673 = vmatprep.subr.mxu0 0.0
        %3674 = vmatpush1.msra.mxu0 0.0
        %3675 = vmatprep.subr.mxu0 0.0
        %3676 = vmatpush1.msra.mxu0 0.0
        %3677 = vmatprep.subr.mxu0 0.0
        %3678 = vmatpush1.msra.mxu0 0.0
        %3679 = vmatprep.subr.mxu0 0.0
        %3680 = vmatpush1.msra.mxu0 0.0
        %3681 = vmatprep.subr.mxu0 0.0
        %3682 = vmatpush1.msra.mxu0 0.0
        %3683 = vmatprep.mubr.f32.mxu0 0.0
        %v3684 = vand.u32 %v804, 4294901760
        %v3685 = vsub.f32 %v804, %v3684
        %3686 = vmatmul.mubr.f32.gmra.mrb[0].mxu0 %v3685
        %v3687 = vpop.f32.mrb[0].mxu0
        %v3688 = vadd.f32 %v3608, %v3687
        %v3689 = vpop.f32.mrb[0].mxu0
        %3690 = vdwg.mxu0
        %3691 = vmatprep.subr.mxu0 0.0
        %v3692 = vand.u32 %v3437, 4294901760
        %3693 = vmatpush1.msra.mxu0 %v3692
        %3694 = vmatprep.subr.mxu0 0.0
        %v3695 = vand.u32 %v3438, 4294901760
        %3696 = vmatpush1.msra.mxu0 %v3695
        %3697 = vmatprep.subr.mxu0 0.0
        %v3698 = vand.u32 %v3439, 4294901760
        %3699 = vmatpush1.msra.mxu0 %v3698
        %3700 = vmatprep.subr.mxu0 0.0
        %v3701 = vand.u32 %v3440, 4294901760
        %3702 = vmatpush1.msra.mxu0 %v3701
        %3703 = vmatprep.subr.mxu0 0.0
        %3704 = vmatpush1.msra.mxu0 0.0
        %3705 = vmatprep.subr.mxu0 0.0
        %3706 = vmatpush1.msra.mxu0 0.0
        %3707 = vmatprep.subr.mxu0 0.0
        %3708 = vmatpush1.msra.mxu0 0.0
        %3709 = vmatprep.subr.mxu0 0.0
        %3710 = vmatpush1.msra.mxu0 0.0
        %3711 = vmatprep.subr.mxu0 0.0
        %3712 = vmatpush1.msra.mxu0 0.0
        %3713 = vmatprep.subr.mxu0 0.0
        %3714 = vmatpush1.msra.mxu0 0.0
        %3715 = vmatprep.subr.mxu0 0.0
        %3716 = vmatpush1.msra.mxu0 0.0
        %3717 = vmatprep.subr.mxu0 0.0
        %3718 = vmatpush1.msra.mxu0 0.0
        %3719 = vmatprep.subr.mxu0 0.0
        %3720 = vmatpush1.msra.mxu0 0.0
        %3721 = vmatprep.subr.mxu0 0.0
        %3722 = vmatpush1.msra.mxu0 0.0
        %3723 = vmatprep.subr.mxu0 0.0
        %3724 = vmatpush1.msra.mxu0 0.0
        %3725 = vmatprep.subr.mxu0 0.0
        %3726 = vmatpush1.msra.mxu0 0.0
        %3727 = vmatprep.subr.mxu0 0.0
        %3728 = vmatpush1.msra.mxu0 0.0
        %3729 = vmatprep.subr.mxu0 0.0
        %3730 = vmatpush1.msra.mxu0 0.0
        %3731 = vmatprep.subr.mxu0 0.0
        %3732 = vmatpush1.msra.mxu0 0.0
        %3733 = vmatprep.subr.mxu0 0.0
        %3734 = vmatpush1.msra.mxu0 0.0
        %3735 = vmatprep.subr.mxu0 0.0
        %3736 = vmatpush1.msra.mxu0 0.0
        %3737 = vmatprep.subr.mxu0 0.0
        %3738 = vmatpush1.msra.mxu0 0.0
        %3739 = vmatprep.subr.mxu0 0.0
        %3740 = vmatpush1.msra.mxu0 0.0
        %3741 = vmatprep.subr.mxu0 0.0
        %3742 = vmatpush1.msra.mxu0 0.0
        %3743 = vmatprep.subr.mxu0 0.0
        %3744 = vmatpush1.msra.mxu0 0.0
        %3745 = vmatprep.subr.mxu0 0.0
        %3746 = vmatpush1.msra.mxu0 0.0
        %3747 = vmatprep.subr.mxu0 0.0
        %3748 = vmatpush1.msra.mxu0 0.0
        %3749 = vmatprep.subr.mxu0 0.0
        %3750 = vmatpush1.msra.mxu0 0.0
        %3751 = vmatprep.subr.mxu0 0.0
        %3752 = vmatpush1.msra.mxu0 0.0
        %3753 = vmatprep.subr.mxu0 0.0
        %3754 = vmatpush1.msra.mxu0 0.0
        %3755 = vmatprep.subr.mxu0 0.0
        %3756 = vmatpush1.msra.mxu0 0.0
        %3757 = vmatprep.subr.mxu0 0.0
        %3758 = vmatpush1.msra.mxu0 0.0
        %3759 = vmatprep.mubr.f32.mxu0 0.0
        %v3760 = vand.u32 %v804, 4294901760
        %v3761 = vsub.f32 %v804, %v3760
        %v3762 = vand.u32 %v3761, 4294901760
        %3763 = vmatmul.mubr.f32.gmra.mrb[0].mxu0 %v3762
        %v3764 = vpop.f32.mrb[0].mxu0
        %v3765 = vadd.f32 %v3688, %v3764
        %v3766 = vpop.f32.mrb[0].mxu0
        %3767 = vdwg.mxu0
        %3768 = vmatprep.subr.mxu0 0.0
        %v3769 = vand.u32 %v3437, 4294901760
        %v3770 = vsub.f32 %v3437, %v3769
        %v3771 = vand.u32 %v3770, 4294901760
        %3772 = vmatpush1.msra.mxu0 %v3771
        %3773 = vmatprep.subr.mxu0 0.0
        %v3774 = vand.u32 %v3438, 4294901760
        %v3775 = vsub.f32 %v3438, %v3774
        %v3776 = vand.u32 %v3775, 4294901760
        %3777 = vmatpush1.msra.mxu0 %v3776
        %3778 = vmatprep.subr.mxu0 0.0
        %v3779 = vand.u32 %v3439, 4294901760
        %v3780 = vsub.f32 %v3439, %v3779
        %v3781 = vand.u32 %v3780, 4294901760
        %3782 = vmatpush1.msra.mxu0 %v3781
        %3783 = vmatprep.subr.mxu0 0.0
        %v3784 = vand.u32 %v3440, 4294901760
        %v3785 = vsub.f32 %v3440, %v3784
        %v3786 = vand.u32 %v3785, 4294901760
        %3787 = vmatpush1.msra.mxu0 %v3786
        %3788 = vmatprep.subr.mxu0 0.0
        %3789 = vmatpush1.msra.mxu0 0.0
        %3790 = vmatprep.subr.mxu0 0.0
        %3791 = vmatpush1.msra.mxu0 0.0
        %3792 = vmatprep.subr.mxu0 0.0
        %3793 = vmatpush1.msra.mxu0 0.0
        %3794 = vmatprep.subr.mxu0 0.0
        %3795 = vmatpush1.msra.mxu0 0.0
        %3796 = vmatprep.subr.mxu0 0.0
        %3797 = vmatpush1.msra.mxu0 0.0
        %3798 = vmatprep.subr.mxu0 0.0
        %3799 = vmatpush1.msra.mxu0 0.0
        %3800 = vmatprep.subr.mxu0 0.0
        %3801 = vmatpush1.msra.mxu0 0.0
        %3802 = vmatprep.subr.mxu0 0.0
        %3803 = vmatpush1.msra.mxu0 0.0
        %3804 = vmatprep.subr.mxu0 0.0
        %3805 = vmatpush1.msra.mxu0 0.0
        %3806 = vmatprep.subr.mxu0 0.0
        %3807 = vmatpush1.msra.mxu0 0.0
        %3808 = vmatprep.subr.mxu0 0.0
        %3809 = vmatpush1.msra.mxu0 0.0
        %3810 = vmatprep.subr.mxu0 0.0
        %3811 = vmatpush1.msra.mxu0 0.0
        %3812 = vmatprep.subr.mxu0 0.0
        %3813 = vmatpush1.msra.mxu0 0.0
        %3814 = vmatprep.subr.mxu0 0.0
        %3815 = vmatpush1.msra.mxu0 0.0
        %3816 = vmatprep.subr.mxu0 0.0
        %3817 = vmatpush1.msra.mxu0 0.0
        %3818 = vmatprep.subr.mxu0 0.0
        %3819 = vmatpush1.msra.mxu0 0.0
        %3820 = vmatprep.subr.mxu0 0.0
        %3821 = vmatpush1.msra.mxu0 0.0
        %3822 = vmatprep.subr.mxu0 0.0
        %3823 = vmatpush1.msra.mxu0 0.0
        %3824 = vmatprep.subr.mxu0 0.0
        %3825 = vmatpush1.msra.mxu0 0.0
        %3826 = vmatprep.subr.mxu0 0.0
        %3827 = vmatpush1.msra.mxu0 0.0
        %3828 = vmatprep.subr.mxu0 0.0
        %3829 = vmatpush1.msra.mxu0 0.0
        %3830 = vmatprep.subr.mxu0 0.0
        %3831 = vmatpush1.msra.mxu0 0.0
        %3832 = vmatprep.subr.mxu0 0.0
        %3833 = vmatpush1.msra.mxu0 0.0
        %3834 = vmatprep.subr.mxu0 0.0
        %3835 = vmatpush1.msra.mxu0 0.0
        %3836 = vmatprep.subr.mxu0 0.0
        %3837 = vmatpush1.msra.mxu0 0.0
        %3838 = vmatprep.subr.mxu0 0.0
        %3839 = vmatpush1.msra.mxu0 0.0
        %3840 = vmatprep.subr.mxu0 0.0
        %3841 = vmatpush1.msra.mxu0 0.0
        %3842 = vmatprep.subr.mxu0 0.0
        %3843 = vmatpush1.msra.mxu0 0.0
        %3844 = vmatprep.mubr.f32.mxu0 0.0
        %v3845 = vand.u32 %v804, 4294901760
        %3846 = vmatmul.mubr.f32.gmra.mrb[0].mxu0 %v3845
        %v3847 = vpop.f32.mrb[0].mxu0
        %v3848 = vadd.f32 %v3765, %v3847
        %v3849 = vpop.f32.mrb[0].mxu0
        %3850 = vdwg.mxu0
        %3851 = vmatprep.subr.mxu0 0.0
        %v3852 = vand.u32 %v3437, 4294901760
        %3853 = vmatpush1.msra.mxu0 %v3852
        %3854 = vmatprep.subr.mxu0 0.0
        %v3855 = vand.u32 %v3438, 4294901760
        %3856 = vmatpush1.msra.mxu0 %v3855
        %3857 = vmatprep.subr.mxu0 0.0
        %v3858 = vand.u32 %v3439, 4294901760
        %3859 = vmatpush1.msra.mxu0 %v3858
        %3860 = vmatprep.subr.mxu0 0.0
        %v3861 = vand.u32 %v3440, 4294901760
        %3862 = vmatpush1.msra.mxu0 %v3861
        %3863 = vmatprep.subr.mxu0 0.0
        %3864 = vmatpush1.msra.mxu0 0.0
        %3865 = vmatprep.subr.mxu0 0.0
        %3866 = vmatpush1.msra.mxu0 0.0
        %3867 = vmatprep.subr.mxu0 0.0
        %3868 = vmatpush1.msra.mxu0 0.0
        %3869 = vmatprep.subr.mxu0 0.0
        %3870 = vmatpush1.msra.mxu0 0.0
        %3871 = vmatprep.subr.mxu0 0.0
        %3872 = vmatpush1.msra.mxu0 0.0
        %3873 = vmatprep.subr.mxu0 0.0
        %3874 = vmatpush1.msra.mxu0 0.0
        %3875 = vmatprep.subr.mxu0 0.0
        %3876 = vmatpush1.msra.mxu0 0.0
        %3877 = vmatprep.subr.mxu0 0.0
        %3878 = vmatpush1.msra.mxu0 0.0
        %3879 = vmatprep.subr.mxu0 0.0
        %3880 = vmatpush1.msra.mxu0 0.0
        %3881 = vmatprep.subr.mxu0 0.0
        %3882 = vmatpush1.msra.mxu0 0.0
        %3883 = vmatprep.subr.mxu0 0.0
        %3884 = vmatpush1.msra.mxu0 0.0
        %3885 = vmatprep.subr.mxu0 0.0
        %3886 = vmatpush1.msra.mxu0 0.0
        %3887 = vmatprep.subr.mxu0 0.0
        %3888 = vmatpush1.msra.mxu0 0.0
        %3889 = vmatprep.subr.mxu0 0.0
        %3890 = vmatpush1.msra.mxu0 0.0
        %3891 = vmatprep.subr.mxu0 0.0
        %3892 = vmatpush1.msra.mxu0 0.0
        %3893 = vmatprep.subr.mxu0 0.0
        %3894 = vmatpush1.msra.mxu0 0.0
        %3895 = vmatprep.subr.mxu0 0.0
        %3896 = vmatpush1.msra.mxu0 0.0
        %3897 = vmatprep.subr.mxu0 0.0
        %3898 = vmatpush1.msra.mxu0 0.0
        %3899 = vmatprep.subr.mxu0 0.0
        %3900 = vmatpush1.msra.mxu0 0.0
        %3901 = vmatprep.subr.mxu0 0.0
        %3902 = vmatpush1.msra.mxu0 0.0
        %3903 = vmatprep.subr.mxu0 0.0
        %3904 = vmatpush1.msra.mxu0 0.0
        %3905 = vmatprep.subr.mxu0 0.0
        %3906 = vmatpush1.msra.mxu0 0.0
        %3907 = vmatprep.subr.mxu0 0.0
        %3908 = vmatpush1.msra.mxu0 0.0
        %3909 = vmatprep.subr.mxu0 0.0
        %3910 = vmatpush1.msra.mxu0 0.0
        %3911 = vmatprep.subr.mxu0 0.0
        %3912 = vmatpush1.msra.mxu0 0.0
        %3913 = vmatprep.subr.mxu0 0.0
        %3914 = vmatpush1.msra.mxu0 0.0
        %3915 = vmatprep.subr.mxu0 0.0
        %3916 = vmatpush1.msra.mxu0 0.0
        %3917 = vmatprep.subr.mxu0 0.0
        %3918 = vmatpush1.msra.mxu0 0.0
        %3919 = vmatprep.mubr.f32.mxu0 0.0
        %v3920 = vand.u32 %v804, 4294901760
        %3921 = vmatmul.mubr.f32.gmra.mrb[0].mxu0 %v3920
        %v3922 = vpop.f32.mrb[0].mxu0
        %v3923 = vadd.f32 %v3848, %v3922
        %v3924 = vpop.f32.mrb[0].mxu0
        %3925 = vdwg.mxu0
        %v3926 = vld [vmem:[#allocation14] sm:$0xff]
        %v3927 = vld [vmem:[#allocation14 + $0x8] sm:$0xff]
        %v3928 = vld [vmem:[#allocation14 + $0x10] sm:$0xff]
        %v3929 = vld [vmem:[#allocation14 + $0x18] sm:$0xff]
        %3930 = vmatprep.subr.mxu0 0.0
        %v3931 = vand.u32 %v3926, 4294901760
        %3932 = vmatpush1.msra.mxu0 %v3931
        %3933 = vmatprep.subr.mxu0 0.0
        %v3934 = vand.u32 %v3927, 4294901760
        %3935 = vmatpush1.msra.mxu0 %v3934
        %3936 = vmatprep.subr.mxu0 0.0
        %v3937 = vand.u32 %v3928, 4294901760
        %3938 = vmatpush1.msra.mxu0 %v3937
        %3939 = vmatprep.subr.mxu0 0.0
        %v3940 = vand.u32 %v3929, 4294901760
        %3941 = vmatpush1.msra.mxu0 %v3940
        %3942 = vmatprep.subr.mxu0 0.0
        %3943 = vmatpush1.msra.mxu0 0.0
        %3944 = vmatprep.subr.mxu0 0.0
        %3945 = vmatpush1.msra.mxu0 0.0
        %3946 = vmatprep.subr.mxu0 0.0
        %3947 = vmatpush1.msra.mxu0 0.0
        %3948 = vmatprep.subr.mxu0 0.0
        %3949 = vmatpush1.msra.mxu0 0.0
        %3950 = vmatprep.subr.mxu0 0.0
        %3951 = vmatpush1.msra.mxu0 0.0
        %3952 = vmatprep.subr.mxu0 0.0
        %3953 = vmatpush1.msra.mxu0 0.0
        %3954 = vmatprep.subr.mxu0 0.0
        %3955 = vmatpush1.msra.mxu0 0.0
        %3956 = vmatprep.subr.mxu0 0.0
        %3957 = vmatpush1.msra.mxu0 0.0
        %3958 = vmatprep.subr.mxu0 0.0
        %3959 = vmatpush1.msra.mxu0 0.0
        %3960 = vmatprep.subr.mxu0 0.0
        %3961 = vmatpush1.msra.mxu0 0.0
        %3962 = vmatprep.subr.mxu0 0.0
        %3963 = vmatpush1.msra.mxu0 0.0
        %3964 = vmatprep.subr.mxu0 0.0
        %3965 = vmatpush1.msra.mxu0 0.0
        %3966 = vmatprep.subr.mxu0 0.0
        %3967 = vmatpush1.msra.mxu0 0.0
        %3968 = vmatprep.subr.mxu0 0.0
        %3969 = vmatpush1.msra.mxu0 0.0
        %3970 = vmatprep.subr.mxu0 0.0
        %3971 = vmatpush1.msra.mxu0 0.0
        %3972 = vmatprep.subr.mxu0 0.0
        %3973 = vmatpush1.msra.mxu0 0.0
        %3974 = vmatprep.subr.mxu0 0.0
        %3975 = vmatpush1.msra.mxu0 0.0
        %3976 = vmatprep.subr.mxu0 0.0
        %3977 = vmatpush1.msra.mxu0 0.0
        %3978 = vmatprep.subr.mxu0 0.0
        %3979 = vmatpush1.msra.mxu0 0.0
        %3980 = vmatprep.subr.mxu0 0.0
        %3981 = vmatpush1.msra.mxu0 0.0
        %3982 = vmatprep.subr.mxu0 0.0
        %3983 = vmatpush1.msra.mxu0 0.0
        %3984 = vmatprep.subr.mxu0 0.0
        %3985 = vmatpush1.msra.mxu0 0.0
        %3986 = vmatprep.subr.mxu0 0.0
        %3987 = vmatpush1.msra.mxu0 0.0
        %3988 = vmatprep.subr.mxu0 0.0
        %3989 = vmatpush1.msra.mxu0 0.0
        %3990 = vmatprep.subr.mxu0 0.0
        %3991 = vmatpush1.msra.mxu0 0.0
        %3992 = vmatprep.subr.mxu0 0.0
        %3993 = vmatpush1.msra.mxu0 0.0
        %3994 = vmatprep.subr.mxu0 0.0
        %3995 = vmatpush1.msra.mxu0 0.0
        %3996 = vmatprep.subr.mxu0 0.0
        %3997 = vmatpush1.msra.mxu0 0.0
        %3998 = vmatprep.mubr.f32.mxu0 0.0
        %v3999 = vand.u32 %v804, 4294901760
        %v4000 = vsub.f32 %v804, %v3999
        %v4001 = vand.u32 %v4000, 4294901760
        %v4002 = vsub.f32 %v4000, %v4001
        %v4003 = vand.u32 %v4002, 4294901760
        %4004 = vmatmul.mubr.f32.gmra.mrb[0].mxu0 %v4003
        %v4005 = vpop.f32.mrb[0].mxu0
        %v4006 = vadd.f32 0.0, %v4005
        %v4007 = vpop.f32.mrb[0].mxu0
        %4008 = vdwg.mxu0
        %4009 = vmatprep.subr.mxu0 0.0
        %v4010 = vand.u32 %v3926, 4294901760
        %v4011 = vsub.f32 %v3926, %v4010
        %v4012 = vand.u32 %v4011, 4294901760
        %v4013 = vsub.f32 %v4011, %v4012
        %v4014 = vand.u32 %v4013, 4294901760
        %4015 = vmatpush1.msra.mxu0 %v4014
        %4016 = vmatprep.subr.mxu0 0.0
        %v4017 = vand.u32 %v3927, 4294901760
        %v4018 = vsub.f32 %v3927, %v4017
        %v4019 = vand.u32 %v4018, 4294901760
        %v4020 = vsub.f32 %v4018, %v4019
        %v4021 = vand.u32 %v4020, 4294901760
        %4022 = vmatpush1.msra.mxu0 %v4021
        %4023 = vmatprep.subr.mxu0 0.0
        %v4024 = vand.u32 %v3928, 4294901760
        %v4025 = vsub.f32 %v3928, %v4024
        %v4026 = vand.u32 %v4025, 4294901760
        %v4027 = vsub.f32 %v4025, %v4026
        %v4028 = vand.u32 %v4027, 4294901760
        %4029 = vmatpush1.msra.mxu0 %v4028
        %4030 = vmatprep.subr.mxu0 0.0
        %v4031 = vand.u32 %v3929, 4294901760
        %v4032 = vsub.f32 %v3929, %v4031
        %v4033 = vand.u32 %v4032, 4294901760
        %v4034 = vsub.f32 %v4032, %v4033
        %v4035 = vand.u32 %v4034, 4294901760
        %4036 = vmatpush1.msra.mxu0 %v4035
        %4037 = vmatprep.subr.mxu0 0.0
        %4038 = vmatpush1.msra.mxu0 0.0
        %4039 = vmatprep.subr.mxu0 0.0
        %4040 = vmatpush1.msra.mxu0 0.0
        %4041 = vmatprep.subr.mxu0 0.0
        %4042 = vmatpush1.msra.mxu0 0.0
        %4043 = vmatprep.subr.mxu0 0.0
        %4044 = vmatpush1.msra.mxu0 0.0
        %4045 = vmatprep.subr.mxu0 0.0
        %4046 = vmatpush1.msra.mxu0 0.0
        %4047 = vmatprep.subr.mxu0 0.0
        %4048 = vmatpush1.msra.mxu0 0.0
        %4049 = vmatprep.subr.mxu0 0.0
        %4050 = vmatpush1.msra.mxu0 0.0
        %4051 = vmatprep.subr.mxu0 0.0
        %4052 = vmatpush1.msra.mxu0 0.0
        %4053 = vmatprep.subr.mxu0 0.0
        %4054 = vmatpush1.msra.mxu0 0.0
        %4055 = vmatprep.subr.mxu0 0.0
        %4056 = vmatpush1.msra.mxu0 0.0
        %4057 = vmatprep.subr.mxu0 0.0
        %4058 = vmatpush1.msra.mxu0 0.0
        %4059 = vmatprep.subr.mxu0 0.0
        %4060 = vmatpush1.msra.mxu0 0.0
        %4061 = vmatprep.subr.mxu0 0.0
        %4062 = vmatpush1.msra.mxu0 0.0
        %4063 = vmatprep.subr.mxu0 0.0
        %4064 = vmatpush1.msra.mxu0 0.0
        %4065 = vmatprep.subr.mxu0 0.0
        %4066 = vmatpush1.msra.mxu0 0.0
        %4067 = vmatprep.subr.mxu0 0.0
        %4068 = vmatpush1.msra.mxu0 0.0
        %4069 = vmatprep.subr.mxu0 0.0
        %4070 = vmatpush1.msra.mxu0 0.0
        %4071 = vmatprep.subr.mxu0 0.0
        %4072 = vmatpush1.msra.mxu0 0.0
        %4073 = vmatprep.subr.mxu0 0.0
        %4074 = vmatpush1.msra.mxu0 0.0
        %4075 = vmatprep.subr.mxu0 0.0
        %4076 = vmatpush1.msra.mxu0 0.0
        %4077 = vmatprep.subr.mxu0 0.0
        %4078 = vmatpush1.msra.mxu0 0.0
        %4079 = vmatprep.subr.mxu0 0.0
        %4080 = vmatpush1.msra.mxu0 0.0
        %4081 = vmatprep.subr.mxu0 0.0
        %4082 = vmatpush1.msra.mxu0 0.0
        %4083 = vmatprep.subr.mxu0 0.0
        %4084 = vmatpush1.msra.mxu0 0.0
        %4085 = vmatprep.subr.mxu0 0.0
        %4086 = vmatpush1.msra.mxu0 0.0
        %4087 = vmatprep.subr.mxu0 0.0
        %4088 = vmatpush1.msra.mxu0 0.0
        %4089 = vmatprep.subr.mxu0 0.0
        %4090 = vmatpush1.msra.mxu0 0.0
        %4091 = vmatprep.subr.mxu0 0.0
        %4092 = vmatpush1.msra.mxu0 0.0
        %4093 = vmatprep.mubr.f32.mxu0 0.0
        %v4094 = vand.u32 %v804, 4294901760
        %4095 = vmatmul.mubr.f32.gmra.mrb[0].mxu0 %v4094
        %v4096 = vpop.f32.mrb[0].mxu0
        %v4097 = vadd.f32 %v4006, %v4096
        %v4098 = vpop.f32.mrb[0].mxu0
        %4099 = vdwg.mxu0
        %4100 = vmatprep.subr.mxu0 0.0
        %v4101 = vand.u32 %v3926, 4294901760
        %v4102 = vsub.f32 %v3926, %v4101
        %4103 = vmatpush1.msra.mxu0 %v4102
        %4104 = vmatprep.subr.mxu0 0.0
        %v4105 = vand.u32 %v3927, 4294901760
        %v4106 = vsub.f32 %v3927, %v4105
        %4107 = vmatpush1.msra.mxu0 %v4106
        %4108 = vmatprep.subr.mxu0 0.0
        %v4109 = vand.u32 %v3928, 4294901760
        %v4110 = vsub.f32 %v3928, %v4109
        %4111 = vmatpush1.msra.mxu0 %v4110
        %4112 = vmatprep.subr.mxu0 0.0
        %v4113 = vand.u32 %v3929, 4294901760
        %v4114 = vsub.f32 %v3929, %v4113
        %4115 = vmatpush1.msra.mxu0 %v4114
        %4116 = vmatprep.subr.mxu0 0.0
        %4117 = vmatpush1.msra.mxu0 0.0
        %4118 = vmatprep.subr.mxu0 0.0
        %4119 = vmatpush1.msra.mxu0 0.0
        %4120 = vmatprep.subr.mxu0 0.0
        %4121 = vmatpush1.msra.mxu0 0.0
        %4122 = vmatprep.subr.mxu0 0.0
        %4123 = vmatpush1.msra.mxu0 0.0
        %4124 = vmatprep.subr.mxu0 0.0
        %4125 = vmatpush1.msra.mxu0 0.0
        %4126 = vmatprep.subr.mxu0 0.0
        %4127 = vmatpush1.msra.mxu0 0.0
        %4128 = vmatprep.subr.mxu0 0.0
        %4129 = vmatpush1.msra.mxu0 0.0
        %4130 = vmatprep.subr.mxu0 0.0
        %4131 = vmatpush1.msra.mxu0 0.0
        %4132 = vmatprep.subr.mxu0 0.0
        %4133 = vmatpush1.msra.mxu0 0.0
        %4134 = vmatprep.subr.mxu0 0.0
        %4135 = vmatpush1.msra.mxu0 0.0
        %4136 = vmatprep.subr.mxu0 0.0
        %4137 = vmatpush1.msra.mxu0 0.0
        %4138 = vmatprep.subr.mxu0 0.0
        %4139 = vmatpush1.msra.mxu0 0.0
        %4140 = vmatprep.subr.mxu0 0.0
        %4141 = vmatpush1.msra.mxu0 0.0
        %4142 = vmatprep.subr.mxu0 0.0
        %4143 = vmatpush1.msra.mxu0 0.0
        %4144 = vmatprep.subr.mxu0 0.0
        %4145 = vmatpush1.msra.mxu0 0.0
        %4146 = vmatprep.subr.mxu0 0.0
        %4147 = vmatpush1.msra.mxu0 0.0
        %4148 = vmatprep.subr.mxu0 0.0
        %4149 = vmatpush1.msra.mxu0 0.0
        %4150 = vmatprep.subr.mxu0 0.0
        %4151 = vmatpush1.msra.mxu0 0.0
        %4152 = vmatprep.subr.mxu0 0.0
        %4153 = vmatpush1.msra.mxu0 0.0
        %4154 = vmatprep.subr.mxu0 0.0
        %4155 = vmatpush1.msra.mxu0 0.0
        %4156 = vmatprep.subr.mxu0 0.0
        %4157 = vmatpush1.msra.mxu0 0.0
        %4158 = vmatprep.subr.mxu0 0.0
        %4159 = vmatpush1.msra.mxu0 0.0
        %4160 = vmatprep.subr.mxu0 0.0
        %4161 = vmatpush1.msra.mxu0 0.0
        %4162 = vmatprep.subr.mxu0 0.0
        %4163 = vmatpush1.msra.mxu0 0.0
        %4164 = vmatprep.subr.mxu0 0.0
        %4165 = vmatpush1.msra.mxu0 0.0
        %4166 = vmatprep.subr.mxu0 0.0
        %4167 = vmatpush1.msra.mxu0 0.0
        %4168 = vmatprep.subr.mxu0 0.0
        %4169 = vmatpush1.msra.mxu0 0.0
        %4170 = vmatprep.subr.mxu0 0.0
        %4171 = vmatpush1.msra.mxu0 0.0
        %4172 = vmatprep.mubr.f32.mxu0 0.0
        %v4173 = vand.u32 %v804, 4294901760
        %v4174 = vsub.f32 %v804, %v4173
        %4175 = vmatmul.mubr.f32.gmra.mrb[0].mxu0 %v4174
        %v4176 = vpop.f32.mrb[0].mxu0
        %v4177 = vadd.f32 %v4097, %v4176
        %v4178 = vpop.f32.mrb[0].mxu0
        %4179 = vdwg.mxu0
        %4180 = vmatprep.subr.mxu0 0.0
        %v4181 = vand.u32 %v3926, 4294901760
        %4182 = vmatpush1.msra.mxu0 %v4181
        %4183 = vmatprep.subr.mxu0 0.0
        %v4184 = vand.u32 %v3927, 4294901760
        %4185 = vmatpush1.msra.mxu0 %v4184
        %4186 = vmatprep.subr.mxu0 0.0
        %v4187 = vand.u32 %v3928, 4294901760
        %4188 = vmatpush1.msra.mxu0 %v4187
        %4189 = vmatprep.subr.mxu0 0.0
        %v4190 = vand.u32 %v3929, 4294901760
        %4191 = vmatpush1.msra.mxu0 %v4190
        %4192 = vmatprep.subr.mxu0 0.0
        %4193 = vmatpush1.msra.mxu0 0.0
        %4194 = vmatprep.subr.mxu0 0.0
        %4195 = vmatpush1.msra.mxu0 0.0
        %4196 = vmatprep.subr.mxu0 0.0
        %4197 = vmatpush1.msra.mxu0 0.0
        %4198 = vmatprep.subr.mxu0 0.0
        %4199 = vmatpush1.msra.mxu0 0.0
        %4200 = vmatprep.subr.mxu0 0.0
        %4201 = vmatpush1.msra.mxu0 0.0
        %4202 = vmatprep.subr.mxu0 0.0
        %4203 = vmatpush1.msra.mxu0 0.0
        %4204 = vmatprep.subr.mxu0 0.0
        %4205 = vmatpush1.msra.mxu0 0.0
        %4206 = vmatprep.subr.mxu0 0.0
        %4207 = vmatpush1.msra.mxu0 0.0
        %4208 = vmatprep.subr.mxu0 0.0
        %4209 = vmatpush1.msra.mxu0 0.0
        %4210 = vmatprep.subr.mxu0 0.0
        %4211 = vmatpush1.msra.mxu0 0.0
        %4212 = vmatprep.subr.mxu0 0.0
        %4213 = vmatpush1.msra.mxu0 0.0
        %4214 = vmatprep.subr.mxu0 0.0
        %4215 = vmatpush1.msra.mxu0 0.0
        %4216 = vmatprep.subr.mxu0 0.0
        %4217 = vmatpush1.msra.mxu0 0.0
        %4218 = vmatprep.subr.mxu0 0.0
        %4219 = vmatpush1.msra.mxu0 0.0
        %4220 = vmatprep.subr.mxu0 0.0
        %4221 = vmatpush1.msra.mxu0 0.0
        %4222 = vmatprep.subr.mxu0 0.0
        %4223 = vmatpush1.msra.mxu0 0.0
        %4224 = vmatprep.subr.mxu0 0.0
        %4225 = vmatpush1.msra.mxu0 0.0
        %4226 = vmatprep.subr.mxu0 0.0
        %4227 = vmatpush1.msra.mxu0 0.0
        %4228 = vmatprep.subr.mxu0 0.0
        %4229 = vmatpush1.msra.mxu0 0.0
        %4230 = vmatprep.subr.mxu0 0.0
        %4231 = vmatpush1.msra.mxu0 0.0
        %4232 = vmatprep.subr.mxu0 0.0
        %4233 = vmatpush1.msra.mxu0 0.0
        %4234 = vmatprep.subr.mxu0 0.0
        %4235 = vmatpush1.msra.mxu0 0.0
        %4236 = vmatprep.subr.mxu0 0.0
        %4237 = vmatpush1.msra.mxu0 0.0
        %4238 = vmatprep.subr.mxu0 0.0
        %4239 = vmatpush1.msra.mxu0 0.0
        %4240 = vmatprep.subr.mxu0 0.0
        %4241 = vmatpush1.msra.mxu0 0.0
        %4242 = vmatprep.subr.mxu0 0.0
        %4243 = vmatpush1.msra.mxu0 0.0
        %4244 = vmatprep.subr.mxu0 0.0
        %4245 = vmatpush1.msra.mxu0 0.0
        %4246 = vmatprep.subr.mxu0 0.0
        %4247 = vmatpush1.msra.mxu0 0.0
        %4248 = vmatprep.mubr.f32.mxu0 0.0
        %v4249 = vand.u32 %v804, 4294901760
        %v4250 = vsub.f32 %v804, %v4249
        %v4251 = vand.u32 %v4250, 4294901760
        %4252 = vmatmul.mubr.f32.gmra.mrb[0].mxu0 %v4251
        %v4253 = vpop.f32.mrb[0].mxu0
        %v4254 = vadd.f32 %v4177, %v4253
        %v4255 = vpop.f32.mrb[0].mxu0
        %4256 = vdwg.mxu0
        %4257 = vmatprep.subr.mxu0 0.0
        %v4258 = vand.u32 %v3926, 4294901760
        %v4259 = vsub.f32 %v3926, %v4258
        %v4260 = vand.u32 %v4259, 4294901760
        %4261 = vmatpush1.msra.mxu0 %v4260
        %4262 = vmatprep.subr.mxu0 0.0
        %v4263 = vand.u32 %v3927, 4294901760
        %v4264 = vsub.f32 %v3927, %v4263
        %v4265 = vand.u32 %v4264, 4294901760
        %4266 = vmatpush1.msra.mxu0 %v4265
        %4267 = vmatprep.subr.mxu0 0.0
        %v4268 = vand.u32 %v3928, 4294901760
        %v4269 = vsub.f32 %v3928, %v4268
        %v4270 = vand.u32 %v4269, 4294901760
        %4271 = vmatpush1.msra.mxu0 %v4270
        %4272 = vmatprep.subr.mxu0 0.0
        %v4273 = vand.u32 %v3929, 4294901760
        %v4274 = vsub.f32 %v3929, %v4273
        %v4275 = vand.u32 %v4274, 4294901760
        %4276 = vmatpush1.msra.mxu0 %v4275
        %4277 = vmatprep.subr.mxu0 0.0
        %4278 = vmatpush1.msra.mxu0 0.0
        %4279 = vmatprep.subr.mxu0 0.0
        %4280 = vmatpush1.msra.mxu0 0.0
        %4281 = vmatprep.subr.mxu0 0.0
        %4282 = vmatpush1.msra.mxu0 0.0
        %4283 = vmatprep.subr.mxu0 0.0
        %4284 = vmatpush1.msra.mxu0 0.0
        %4285 = vmatprep.subr.mxu0 0.0
        %4286 = vmatpush1.msra.mxu0 0.0
        %4287 = vmatprep.subr.mxu0 0.0
        %4288 = vmatpush1.msra.mxu0 0.0
        %4289 = vmatprep.subr.mxu0 0.0
        %4290 = vmatpush1.msra.mxu0 0.0
        %4291 = vmatprep.subr.mxu0 0.0
        %4292 = vmatpush1.msra.mxu0 0.0
        %4293 = vmatprep.subr.mxu0 0.0
        %4294 = vmatpush1.msra.mxu0 0.0
        %4295 = vmatprep.subr.mxu0 0.0
        %4296 = vmatpush1.msra.mxu0 0.0
        %4297 = vmatprep.subr.mxu0 0.0
        %4298 = vmatpush1.msra.mxu0 0.0
        %4299 = vmatprep.subr.mxu0 0.0
        %4300 = vmatpush1.msra.mxu0 0.0
        %4301 = vmatprep.subr.mxu0 0.0
        %4302 = vmatpush1.msra.mxu0 0.0
        %4303 = vmatprep.subr.mxu0 0.0
        %4304 = vmatpush1.msra.mxu0 0.0
        %4305 = vmatprep.subr.mxu0 0.0
        %4306 = vmatpush1.msra.mxu0 0.0
        %4307 = vmatprep.subr.mxu0 0.0
        %4308 = vmatpush1.msra.mxu0 0.0
        %4309 = vmatprep.subr.mxu0 0.0
        %4310 = vmatpush1.msra.mxu0 0.0
        %4311 = vmatprep.subr.mxu0 0.0
        %4312 = vmatpush1.msra.mxu0 0.0
        %4313 = vmatprep.subr.mxu0 0.0
        %4314 = vmatpush1.msra.mxu0 0.0
        %4315 = vmatprep.subr.mxu0 0.0
        %4316 = vmatpush1.msra.mxu0 0.0
        %4317 = vmatprep.subr.mxu0 0.0
        %4318 = vmatpush1.msra.mxu0 0.0
        %4319 = vmatprep.subr.mxu0 0.0
        %4320 = vmatpush1.msra.mxu0 0.0
        %4321 = vmatprep.subr.mxu0 0.0
        %4322 = vmatpush1.msra.mxu0 0.0
        %4323 = vmatprep.subr.mxu0 0.0
        %4324 = vmatpush1.msra.mxu0 0.0
        %4325 = vmatprep.subr.mxu0 0.0
        %4326 = vmatpush1.msra.mxu0 0.0
        %4327 = vmatprep.subr.mxu0 0.0
        %4328 = vmatpush1.msra.mxu0 0.0
        %4329 = vmatprep.subr.mxu0 0.0
        %4330 = vmatpush1.msra.mxu0 0.0
        %4331 = vmatprep.subr.mxu0 0.0
        %4332 = vmatpush1.msra.mxu0 0.0
        %4333 = vmatprep.mubr.f32.mxu0 0.0
        %v4334 = vand.u32 %v804, 4294901760
        %4335 = vmatmul.mubr.f32.gmra.mrb[0].mxu0 %v4334
        %v4336 = vpop.f32.mrb[0].mxu0
        %v4337 = vadd.f32 %v4254, %v4336
        %v4338 = vpop.f32.mrb[0].mxu0
        %4339 = vdwg.mxu0
        %4340 = vmatprep.subr.mxu0 0.0
        %v4341 = vand.u32 %v3926, 4294901760
        %4342 = vmatpush1.msra.mxu0 %v4341
        %4343 = vmatprep.subr.mxu0 0.0
        %v4344 = vand.u32 %v3927, 4294901760
        %4345 = vmatpush1.msra.mxu0 %v4344
        %4346 = vmatprep.subr.mxu0 0.0
        %v4347 = vand.u32 %v3928, 4294901760
        %4348 = vmatpush1.msra.mxu0 %v4347
        %4349 = vmatprep.subr.mxu0 0.0
        %v4350 = vand.u32 %v3929, 4294901760
        %4351 = vmatpush1.msra.mxu0 %v4350
        %4352 = vmatprep.subr.mxu0 0.0
        %4353 = vmatpush1.msra.mxu0 0.0
        %4354 = vmatprep.subr.mxu0 0.0
        %4355 = vmatpush1.msra.mxu0 0.0
        %4356 = vmatprep.subr.mxu0 0.0
        %4357 = vmatpush1.msra.mxu0 0.0
        %4358 = vmatprep.subr.mxu0 0.0
        %4359 = vmatpush1.msra.mxu0 0.0
        %4360 = vmatprep.subr.mxu0 0.0
        %4361 = vmatpush1.msra.mxu0 0.0
        %4362 = vmatprep.subr.mxu0 0.0
        %4363 = vmatpush1.msra.mxu0 0.0
        %4364 = vmatprep.subr.mxu0 0.0
        %4365 = vmatpush1.msra.mxu0 0.0
        %4366 = vmatprep.subr.mxu0 0.0
        %4367 = vmatpush1.msra.mxu0 0.0
        %4368 = vmatprep.subr.mxu0 0.0
        %4369 = vmatpush1.msra.mxu0 0.0
        %4370 = vmatprep.subr.mxu0 0.0
        %4371 = vmatpush1.msra.mxu0 0.0
        %4372 = vmatprep.subr.mxu0 0.0
        %4373 = vmatpush1.msra.mxu0 0.0
        %4374 = vmatprep.subr.mxu0 0.0
        %4375 = vmatpush1.msra.mxu0 0.0
        %4376 = vmatprep.subr.mxu0 0.0
        %4377 = vmatpush1.msra.mxu0 0.0
        %4378 = vmatprep.subr.mxu0 0.0
        %4379 = vmatpush1.msra.mxu0 0.0
        %4380 = vmatprep.subr.mxu0 0.0
        %4381 = vmatpush1.msra.mxu0 0.0
        %4382 = vmatprep.subr.mxu0 0.0
        %4383 = vmatpush1.msra.mxu0 0.0
        %4384 = vmatprep.subr.mxu0 0.0
        %4385 = vmatpush1.msra.mxu0 0.0
        %4386 = vmatprep.subr.mxu0 0.0
        %4387 = vmatpush1.msra.mxu0 0.0
        %4388 = vmatprep.subr.mxu0 0.0
        %4389 = vmatpush1.msra.mxu0 0.0
        %4390 = vmatprep.subr.mxu0 0.0
        %4391 = vmatpush1.msra.mxu0 0.0
        %4392 = vmatprep.subr.mxu0 0.0
        %4393 = vmatpush1.msra.mxu0 0.0
        %4394 = vmatprep.subr.mxu0 0.0
        %4395 = vmatpush1.msra.mxu0 0.0
        %4396 = vmatprep.subr.mxu0 0.0
        %4397 = vmatpush1.msra.mxu0 0.0
        %4398 = vmatprep.subr.mxu0 0.0
        %4399 = vmatpush1.msra.mxu0 0.0
        %4400 = vmatprep.subr.mxu0 0.0
        %4401 = vmatpush1.msra.mxu0 0.0
        %4402 = vmatprep.subr.mxu0 0.0
        %4403 = vmatpush1.msra.mxu0 0.0
        %4404 = vmatprep.subr.mxu0 0.0
        %4405 = vmatpush1.msra.mxu0 0.0
        %4406 = vmatprep.subr.mxu0 0.0
        %4407 = vmatpush1.msra.mxu0 0.0
        %4408 = vmatprep.mubr.f32.mxu0 0.0
        %v4409 = vand.u32 %v804, 4294901760
        %4410 = vmatmul.mubr.f32.gmra.mrb[0].mxu0 %v4409
        %v4411 = vpop.f32.mrb[0].mxu0
        %v4412 = vadd.f32 %v4337, %v4411
        %v4413 = vpop.f32.mrb[0].mxu0
        %4414 = vdwg.mxu0
        %v4415 = vmul.f32 %v3923, %v2931
        %v4416 = vmul.f32 %v4412, %v2932
        %v4417 = vadd.f32 %v4415, %v4416
        %4418 = vst.msk [vmem:[%s789] sm:$0xff] %vm2937, %v4417
        %v4419 = vld [vmem:[#allocation16] sm:$0xff]
        %v4420 = vld [vmem:[#allocation16 + $0x8] sm:$0xff]
        %v4421 = vld [vmem:[#allocation16 + $0x10] sm:$0xff]
        %v4422 = vld [vmem:[#allocation16 + $0x18] sm:$0xff]
        %v4423 = vld [vmem:[#allocation16 + $0x20] sm:$0xff]
        %v4424 = vld [vmem:[#allocation16 + $0x28] sm:$0xff]
        %v4425 = vld [vmem:[#allocation16 + $0x30] sm:$0xff]
        %v4426 = vld [vmem:[#allocation16 + $0x38] sm:$0xff]
        %v4428 = vsel %vm1299, %v3434, 0
        %4430 = vmatprep.subr.mxu0 0.0
        %v4431 = vand.u32 %v4419, 4294901760
        %4432 = vmatpush1.msra.mxu0 %v4431
        %4433 = vmatprep.subr.mxu0 0.0
        %v4434 = vand.u32 %v4420, 4294901760
        %4435 = vmatpush1.msra.mxu0 %v4434
        %4436 = vmatprep.subr.mxu0 0.0
        %v4437 = vand.u32 %v4421, 4294901760
        %4438 = vmatpush1.msra.mxu0 %v4437
        %4439 = vmatprep.subr.mxu0 0.0
        %v4440 = vand.u32 %v4422, 4294901760
        %4441 = vmatpush1.msra.mxu0 %v4440
        %4442 = vmatprep.subr.mxu0 0.0
        %v4443 = vand.u32 %v4423, 4294901760
        %4444 = vmatpush1.msra.mxu0 %v4443
        %4445 = vmatprep.subr.mxu0 0.0
        %v4446 = vand.u32 %v4424, 4294901760
        %4447 = vmatpush1.msra.mxu0 %v4446
        %4448 = vmatprep.subr.mxu0 0.0
        %v4449 = vand.u32 %v4425, 4294901760
        %4450 = vmatpush1.msra.mxu0 %v4449
        %4451 = vmatprep.subr.mxu0 0.0
        %v4452 = vand.u32 %v4426, 4294901760
        %4453 = vmatpush1.msra.mxu0 %v4452
        %4454 = vmatprep.subr.mxu0 0.0
        %4455 = vmatpush1.msra.mxu0 0.0
        %4456 = vmatprep.subr.mxu0 0.0
        %4457 = vmatpush1.msra.mxu0 0.0
        %4458 = vmatprep.subr.mxu0 0.0
        %4459 = vmatpush1.msra.mxu0 0.0
        %4460 = vmatprep.subr.mxu0 0.0
        %4461 = vmatpush1.msra.mxu0 0.0
        %4462 = vmatprep.subr.mxu0 0.0
        %4463 = vmatpush1.msra.mxu0 0.0
        %4464 = vmatprep.subr.mxu0 0.0
        %4465 = vmatpush1.msra.mxu0 0.0
        %4466 = vmatprep.subr.mxu0 0.0
        %4467 = vmatpush1.msra.mxu0 0.0
        %4468 = vmatprep.subr.mxu0 0.0
        %4469 = vmatpush1.msra.mxu0 0.0
        %4470 = vmatprep.subr.mxu0 0.0
        %4471 = vmatpush1.msra.mxu0 0.0
        %4472 = vmatprep.subr.mxu0 0.0
        %4473 = vmatpush1.msra.mxu0 0.0
        %4474 = vmatprep.subr.mxu0 0.0
        %4475 = vmatpush1.msra.mxu0 0.0
        %4476 = vmatprep.subr.mxu0 0.0
        %4477 = vmatpush1.msra.mxu0 0.0
        %4478 = vmatprep.subr.mxu0 0.0
        %4479 = vmatpush1.msra.mxu0 0.0
        %4480 = vmatprep.subr.mxu0 0.0
        %4481 = vmatpush1.msra.mxu0 0.0
        %4482 = vmatprep.subr.mxu0 0.0
        %4483 = vmatpush1.msra.mxu0 0.0
        %4484 = vmatprep.subr.mxu0 0.0
        %4485 = vmatpush1.msra.mxu0 0.0
        %4486 = vmatprep.subr.mxu0 0.0
        %4487 = vmatpush1.msra.mxu0 0.0
        %4488 = vmatprep.subr.mxu0 0.0
        %4489 = vmatpush1.msra.mxu0 0.0
        %4490 = vmatprep.subr.mxu0 0.0
        %4491 = vmatpush1.msra.mxu0 0.0
        %4492 = vmatprep.subr.mxu0 0.0
        %4493 = vmatpush1.msra.mxu0 0.0
        %4494 = vmatprep.subr.mxu0 0.0
        %4495 = vmatpush1.msra.mxu0 0.0
        %4496 = vmatprep.subr.mxu0 0.0
        %4497 = vmatpush1.msra.mxu0 0.0
        %4498 = vmatprep.subr.mxu0 0.0
        %4499 = vmatpush1.msra.mxu0 0.0
        %4500 = vmatprep.subr.mxu0 0.0
        %4501 = vmatpush1.msra.mxu0 0.0
        %4502 = vmatprep.mubr.f32.mxu0 0.0
        %v4503 = vand.u32 %v4428, 4294901760
        %v4504 = vsub.f32 %v4428, %v4503
        %v4505 = vand.u32 %v4504, 4294901760
        %v4506 = vsub.f32 %v4504, %v4505
        %v4507 = vand.u32 %v4506, 4294901760
        %4508 = vmatmul.mubr.f32.gmra.mrb[0].mxu0 %v4507
        %v4509 = vpop.f32.mrb[0].mxu0
        %v4510 = vadd.f32 0.0, %v4509
        %v4511 = vpop.f32.mrb[0].mxu0
        %4512 = vdwg.mxu0
        %4513 = vmatprep.subr.mxu0 0.0
        %v4514 = vand.u32 %v4419, 4294901760
        %v4515 = vsub.f32 %v4419, %v4514
        %v4516 = vand.u32 %v4515, 4294901760
        %v4517 = vsub.f32 %v4515, %v4516
        %v4518 = vand.u32 %v4517, 4294901760
        %4519 = vmatpush1.msra.mxu0 %v4518
        %4520 = vmatprep.subr.mxu0 0.0
        %v4521 = vand.u32 %v4420, 4294901760
        %v4522 = vsub.f32 %v4420, %v4521
        %v4523 = vand.u32 %v4522, 4294901760
        %v4524 = vsub.f32 %v4522, %v4523
        %v4525 = vand.u32 %v4524, 4294901760
        %4526 = vmatpush1.msra.mxu0 %v4525
        %4527 = vmatprep.subr.mxu0 0.0
        %v4528 = vand.u32 %v4421, 4294901760
        %v4529 = vsub.f32 %v4421, %v4528
        %v4530 = vand.u32 %v4529, 4294901760
        %v4531 = vsub.f32 %v4529, %v4530
        %v4532 = vand.u32 %v4531, 4294901760
        %4533 = vmatpush1.msra.mxu0 %v4532
        %4534 = vmatprep.subr.mxu0 0.0
        %v4535 = vand.u32 %v4422, 4294901760
        %v4536 = vsub.f32 %v4422, %v4535
        %v4537 = vand.u32 %v4536, 4294901760
        %v4538 = vsub.f32 %v4536, %v4537
        %v4539 = vand.u32 %v4538, 4294901760
        %4540 = vmatpush1.msra.mxu0 %v4539
        %4541 = vmatprep.subr.mxu0 0.0
        %v4542 = vand.u32 %v4423, 4294901760
        %v4543 = vsub.f32 %v4423, %v4542
        %v4544 = vand.u32 %v4543, 4294901760
        %v4545 = vsub.f32 %v4543, %v4544
        %v4546 = vand.u32 %v4545, 4294901760
        %4547 = vmatpush1.msra.mxu0 %v4546
        %4548 = vmatprep.subr.mxu0 0.0
        %v4549 = vand.u32 %v4424, 4294901760
        %v4550 = vsub.f32 %v4424, %v4549
        %v4551 = vand.u32 %v4550, 4294901760
        %v4552 = vsub.f32 %v4550, %v4551
        %v4553 = vand.u32 %v4552, 4294901760
        %4554 = vmatpush1.msra.mxu0 %v4553
        %4555 = vmatprep.subr.mxu0 0.0
        %v4556 = vand.u32 %v4425, 4294901760
        %v4557 = vsub.f32 %v4425, %v4556
        %v4558 = vand.u32 %v4557, 4294901760
        %v4559 = vsub.f32 %v4557, %v4558
        %v4560 = vand.u32 %v4559, 4294901760
        %4561 = vmatpush1.msra.mxu0 %v4560
        %4562 = vmatprep.subr.mxu0 0.0
        %v4563 = vand.u32 %v4426, 4294901760
        %v4564 = vsub.f32 %v4426, %v4563
        %v4565 = vand.u32 %v4564, 4294901760
        %v4566 = vsub.f32 %v4564, %v4565
        %v4567 = vand.u32 %v4566, 4294901760
        %4568 = vmatpush1.msra.mxu0 %v4567
        %4569 = vmatprep.subr.mxu0 0.0
        %4570 = vmatpush1.msra.mxu0 0.0
        %4571 = vmatprep.subr.mxu0 0.0
        %4572 = vmatpush1.msra.mxu0 0.0
        %4573 = vmatprep.subr.mxu0 0.0
        %4574 = vmatpush1.msra.mxu0 0.0
        %4575 = vmatprep.subr.mxu0 0.0
        %4576 = vmatpush1.msra.mxu0 0.0
        %4577 = vmatprep.subr.mxu0 0.0
        %4578 = vmatpush1.msra.mxu0 0.0
        %4579 = vmatprep.subr.mxu0 0.0
        %4580 = vmatpush1.msra.mxu0 0.0
        %4581 = vmatprep.subr.mxu0 0.0
        %4582 = vmatpush1.msra.mxu0 0.0
        %4583 = vmatprep.subr.mxu0 0.0
        %4584 = vmatpush1.msra.mxu0 0.0
        %4585 = vmatprep.subr.mxu0 0.0
        %4586 = vmatpush1.msra.mxu0 0.0
        %4587 = vmatprep.subr.mxu0 0.0
        %4588 = vmatpush1.msra.mxu0 0.0
        %4589 = vmatprep.subr.mxu0 0.0
        %4590 = vmatpush1.msra.mxu0 0.0
        %4591 = vmatprep.subr.mxu0 0.0
        %4592 = vmatpush1.msra.mxu0 0.0
        %4593 = vmatprep.subr.mxu0 0.0
        %4594 = vmatpush1.msra.mxu0 0.0
        %4595 = vmatprep.subr.mxu0 0.0
        %4596 = vmatpush1.msra.mxu0 0.0
        %4597 = vmatprep.subr.mxu0 0.0
        %4598 = vmatpush1.msra.mxu0 0.0
        %4599 = vmatprep.subr.mxu0 0.0
        %4600 = vmatpush1.msra.mxu0 0.0
        %4601 = vmatprep.subr.mxu0 0.0
        %4602 = vmatpush1.msra.mxu0 0.0
        %4603 = vmatprep.subr.mxu0 0.0
        %4604 = vmatpush1.msra.mxu0 0.0
        %4605 = vmatprep.subr.mxu0 0.0
        %4606 = vmatpush1.msra.mxu0 0.0
        %4607 = vmatprep.subr.mxu0 0.0
        %4608 = vmatpush1.msra.mxu0 0.0
        %4609 = vmatprep.subr.mxu0 0.0
        %4610 = vmatpush1.msra.mxu0 0.0
        %4611 = vmatprep.subr.mxu0 0.0
        %4612 = vmatpush1.msra.mxu0 0.0
        %4613 = vmatprep.subr.mxu0 0.0
        %4614 = vmatpush1.msra.mxu0 0.0
        %4615 = vmatprep.subr.mxu0 0.0
        %4616 = vmatpush1.msra.mxu0 0.0
        %4617 = vmatprep.mubr.f32.mxu0 0.0
        %v4618 = vand.u32 %v4428, 4294901760
        %4619 = vmatmul.mubr.f32.gmra.mrb[0].mxu0 %v4618
        %v4620 = vpop.f32.mrb[0].mxu0
        %v4621 = vadd.f32 %v4510, %v4620
        %v4622 = vpop.f32.mrb[0].mxu0
        %4623 = vdwg.mxu0
        %4624 = vmatprep.subr.mxu0 0.0
        %v4625 = vand.u32 %v4419, 4294901760
        %v4626 = vsub.f32 %v4419, %v4625
        %4627 = vmatpush1.msra.mxu0 %v4626
        %4628 = vmatprep.subr.mxu0 0.0
        %v4629 = vand.u32 %v4420, 4294901760
        %v4630 = vsub.f32 %v4420, %v4629
        %4631 = vmatpush1.msra.mxu0 %v4630
        %4632 = vmatprep.subr.mxu0 0.0
        %v4633 = vand.u32 %v4421, 4294901760
        %v4634 = vsub.f32 %v4421, %v4633
        %4635 = vmatpush1.msra.mxu0 %v4634
        %4636 = vmatprep.subr.mxu0 0.0
        %v4637 = vand.u32 %v4422, 4294901760
        %v4638 = vsub.f32 %v4422, %v4637
        %4639 = vmatpush1.msra.mxu0 %v4638
        %4640 = vmatprep.subr.mxu0 0.0
        %v4641 = vand.u32 %v4423, 4294901760
        %v4642 = vsub.f32 %v4423, %v4641
        %4643 = vmatpush1.msra.mxu0 %v4642
        %4644 = vmatprep.subr.mxu0 0.0
        %v4645 = vand.u32 %v4424, 4294901760
        %v4646 = vsub.f32 %v4424, %v4645
        %4647 = vmatpush1.msra.mxu0 %v4646
        %4648 = vmatprep.subr.mxu0 0.0
        %v4649 = vand.u32 %v4425, 4294901760
        %v4650 = vsub.f32 %v4425, %v4649
        %4651 = vmatpush1.msra.mxu0 %v4650
        %4652 = vmatprep.subr.mxu0 0.0
        %v4653 = vand.u32 %v4426, 4294901760
        %v4654 = vsub.f32 %v4426, %v4653
        %4655 = vmatpush1.msra.mxu0 %v4654
        %4656 = vmatprep.subr.mxu0 0.0
        %4657 = vmatpush1.msra.mxu0 0.0
        %4658 = vmatprep.subr.mxu0 0.0
        %4659 = vmatpush1.msra.mxu0 0.0
        %4660 = vmatprep.subr.mxu0 0.0
        %4661 = vmatpush1.msra.mxu0 0.0
        %4662 = vmatprep.subr.mxu0 0.0
        %4663 = vmatpush1.msra.mxu0 0.0
        %4664 = vmatprep.subr.mxu0 0.0
        %4665 = vmatpush1.msra.mxu0 0.0
        %4666 = vmatprep.subr.mxu0 0.0
        %4667 = vmatpush1.msra.mxu0 0.0
        %4668 = vmatprep.subr.mxu0 0.0
        %4669 = vmatpush1.msra.mxu0 0.0
        %4670 = vmatprep.subr.mxu0 0.0
        %4671 = vmatpush1.msra.mxu0 0.0
        %4672 = vmatprep.subr.mxu0 0.0
        %4673 = vmatpush1.msra.mxu0 0.0
        %4674 = vmatprep.subr.mxu0 0.0
        %4675 = vmatpush1.msra.mxu0 0.0
        %4676 = vmatprep.subr.mxu0 0.0
        %4677 = vmatpush1.msra.mxu0 0.0
        %4678 = vmatprep.subr.mxu0 0.0
        %4679 = vmatpush1.msra.mxu0 0.0
        %4680 = vmatprep.subr.mxu0 0.0
        %4681 = vmatpush1.msra.mxu0 0.0
        %4682 = vmatprep.subr.mxu0 0.0
        %4683 = vmatpush1.msra.mxu0 0.0
        %4684 = vmatprep.subr.mxu0 0.0
        %4685 = vmatpush1.msra.mxu0 0.0
        %4686 = vmatprep.subr.mxu0 0.0
        %4687 = vmatpush1.msra.mxu0 0.0
        %4688 = vmatprep.subr.mxu0 0.0
        %4689 = vmatpush1.msra.mxu0 0.0
        %4690 = vmatprep.subr.mxu0 0.0
        %4691 = vmatpush1.msra.mxu0 0.0
        %4692 = vmatprep.subr.mxu0 0.0
        %4693 = vmatpush1.msra.mxu0 0.0
        %4694 = vmatprep.subr.mxu0 0.0
        %4695 = vmatpush1.msra.mxu0 0.0
        %4696 = vmatprep.subr.mxu0 0.0
        %4697 = vmatpush1.msra.mxu0 0.0
        %4698 = vmatprep.subr.mxu0 0.0
        %4699 = vmatpush1.msra.mxu0 0.0
        %4700 = vmatprep.subr.mxu0 0.0
        %4701 = vmatpush1.msra.mxu0 0.0
        %4702 = vmatprep.subr.mxu0 0.0
        %4703 = vmatpush1.msra.mxu0 0.0
        %4704 = vmatprep.mubr.f32.mxu0 0.0
        %v4705 = vand.u32 %v4428, 4294901760
        %v4706 = vsub.f32 %v4428, %v4705
        %4707 = vmatmul.mubr.f32.gmra.mrb[0].mxu0 %v4706
        %v4708 = vpop.f32.mrb[0].mxu0
        %v4709 = vadd.f32 %v4621, %v4708
        %v4710 = vpop.f32.mrb[0].mxu0
        %4711 = vdwg.mxu0
        %4712 = vmatprep.subr.mxu0 0.0
        %v4713 = vand.u32 %v4419, 4294901760
        %4714 = vmatpush1.msra.mxu0 %v4713
        %4715 = vmatprep.subr.mxu0 0.0
        %v4716 = vand.u32 %v4420, 4294901760
        %4717 = vmatpush1.msra.mxu0 %v4716
        %4718 = vmatprep.subr.mxu0 0.0
        %v4719 = vand.u32 %v4421, 4294901760
        %4720 = vmatpush1.msra.mxu0 %v4719
        %4721 = vmatprep.subr.mxu0 0.0
        %v4722 = vand.u32 %v4422, 4294901760
        %4723 = vmatpush1.msra.mxu0 %v4722
        %4724 = vmatprep.subr.mxu0 0.0
        %v4725 = vand.u32 %v4423, 4294901760
        %4726 = vmatpush1.msra.mxu0 %v4725
        %4727 = vmatprep.subr.mxu0 0.0
        %v4728 = vand.u32 %v4424, 4294901760
        %4729 = vmatpush1.msra.mxu0 %v4728
        %4730 = vmatprep.subr.mxu0 0.0
        %v4731 = vand.u32 %v4425, 4294901760
        %4732 = vmatpush1.msra.mxu0 %v4731
        %4733 = vmatprep.subr.mxu0 0.0
        %v4734 = vand.u32 %v4426, 4294901760
        %4735 = vmatpush1.msra.mxu0 %v4734
        %4736 = vmatprep.subr.mxu0 0.0
        %4737 = vmatpush1.msra.mxu0 0.0
        %4738 = vmatprep.subr.mxu0 0.0
        %4739 = vmatpush1.msra.mxu0 0.0
        %4740 = vmatprep.subr.mxu0 0.0
        %4741 = vmatpush1.msra.mxu0 0.0
        %4742 = vmatprep.subr.mxu0 0.0
        %4743 = vmatpush1.msra.mxu0 0.0
        %4744 = vmatprep.subr.mxu0 0.0
        %4745 = vmatpush1.msra.mxu0 0.0
        %4746 = vmatprep.subr.mxu0 0.0
        %4747 = vmatpush1.msra.mxu0 0.0
        %4748 = vmatprep.subr.mxu0 0.0
        %4749 = vmatpush1.msra.mxu0 0.0
        %4750 = vmatprep.subr.mxu0 0.0
        %4751 = vmatpush1.msra.mxu0 0.0
        %4752 = vmatprep.subr.mxu0 0.0
        %4753 = vmatpush1.msra.mxu0 0.0
        %4754 = vmatprep.subr.mxu0 0.0
        %4755 = vmatpush1.msra.mxu0 0.0
        %4756 = vmatprep.subr.mxu0 0.0
        %4757 = vmatpush1.msra.mxu0 0.0
        %4758 = vmatprep.subr.mxu0 0.0
        %4759 = vmatpush1.msra.mxu0 0.0
        %4760 = vmatprep.subr.mxu0 0.0
        %4761 = vmatpush1.msra.mxu0 0.0
        %4762 = vmatprep.subr.mxu0 0.0
        %4763 = vmatpush1.msra.mxu0 0.0
        %4764 = vmatprep.subr.mxu0 0.0
        %4765 = vmatpush1.msra.mxu0 0.0
        %4766 = vmatprep.subr.mxu0 0.0
        %4767 = vmatpush1.msra.mxu0 0.0
        %4768 = vmatprep.subr.mxu0 0.0
        %4769 = vmatpush1.msra.mxu0 0.0
        %4770 = vmatprep.subr.mxu0 0.0
        %4771 = vmatpush1.msra.mxu0 0.0
        %4772 = vmatprep.subr.mxu0 0.0
        %4773 = vmatpush1.msra.mxu0 0.0
        %4774 = vmatprep.subr.mxu0 0.0
        %4775 = vmatpush1.msra.mxu0 0.0
        %4776 = vmatprep.subr.mxu0 0.0
        %4777 = vmatpush1.msra.mxu0 0.0
        %4778 = vmatprep.subr.mxu0 0.0
        %4779 = vmatpush1.msra.mxu0 0.0
        %4780 = vmatprep.subr.mxu0 0.0
        %4781 = vmatpush1.msra.mxu0 0.0
        %4782 = vmatprep.subr.mxu0 0.0
        %4783 = vmatpush1.msra.mxu0 0.0
        %4784 = vmatprep.mubr.f32.mxu0 0.0
        %v4785 = vand.u32 %v4428, 4294901760
        %v4786 = vsub.f32 %v4428, %v4785
        %v4787 = vand.u32 %v4786, 4294901760
        %4788 = vmatmul.mubr.f32.gmra.mrb[0].mxu0 %v4787
        %v4789 = vpop.f32.mrb[0].mxu0
        %v4790 = vadd.f32 %v4709, %v4789
        %v4791 = vpop.f32.mrb[0].mxu0
        %4792 = vdwg.mxu0
        %4793 = vmatprep.subr.mxu0 0.0
        %v4794 = vand.u32 %v4419, 4294901760
        %v4795 = vsub.f32 %v4419, %v4794
        %v4796 = vand.u32 %v4795, 4294901760
        %4797 = vmatpush1.msra.mxu0 %v4796
        %4798 = vmatprep.subr.mxu0 0.0
        %v4799 = vand.u32 %v4420, 4294901760
        %v4800 = vsub.f32 %v4420, %v4799
        %v4801 = vand.u32 %v4800, 4294901760
        %4802 = vmatpush1.msra.mxu0 %v4801
        %4803 = vmatprep.subr.mxu0 0.0
        %v4804 = vand.u32 %v4421, 4294901760
        %v4805 = vsub.f32 %v4421, %v4804
        %v4806 = vand.u32 %v4805, 4294901760
        %4807 = vmatpush1.msra.mxu0 %v4806
        %4808 = vmatprep.subr.mxu0 0.0
        %v4809 = vand.u32 %v4422, 4294901760
        %v4810 = vsub.f32 %v4422, %v4809
        %v4811 = vand.u32 %v4810, 4294901760
        %4812 = vmatpush1.msra.mxu0 %v4811
        %4813 = vmatprep.subr.mxu0 0.0
        %v4814 = vand.u32 %v4423, 4294901760
        %v4815 = vsub.f32 %v4423, %v4814
        %v4816 = vand.u32 %v4815, 4294901760
        %4817 = vmatpush1.msra.mxu0 %v4816
        %4818 = vmatprep.subr.mxu0 0.0
        %v4819 = vand.u32 %v4424, 4294901760
        %v4820 = vsub.f32 %v4424, %v4819
        %v4821 = vand.u32 %v4820, 4294901760
        %4822 = vmatpush1.msra.mxu0 %v4821
        %4823 = vmatprep.subr.mxu0 0.0
        %v4824 = vand.u32 %v4425, 4294901760
        %v4825 = vsub.f32 %v4425, %v4824
        %v4826 = vand.u32 %v4825, 4294901760
        %4827 = vmatpush1.msra.mxu0 %v4826
        %4828 = vmatprep.subr.mxu0 0.0
        %v4829 = vand.u32 %v4426, 4294901760
        %v4830 = vsub.f32 %v4426, %v4829
        %v4831 = vand.u32 %v4830, 4294901760
        %4832 = vmatpush1.msra.mxu0 %v4831
        %4833 = vmatprep.subr.mxu0 0.0
        %4834 = vmatpush1.msra.mxu0 0.0
        %4835 = vmatprep.subr.mxu0 0.0
        %4836 = vmatpush1.msra.mxu0 0.0
        %4837 = vmatprep.subr.mxu0 0.0
        %4838 = vmatpush1.msra.mxu0 0.0
        %4839 = vmatprep.subr.mxu0 0.0
        %4840 = vmatpush1.msra.mxu0 0.0
        %4841 = vmatprep.subr.mxu0 0.0
        %4842 = vmatpush1.msra.mxu0 0.0
        %4843 = vmatprep.subr.mxu0 0.0
        %4844 = vmatpush1.msra.mxu0 0.0
        %4845 = vmatprep.subr.mxu0 0.0
        %4846 = vmatpush1.msra.mxu0 0.0
        %4847 = vmatprep.subr.mxu0 0.0
        %4848 = vmatpush1.msra.mxu0 0.0
        %4849 = vmatprep.subr.mxu0 0.0
        %4850 = vmatpush1.msra.mxu0 0.0
        %4851 = vmatprep.subr.mxu0 0.0
        %4852 = vmatpush1.msra.mxu0 0.0
        %4853 = vmatprep.subr.mxu0 0.0
        %4854 = vmatpush1.msra.mxu0 0.0
        %4855 = vmatprep.subr.mxu0 0.0
        %4856 = vmatpush1.msra.mxu0 0.0
        %4857 = vmatprep.subr.mxu0 0.0
        %4858 = vmatpush1.msra.mxu0 0.0
        %4859 = vmatprep.subr.mxu0 0.0
        %4860 = vmatpush1.msra.mxu0 0.0
        %4861 = vmatprep.subr.mxu0 0.0
        %4862 = vmatpush1.msra.mxu0 0.0
        %4863 = vmatprep.subr.mxu0 0.0
        %4864 = vmatpush1.msra.mxu0 0.0
        %4865 = vmatprep.subr.mxu0 0.0
        %4866 = vmatpush1.msra.mxu0 0.0
        %4867 = vmatprep.subr.mxu0 0.0
        %4868 = vmatpush1.msra.mxu0 0.0
        %4869 = vmatprep.subr.mxu0 0.0
        %4870 = vmatpush1.msra.mxu0 0.0
        %4871 = vmatprep.subr.mxu0 0.0
        %4872 = vmatpush1.msra.mxu0 0.0
        %4873 = vmatprep.subr.mxu0 0.0
        %4874 = vmatpush1.msra.mxu0 0.0
        %4875 = vmatprep.subr.mxu0 0.0
        %4876 = vmatpush1.msra.mxu0 0.0
        %4877 = vmatprep.subr.mxu0 0.0
        %4878 = vmatpush1.msra.mxu0 0.0
        %4879 = vmatprep.subr.mxu0 0.0
        %4880 = vmatpush1.msra.mxu0 0.0
        %4881 = vmatprep.mubr.f32.mxu0 0.0
        %v4882 = vand.u32 %v4428, 4294901760
        %4883 = vmatmul.mubr.f32.gmra.mrb[0].mxu0 %v4882
        %v4884 = vpop.f32.mrb[0].mxu0
        %v4885 = vadd.f32 %v4790, %v4884
        %v4886 = vpop.f32.mrb[0].mxu0
        %4887 = vdwg.mxu0
        %4888 = vmatprep.subr.mxu0 0.0
        %v4889 = vand.u32 %v4419, 4294901760
        %4890 = vmatpush1.msra.mxu0 %v4889
        %4891 = vmatprep.subr.mxu0 0.0
        %v4892 = vand.u32 %v4420, 4294901760
        %4893 = vmatpush1.msra.mxu0 %v4892
        %4894 = vmatprep.subr.mxu0 0.0
        %v4895 = vand.u32 %v4421, 4294901760
        %4896 = vmatpush1.msra.mxu0 %v4895
        %4897 = vmatprep.subr.mxu0 0.0
        %v4898 = vand.u32 %v4422, 4294901760
        %4899 = vmatpush1.msra.mxu0 %v4898
        %4900 = vmatprep.subr.mxu0 0.0
        %v4901 = vand.u32 %v4423, 4294901760
        %4902 = vmatpush1.msra.mxu0 %v4901
        %4903 = vmatprep.subr.mxu0 0.0
        %v4904 = vand.u32 %v4424, 4294901760
        %4905 = vmatpush1.msra.mxu0 %v4904
        %4906 = vmatprep.subr.mxu0 0.0
        %v4907 = vand.u32 %v4425, 4294901760
        %4908 = vmatpush1.msra.mxu0 %v4907
        %4909 = vmatprep.subr.mxu0 0.0
        %v4910 = vand.u32 %v4426, 4294901760
        %4911 = vmatpush1.msra.mxu0 %v4910
        %4912 = vmatprep.subr.mxu0 0.0
        %4913 = vmatpush1.msra.mxu0 0.0
        %4914 = vmatprep.subr.mxu0 0.0
        %4915 = vmatpush1.msra.mxu0 0.0
        %4916 = vmatprep.subr.mxu0 0.0
        %4917 = vmatpush1.msra.mxu0 0.0
        %4918 = vmatprep.subr.mxu0 0.0
        %4919 = vmatpush1.msra.mxu0 0.0
        %4920 = vmatprep.subr.mxu0 0.0
        %4921 = vmatpush1.msra.mxu0 0.0
        %4922 = vmatprep.subr.mxu0 0.0
        %4923 = vmatpush1.msra.mxu0 0.0
        %4924 = vmatprep.subr.mxu0 0.0
        %4925 = vmatpush1.msra.mxu0 0.0
        %4926 = vmatprep.subr.mxu0 0.0
        %4927 = vmatpush1.msra.mxu0 0.0
        %4928 = vmatprep.subr.mxu0 0.0
        %4929 = vmatpush1.msra.mxu0 0.0
        %4930 = vmatprep.subr.mxu0 0.0
        %4931 = vmatpush1.msra.mxu0 0.0
        %4932 = vmatprep.subr.mxu0 0.0
        %4933 = vmatpush1.msra.mxu0 0.0
        %4934 = vmatprep.subr.mxu0 0.0
        %4935 = vmatpush1.msra.mxu0 0.0
        %4936 = vmatprep.subr.mxu0 0.0
        %4937 = vmatpush1.msra.mxu0 0.0
        %4938 = vmatprep.subr.mxu0 0.0
        %4939 = vmatpush1.msra.mxu0 0.0
        %4940 = vmatprep.subr.mxu0 0.0
        %4941 = vmatpush1.msra.mxu0 0.0
        %4942 = vmatprep.subr.mxu0 0.0
        %4943 = vmatpush1.msra.mxu0 0.0
        %4944 = vmatprep.subr.mxu0 0.0
        %4945 = vmatpush1.msra.mxu0 0.0
        %4946 = vmatprep.subr.mxu0 0.0
        %4947 = vmatpush1.msra.mxu0 0.0
        %4948 = vmatprep.subr.mxu0 0.0
        %4949 = vmatpush1.msra.mxu0 0.0
        %4950 = vmatprep.subr.mxu0 0.0
        %4951 = vmatpush1.msra.mxu0 0.0
        %4952 = vmatprep.subr.mxu0 0.0
        %4953 = vmatpush1.msra.mxu0 0.0
        %4954 = vmatprep.subr.mxu0 0.0
        %4955 = vmatpush1.msra.mxu0 0.0
        %4956 = vmatprep.subr.mxu0 0.0
        %4957 = vmatpush1.msra.mxu0 0.0
        %4958 = vmatprep.subr.mxu0 0.0
        %4959 = vmatpush1.msra.mxu0 0.0
        %4960 = vmatprep.mubr.f32.mxu0 0.0
        %v4961 = vand.u32 %v4428, 4294901760
        %4962 = vmatmul.mubr.f32.gmra.mrb[0].mxu0 %v4961
        %v4963 = vpop.f32.mrb[0].mxu0
        %v4964 = vadd.f32 %v4885, %v4963
        %v4965 = vpop.f32.mrb[0].mxu0
        %4966 = vdwg.mxu0
        %4967 = vst.msk [vmem:[%s782] sm:$0xff] %vm802, %v4964
        %v4968 = vld [vmem:[#allocation17] sm:$0xff]
        %v4969 = vld [vmem:[#allocation17 + $0x8] sm:$0xff]
        %v4970 = vld [vmem:[#allocation17 + $0x10] sm:$0xff]
        %v4971 = vld [vmem:[#allocation17 + $0x18] sm:$0xff]
        %v4972 = vld [vmem:[#allocation17 + $0x20] sm:$0xff]
        %v4973 = vld [vmem:[#allocation17 + $0x28] sm:$0xff]
        %v4974 = vld [vmem:[#allocation17 + $0x30] sm:$0xff]
        %v4975 = vld [vmem:[#allocation17 + $0x38] sm:$0xff]
        %4976 = vmatprep.subr.mxu0 0.0
        %v4977 = vand.u32 %v4968, 4294901760
        %4978 = vmatpush1.msra.mxu0 %v4977
        %4979 = vmatprep.subr.mxu0 0.0
        %v4980 = vand.u32 %v4969, 4294901760
        %4981 = vmatpush1.msra.mxu0 %v4980
        %4982 = vmatprep.subr.mxu0 0.0
        %v4983 = vand.u32 %v4970, 4294901760
        %4984 = vmatpush1.msra.mxu0 %v4983
        %4985 = vmatprep.subr.mxu0 0.0
        %v4986 = vand.u32 %v4971, 4294901760
        %4987 = vmatpush1.msra.mxu0 %v4986
        %4988 = vmatprep.subr.mxu0 0.0
        %v4989 = vand.u32 %v4972, 4294901760
        %4990 = vmatpush1.msra.mxu0 %v4989
        %4991 = vmatprep.subr.mxu0 0.0
        %v4992 = vand.u32 %v4973, 4294901760
        %4993 = vmatpush1.msra.mxu0 %v4992
        %4994 = vmatprep.subr.mxu0 0.0
        %v4995 = vand.u32 %v4974, 4294901760
        %4996 = vmatpush1.msra.mxu0 %v4995
        %4997 = vmatprep.subr.mxu0 0.0
        %v4998 = vand.u32 %v4975, 4294901760
        %4999 = vmatpush1.msra.mxu0 %v4998
        %5000 = vmatprep.subr.mxu0 0.0
        %5001 = vmatpush1.msra.mxu0 0.0
        %5002 = vmatprep.subr.mxu0 0.0
        %5003 = vmatpush1.msra.mxu0 0.0
        %5004 = vmatprep.subr.mxu0 0.0
        %5005 = vmatpush1.msra.mxu0 0.0
        %5006 = vmatprep.subr.mxu0 0.0
        %5007 = vmatpush1.msra.mxu0 0.0
        %5008 = vmatprep.subr.mxu0 0.0
        %5009 = vmatpush1.msra.mxu0 0.0
        %5010 = vmatprep.subr.mxu0 0.0
        %5011 = vmatpush1.msra.mxu0 0.0
        %5012 = vmatprep.subr.mxu0 0.0
        %5013 = vmatpush1.msra.mxu0 0.0
        %5014 = vmatprep.subr.mxu0 0.0
        %5015 = vmatpush1.msra.mxu0 0.0
        %5016 = vmatprep.subr.mxu0 0.0
        %5017 = vmatpush1.msra.mxu0 0.0
        %5018 = vmatprep.subr.mxu0 0.0
        %5019 = vmatpush1.msra.mxu0 0.0
        %5020 = vmatprep.subr.mxu0 0.0
        %5021 = vmatpush1.msra.mxu0 0.0
        %5022 = vmatprep.subr.mxu0 0.0
        %5023 = vmatpush1.msra.mxu0 0.0
        %5024 = vmatprep.subr.mxu0 0.0
        %5025 = vmatpush1.msra.mxu0 0.0
        %5026 = vmatprep.subr.mxu0 0.0
        %5027 = vmatpush1.msra.mxu0 0.0
        %5028 = vmatprep.subr.mxu0 0.0
        %5029 = vmatpush1.msra.mxu0 0.0
        %5030 = vmatprep.subr.mxu0 0.0
        %5031 = vmatpush1.msra.mxu0 0.0
        %5032 = vmatprep.subr.mxu0 0.0
        %5033 = vmatpush1.msra.mxu0 0.0
        %5034 = vmatprep.subr.mxu0 0.0
        %5035 = vmatpush1.msra.mxu0 0.0
        %5036 = vmatprep.subr.mxu0 0.0
        %5037 = vmatpush1.msra.mxu0 0.0
        %5038 = vmatprep.subr.mxu0 0.0
        %5039 = vmatpush1.msra.mxu0 0.0
        %5040 = vmatprep.subr.mxu0 0.0
        %5041 = vmatpush1.msra.mxu0 0.0
        %5042 = vmatprep.subr.mxu0 0.0
        %5043 = vmatpush1.msra.mxu0 0.0
        %5044 = vmatprep.subr.mxu0 0.0
        %5045 = vmatpush1.msra.mxu0 0.0
        %5046 = vmatprep.subr.mxu0 0.0
        %5047 = vmatpush1.msra.mxu0 0.0
        %5048 = vmatprep.mubr.f32.mxu0 0.0
        %v5049 = vand.u32 %v4428, 4294901760
        %v5050 = vsub.f32 %v4428, %v5049
        %v5051 = vand.u32 %v5050, 4294901760
        %v5052 = vsub.f32 %v5050, %v5051
        %v5053 = vand.u32 %v5052, 4294901760
        %5054 = vmatmul.mubr.f32.gmra.mrb[0].mxu0 %v5053
        %v5055 = vpop.f32.mrb[0].mxu0
        %v5056 = vadd.f32 0.0, %v5055
        %v5057 = vpop.f32.mrb[0].mxu0
        %5058 = vdwg.mxu0
        %5059 = vmatprep.subr.mxu0 0.0
        %v5060 = vand.u32 %v4968, 4294901760
        %v5061 = vsub.f32 %v4968, %v5060
        %v5062 = vand.u32 %v5061, 4294901760
        %v5063 = vsub.f32 %v5061, %v5062
        %v5064 = vand.u32 %v5063, 4294901760
        %5065 = vmatpush1.msra.mxu0 %v5064
        %5066 = vmatprep.subr.mxu0 0.0
        %v5067 = vand.u32 %v4969, 4294901760
        %v5068 = vsub.f32 %v4969, %v5067
        %v5069 = vand.u32 %v5068, 4294901760
        %v5070 = vsub.f32 %v5068, %v5069
        %v5071 = vand.u32 %v5070, 4294901760
        %5072 = vmatpush1.msra.mxu0 %v5071
        %5073 = vmatprep.subr.mxu0 0.0
        %v5074 = vand.u32 %v4970, 4294901760
        %v5075 = vsub.f32 %v4970, %v5074
        %v5076 = vand.u32 %v5075, 4294901760
        %v5077 = vsub.f32 %v5075, %v5076
        %v5078 = vand.u32 %v5077, 4294901760
        %5079 = vmatpush1.msra.mxu0 %v5078
        %5080 = vmatprep.subr.mxu0 0.0
        %v5081 = vand.u32 %v4971, 4294901760
        %v5082 = vsub.f32 %v4971, %v5081
        %v5083 = vand.u32 %v5082, 4294901760
        %v5084 = vsub.f32 %v5082, %v5083
        %v5085 = vand.u32 %v5084, 4294901760
        %5086 = vmatpush1.msra.mxu0 %v5085
        %5087 = vmatprep.subr.mxu0 0.0
        %v5088 = vand.u32 %v4972, 4294901760
        %v5089 = vsub.f32 %v4972, %v5088
        %v5090 = vand.u32 %v5089, 4294901760
        %v5091 = vsub.f32 %v5089, %v5090
        %v5092 = vand.u32 %v5091, 4294901760
        %5093 = vmatpush1.msra.mxu0 %v5092
        %5094 = vmatprep.subr.mxu0 0.0
        %v5095 = vand.u32 %v4973, 4294901760
        %v5096 = vsub.f32 %v4973, %v5095
        %v5097 = vand.u32 %v5096, 4294901760
        %v5098 = vsub.f32 %v5096, %v5097
        %v5099 = vand.u32 %v5098, 4294901760
        %5100 = vmatpush1.msra.mxu0 %v5099
        %5101 = vmatprep.subr.mxu0 0.0
        %v5102 = vand.u32 %v4974, 4294901760
        %v5103 = vsub.f32 %v4974, %v5102
        %v5104 = vand.u32 %v5103, 4294901760
        %v5105 = vsub.f32 %v5103, %v5104
        %v5106 = vand.u32 %v5105, 4294901760
        %5107 = vmatpush1.msra.mxu0 %v5106
        %5108 = vmatprep.subr.mxu0 0.0
        %v5109 = vand.u32 %v4975, 4294901760
        %v5110 = vsub.f32 %v4975, %v5109
        %v5111 = vand.u32 %v5110, 4294901760
        %v5112 = vsub.f32 %v5110, %v5111
        %v5113 = vand.u32 %v5112, 4294901760
        %5114 = vmatpush1.msra.mxu0 %v5113
        %5115 = vmatprep.subr.mxu0 0.0
        %5116 = vmatpush1.msra.mxu0 0.0
        %5117 = vmatprep.subr.mxu0 0.0
        %5118 = vmatpush1.msra.mxu0 0.0
        %5119 = vmatprep.subr.mxu0 0.0
        %5120 = vmatpush1.msra.mxu0 0.0
        %5121 = vmatprep.subr.mxu0 0.0
        %5122 = vmatpush1.msra.mxu0 0.0
        %5123 = vmatprep.subr.mxu0 0.0
        %5124 = vmatpush1.msra.mxu0 0.0
        %5125 = vmatprep.subr.mxu0 0.0
        %5126 = vmatpush1.msra.mxu0 0.0
        %5127 = vmatprep.subr.mxu0 0.0
        %5128 = vmatpush1.msra.mxu0 0.0
        %5129 = vmatprep.subr.mxu0 0.0
        %5130 = vmatpush1.msra.mxu0 0.0
        %5131 = vmatprep.subr.mxu0 0.0
        %5132 = vmatpush1.msra.mxu0 0.0
        %5133 = vmatprep.subr.mxu0 0.0
        %5134 = vmatpush1.msra.mxu0 0.0
        %5135 = vmatprep.subr.mxu0 0.0
        %5136 = vmatpush1.msra.mxu0 0.0
        %5137 = vmatprep.subr.mxu0 0.0
        %5138 = vmatpush1.msra.mxu0 0.0
        %5139 = vmatprep.subr.mxu0 0.0
        %5140 = vmatpush1.msra.mxu0 0.0
        %5141 = vmatprep.subr.mxu0 0.0
        %5142 = vmatpush1.msra.mxu0 0.0
        %5143 = vmatprep.subr.mxu0 0.0
        %5144 = vmatpush1.msra.mxu0 0.0
        %5145 = vmatprep.subr.mxu0 0.0
        %5146 = vmatpush1.msra.mxu0 0.0
        %5147 = vmatprep.subr.mxu0 0.0
        %5148 = vmatpush1.msra.mxu0 0.0
        %5149 = vmatprep.subr.mxu0 0.0
        %5150 = vmatpush1.msra.mxu0 0.0
        %5151 = vmatprep.subr.mxu0 0.0
        %5152 = vmatpush1.msra.mxu0 0.0
        %5153 = vmatprep.subr.mxu0 0.0
        %5154 = vmatpush1.msra.mxu0 0.0
        %5155 = vmatprep.subr.mxu0 0.0
        %5156 = vmatpush1.msra.mxu0 0.0
        %5157 = vmatprep.subr.mxu0 0.0
        %5158 = vmatpush1.msra.mxu0 0.0
        %5159 = vmatprep.subr.mxu0 0.0
        %5160 = vmatpush1.msra.mxu0 0.0
        %5161 = vmatprep.subr.mxu0 0.0
        %5162 = vmatpush1.msra.mxu0 0.0
        %5163 = vmatprep.mubr.f32.mxu0 0.0
        %v5164 = vand.u32 %v4428, 4294901760
        %5165 = vmatmul.mubr.f32.gmra.mrb[0].mxu0 %v5164
        %v5166 = vpop.f32.mrb[0].mxu0
        %v5167 = vadd.f32 %v5056, %v5166
        %v5168 = vpop.f32.mrb[0].mxu0
        %5169 = vdwg.mxu0
        %5170 = vmatprep.subr.mxu0 0.0
        %v5171 = vand.u32 %v4968, 4294901760
        %v5172 = vsub.f32 %v4968, %v5171
        %5173 = vmatpush1.msra.mxu0 %v5172
        %5174 = vmatprep.subr.mxu0 0.0
        %v5175 = vand.u32 %v4969, 4294901760
        %v5176 = vsub.f32 %v4969, %v5175
        %5177 = vmatpush1.msra.mxu0 %v5176
        %5178 = vmatprep.subr.mxu0 0.0
        %v5179 = vand.u32 %v4970, 4294901760
        %v5180 = vsub.f32 %v4970, %v5179
        %5181 = vmatpush1.msra.mxu0 %v5180
        %5182 = vmatprep.subr.mxu0 0.0
        %v5183 = vand.u32 %v4971, 4294901760
        %v5184 = vsub.f32 %v4971, %v5183
        %5185 = vmatpush1.msra.mxu0 %v5184
        %5186 = vmatprep.subr.mxu0 0.0
        %v5187 = vand.u32 %v4972, 4294901760
        %v5188 = vsub.f32 %v4972, %v5187
        %5189 = vmatpush1.msra.mxu0 %v5188
        %5190 = vmatprep.subr.mxu0 0.0
        %v5191 = vand.u32 %v4973, 4294901760
        %v5192 = vsub.f32 %v4973, %v5191
        %5193 = vmatpush1.msra.mxu0 %v5192
        %5194 = vmatprep.subr.mxu0 0.0
        %v5195 = vand.u32 %v4974, 4294901760
        %v5196 = vsub.f32 %v4974, %v5195
        %5197 = vmatpush1.msra.mxu0 %v5196
        %5198 = vmatprep.subr.mxu0 0.0
        %v5199 = vand.u32 %v4975, 4294901760
        %v5200 = vsub.f32 %v4975, %v5199
        %5201 = vmatpush1.msra.mxu0 %v5200
        %5202 = vmatprep.subr.mxu0 0.0
        %5203 = vmatpush1.msra.mxu0 0.0
        %5204 = vmatprep.subr.mxu0 0.0
        %5205 = vmatpush1.msra.mxu0 0.0
        %5206 = vmatprep.subr.mxu0 0.0
        %5207 = vmatpush1.msra.mxu0 0.0
        %5208 = vmatprep.subr.mxu0 0.0
        %5209 = vmatpush1.msra.mxu0 0.0
        %5210 = vmatprep.subr.mxu0 0.0
        %5211 = vmatpush1.msra.mxu0 0.0
        %5212 = vmatprep.subr.mxu0 0.0
        %5213 = vmatpush1.msra.mxu0 0.0
        %5214 = vmatprep.subr.mxu0 0.0
        %5215 = vmatpush1.msra.mxu0 0.0
        %5216 = vmatprep.subr.mxu0 0.0
        %5217 = vmatpush1.msra.mxu0 0.0
        %5218 = vmatprep.subr.mxu0 0.0
        %5219 = vmatpush1.msra.mxu0 0.0
        %5220 = vmatprep.subr.mxu0 0.0
        %5221 = vmatpush1.msra.mxu0 0.0
        %5222 = vmatprep.subr.mxu0 0.0
        %5223 = vmatpush1.msra.mxu0 0.0
        %5224 = vmatprep.subr.mxu0 0.0
        %5225 = vmatpush1.msra.mxu0 0.0
        %5226 = vmatprep.subr.mxu0 0.0
        %5227 = vmatpush1.msra.mxu0 0.0
        %5228 = vmatprep.subr.mxu0 0.0
        %5229 = vmatpush1.msra.mxu0 0.0
        %5230 = vmatprep.subr.mxu0 0.0
        %5231 = vmatpush1.msra.mxu0 0.0
        %5232 = vmatprep.subr.mxu0 0.0
        %5233 = vmatpush1.msra.mxu0 0.0
        %5234 = vmatprep.subr.mxu0 0.0
        %5235 = vmatpush1.msra.mxu0 0.0
        %5236 = vmatprep.subr.mxu0 0.0
        %5237 = vmatpush1.msra.mxu0 0.0
        %5238 = vmatprep.subr.mxu0 0.0
        %5239 = vmatpush1.msra.mxu0 0.0
        %5240 = vmatprep.subr.mxu0 0.0
        %5241 = vmatpush1.msra.mxu0 0.0
        %5242 = vmatprep.subr.mxu0 0.0
        %5243 = vmatpush1.msra.mxu0 0.0
        %5244 = vmatprep.subr.mxu0 0.0
        %5245 = vmatpush1.msra.mxu0 0.0
        %5246 = vmatprep.subr.mxu0 0.0
        %5247 = vmatpush1.msra.mxu0 0.0
        %5248 = vmatprep.subr.mxu0 0.0
        %5249 = vmatpush1.msra.mxu0 0.0
        %5250 = vmatprep.mubr.f32.mxu0 0.0
        %v5251 = vand.u32 %v4428, 4294901760
        %v5252 = vsub.f32 %v4428, %v5251
        %5253 = vmatmul.mubr.f32.gmra.mrb[0].mxu0 %v5252
        %v5254 = vpop.f32.mrb[0].mxu0
        %v5255 = vadd.f32 %v5167, %v5254
        %v5256 = vpop.f32.mrb[0].mxu0
        %5257 = vdwg.mxu0
        %5258 = vmatprep.subr.mxu0 0.0
        %v5259 = vand.u32 %v4968, 4294901760
        %5260 = vmatpush1.msra.mxu0 %v5259
        %5261 = vmatprep.subr.mxu0 0.0
        %v5262 = vand.u32 %v4969, 4294901760
        %5263 = vmatpush1.msra.mxu0 %v5262
        %5264 = vmatprep.subr.mxu0 0.0
        %v5265 = vand.u32 %v4970, 4294901760
        %5266 = vmatpush1.msra.mxu0 %v5265
        %5267 = vmatprep.subr.mxu0 0.0
        %v5268 = vand.u32 %v4971, 4294901760
        %5269 = vmatpush1.msra.mxu0 %v5268
        %5270 = vmatprep.subr.mxu0 0.0
        %v5271 = vand.u32 %v4972, 4294901760
        %5272 = vmatpush1.msra.mxu0 %v5271
        %5273 = vmatprep.subr.mxu0 0.0
        %v5274 = vand.u32 %v4973, 4294901760
        %5275 = vmatpush1.msra.mxu0 %v5274
        %5276 = vmatprep.subr.mxu0 0.0
        %v5277 = vand.u32 %v4974, 4294901760
        %5278 = vmatpush1.msra.mxu0 %v5277
        %5279 = vmatprep.subr.mxu0 0.0
        %v5280 = vand.u32 %v4975, 4294901760
        %5281 = vmatpush1.msra.mxu0 %v5280
        %5282 = vmatprep.subr.mxu0 0.0
        %5283 = vmatpush1.msra.mxu0 0.0
        %5284 = vmatprep.subr.mxu0 0.0
        %5285 = vmatpush1.msra.mxu0 0.0
        %5286 = vmatprep.subr.mxu0 0.0
        %5287 = vmatpush1.msra.mxu0 0.0
        %5288 = vmatprep.subr.mxu0 0.0
        %5289 = vmatpush1.msra.mxu0 0.0
        %5290 = vmatprep.subr.mxu0 0.0
        %5291 = vmatpush1.msra.mxu0 0.0
        %5292 = vmatprep.subr.mxu0 0.0
        %5293 = vmatpush1.msra.mxu0 0.0
        %5294 = vmatprep.subr.mxu0 0.0
        %5295 = vmatpush1.msra.mxu0 0.0
        %5296 = vmatprep.subr.mxu0 0.0
        %5297 = vmatpush1.msra.mxu0 0.0
        %5298 = vmatprep.subr.mxu0 0.0
        %5299 = vmatpush1.msra.mxu0 0.0
        %5300 = vmatprep.subr.mxu0 0.0
        %5301 = vmatpush1.msra.mxu0 0.0
        %5302 = vmatprep.subr.mxu0 0.0
        %5303 = vmatpush1.msra.mxu0 0.0
        %5304 = vmatprep.subr.mxu0 0.0
        %5305 = vmatpush1.msra.mxu0 0.0
        %5306 = vmatprep.subr.mxu0 0.0
        %5307 = vmatpush1.msra.mxu0 0.0
        %5308 = vmatprep.subr.mxu0 0.0
        %5309 = vmatpush1.msra.mxu0 0.0
        %5310 = vmatprep.subr.mxu0 0.0
        %5311 = vmatpush1.msra.mxu0 0.0
        %5312 = vmatprep.subr.mxu0 0.0
        %5313 = vmatpush1.msra.mxu0 0.0
        %5314 = vmatprep.subr.mxu0 0.0
        %5315 = vmatpush1.msra.mxu0 0.0
        %5316 = vmatprep.subr.mxu0 0.0
        %5317 = vmatpush1.msra.mxu0 0.0
        %5318 = vmatprep.subr.mxu0 0.0
        %5319 = vmatpush1.msra.mxu0 0.0
        %5320 = vmatprep.subr.mxu0 0.0
        %5321 = vmatpush1.msra.mxu0 0.0
        %5322 = vmatprep.subr.mxu0 0.0
        %5323 = vmatpush1.msra.mxu0 0.0
        %5324 = vmatprep.subr.mxu0 0.0
        %5325 = vmatpush1.msra.mxu0 0.0
        %5326 = vmatprep.subr.mxu0 0.0
        %5327 = vmatpush1.msra.mxu0 0.0
        %5328 = vmatprep.subr.mxu0 0.0
        %5329 = vmatpush1.msra.mxu0 0.0
        %5330 = vmatprep.mubr.f32.mxu0 0.0
        %v5331 = vand.u32 %v4428, 4294901760
        %v5332 = vsub.f32 %v4428, %v5331
        %v5333 = vand.u32 %v5332, 4294901760
        %5334 = vmatmul.mubr.f32.gmra.mrb[0].mxu0 %v5333
        %v5335 = vpop.f32.mrb[0].mxu0
        %v5336 = vadd.f32 %v5255, %v5335
        %v5337 = vpop.f32.mrb[0].mxu0
        %5338 = vdwg.mxu0
        %5339 = vmatprep.subr.mxu0 0.0
        %v5340 = vand.u32 %v4968, 4294901760
        %v5341 = vsub.f32 %v4968, %v5340
        %v5342 = vand.u32 %v5341, 4294901760
        %5343 = vmatpush1.msra.mxu0 %v5342
        %5344 = vmatprep.subr.mxu0 0.0
        %v5345 = vand.u32 %v4969, 4294901760
        %v5346 = vsub.f32 %v4969, %v5345
        %v5347 = vand.u32 %v5346, 4294901760
        %5348 = vmatpush1.msra.mxu0 %v5347
        %5349 = vmatprep.subr.mxu0 0.0
        %v5350 = vand.u32 %v4970, 4294901760
        %v5351 = vsub.f32 %v4970, %v5350
        %v5352 = vand.u32 %v5351, 4294901760
        %5353 = vmatpush1.msra.mxu0 %v5352
        %5354 = vmatprep.subr.mxu0 0.0
        %v5355 = vand.u32 %v4971, 4294901760
        %v5356 = vsub.f32 %v4971, %v5355
        %v5357 = vand.u32 %v5356, 4294901760
        %5358 = vmatpush1.msra.mxu0 %v5357
        %5359 = vmatprep.subr.mxu0 0.0
        %v5360 = vand.u32 %v4972, 4294901760
        %v5361 = vsub.f32 %v4972, %v5360
        %v5362 = vand.u32 %v5361, 4294901760
        %5363 = vmatpush1.msra.mxu0 %v5362
        %5364 = vmatprep.subr.mxu0 0.0
        %v5365 = vand.u32 %v4973, 4294901760
        %v5366 = vsub.f32 %v4973, %v5365
        %v5367 = vand.u32 %v5366, 4294901760
        %5368 = vmatpush1.msra.mxu0 %v5367
        %5369 = vmatprep.subr.mxu0 0.0
        %v5370 = vand.u32 %v4974, 4294901760
        %v5371 = vsub.f32 %v4974, %v5370
        %v5372 = vand.u32 %v5371, 4294901760
        %5373 = vmatpush1.msra.mxu0 %v5372
        %5374 = vmatprep.subr.mxu0 0.0
        %v5375 = vand.u32 %v4975, 4294901760
        %v5376 = vsub.f32 %v4975, %v5375
        %v5377 = vand.u32 %v5376, 4294901760
        %5378 = vmatpush1.msra.mxu0 %v5377
        %5379 = vmatprep.subr.mxu0 0.0
        %5380 = vmatpush1.msra.mxu0 0.0
        %5381 = vmatprep.subr.mxu0 0.0
        %5382 = vmatpush1.msra.mxu0 0.0
        %5383 = vmatprep.subr.mxu0 0.0
        %5384 = vmatpush1.msra.mxu0 0.0
        %5385 = vmatprep.subr.mxu0 0.0
        %5386 = vmatpush1.msra.mxu0 0.0
        %5387 = vmatprep.subr.mxu0 0.0
        %5388 = vmatpush1.msra.mxu0 0.0
        %5389 = vmatprep.subr.mxu0 0.0
        %5390 = vmatpush1.msra.mxu0 0.0
        %5391 = vmatprep.subr.mxu0 0.0
        %5392 = vmatpush1.msra.mxu0 0.0
        %5393 = vmatprep.subr.mxu0 0.0
        %5394 = vmatpush1.msra.mxu0 0.0
        %5395 = vmatprep.subr.mxu0 0.0
        %5396 = vmatpush1.msra.mxu0 0.0
        %5397 = vmatprep.subr.mxu0 0.0
        %5398 = vmatpush1.msra.mxu0 0.0
        %5399 = vmatprep.subr.mxu0 0.0
        %5400 = vmatpush1.msra.mxu0 0.0
        %5401 = vmatprep.subr.mxu0 0.0
        %5402 = vmatpush1.msra.mxu0 0.0
        %5403 = vmatprep.subr.mxu0 0.0
        %5404 = vmatpush1.msra.mxu0 0.0
        %5405 = vmatprep.subr.mxu0 0.0
        %5406 = vmatpush1.msra.mxu0 0.0
        %5407 = vmatprep.subr.mxu0 0.0
        %5408 = vmatpush1.msra.mxu0 0.0
        %5409 = vmatprep.subr.mxu0 0.0
        %5410 = vmatpush1.msra.mxu0 0.0
        %5411 = vmatprep.subr.mxu0 0.0
        %5412 = vmatpush1.msra.mxu0 0.0
        %5413 = vmatprep.subr.mxu0 0.0
        %5414 = vmatpush1.msra.mxu0 0.0
        %5415 = vmatprep.subr.mxu0 0.0
        %5416 = vmatpush1.msra.mxu0 0.0
        %5417 = vmatprep.subr.mxu0 0.0
        %5418 = vmatpush1.msra.mxu0 0.0
        %5419 = vmatprep.subr.mxu0 0.0
        %5420 = vmatpush1.msra.mxu0 0.0
        %5421 = vmatprep.subr.mxu0 0.0
        %5422 = vmatpush1.msra.mxu0 0.0
        %5423 = vmatprep.subr.mxu0 0.0
        %5424 = vmatpush1.msra.mxu0 0.0
        %5425 = vmatprep.subr.mxu0 0.0
        %5426 = vmatpush1.msra.mxu0 0.0
        %5427 = vmatprep.mubr.f32.mxu0 0.0
        %v5428 = vand.u32 %v4428, 4294901760
        %5429 = vmatmul.mubr.f32.gmra.mrb[0].mxu0 %v5428
        %v5430 = vpop.f32.mrb[0].mxu0
        %v5431 = vadd.f32 %v5336, %v5430
        %v5432 = vpop.f32.mrb[0].mxu0
        %5433 = vdwg.mxu0
        %5434 = vmatprep.subr.mxu0 0.0
        %v5435 = vand.u32 %v4968, 4294901760
        %5436 = vmatpush1.msra.mxu0 %v5435
        %5437 = vmatprep.subr.mxu0 0.0
        %v5438 = vand.u32 %v4969, 4294901760
        %5439 = vmatpush1.msra.mxu0 %v5438
        %5440 = vmatprep.subr.mxu0 0.0
        %v5441 = vand.u32 %v4970, 4294901760
        %5442 = vmatpush1.msra.mxu0 %v5441
        %5443 = vmatprep.subr.mxu0 0.0
        %v5444 = vand.u32 %v4971, 4294901760
        %5445 = vmatpush1.msra.mxu0 %v5444
        %5446 = vmatprep.subr.mxu0 0.0
        %v5447 = vand.u32 %v4972, 4294901760
        %5448 = vmatpush1.msra.mxu0 %v5447
        %5449 = vmatprep.subr.mxu0 0.0
        %v5450 = vand.u32 %v4973, 4294901760
        %5451 = vmatpush1.msra.mxu0 %v5450
        %5452 = vmatprep.subr.mxu0 0.0
        %v5453 = vand.u32 %v4974, 4294901760
        %5454 = vmatpush1.msra.mxu0 %v5453
        %5455 = vmatprep.subr.mxu0 0.0
        %v5456 = vand.u32 %v4975, 4294901760
        %5457 = vmatpush1.msra.mxu0 %v5456
        %5458 = vmatprep.subr.mxu0 0.0
        %5459 = vmatpush1.msra.mxu0 0.0
        %5460 = vmatprep.subr.mxu0 0.0
        %5461 = vmatpush1.msra.mxu0 0.0
        %5462 = vmatprep.subr.mxu0 0.0
        %5463 = vmatpush1.msra.mxu0 0.0
        %5464 = vmatprep.subr.mxu0 0.0
        %5465 = vmatpush1.msra.mxu0 0.0
        %5466 = vmatprep.subr.mxu0 0.0
        %5467 = vmatpush1.msra.mxu0 0.0
        %5468 = vmatprep.subr.mxu0 0.0
        %5469 = vmatpush1.msra.mxu0 0.0
        %5470 = vmatprep.subr.mxu0 0.0
        %5471 = vmatpush1.msra.mxu0 0.0
        %5472 = vmatprep.subr.mxu0 0.0
        %5473 = vmatpush1.msra.mxu0 0.0
        %5474 = vmatprep.subr.mxu0 0.0
        %5475 = vmatpush1.msra.mxu0 0.0
        %5476 = vmatprep.subr.mxu0 0.0
        %5477 = vmatpush1.msra.mxu0 0.0
        %5478 = vmatprep.subr.mxu0 0.0
        %5479 = vmatpush1.msra.mxu0 0.0
        %5480 = vmatprep.subr.mxu0 0.0
        %5481 = vmatpush1.msra.mxu0 0.0
        %5482 = vmatprep.subr.mxu0 0.0
        %5483 = vmatpush1.msra.mxu0 0.0
        %5484 = vmatprep.subr.mxu0 0.0
        %5485 = vmatpush1.msra.mxu0 0.0
        %5486 = vmatprep.subr.mxu0 0.0
        %5487 = vmatpush1.msra.mxu0 0.0
        %5488 = vmatprep.subr.mxu0 0.0
        %5489 = vmatpush1.msra.mxu0 0.0
        %5490 = vmatprep.subr.mxu0 0.0
        %5491 = vmatpush1.msra.mxu0 0.0
        %5492 = vmatprep.subr.mxu0 0.0
        %5493 = vmatpush1.msra.mxu0 0.0
        %5494 = vmatprep.subr.mxu0 0.0
        %5495 = vmatpush1.msra.mxu0 0.0
        %5496 = vmatprep.subr.mxu0 0.0
        %5497 = vmatpush1.msra.mxu0 0.0
        %5498 = vmatprep.subr.mxu0 0.0
        %5499 = vmatpush1.msra.mxu0 0.0
        %5500 = vmatprep.subr.mxu0 0.0
        %5501 = vmatpush1.msra.mxu0 0.0
        %5502 = vmatprep.subr.mxu0 0.0
        %5503 = vmatpush1.msra.mxu0 0.0
        %5504 = vmatprep.subr.mxu0 0.0
        %5505 = vmatpush1.msra.mxu0 0.0
        %5506 = vmatprep.mubr.f32.mxu0 0.0
        %v5507 = vand.u32 %v4428, 4294901760
        %5508 = vmatmul.mubr.f32.gmra.mrb[0].mxu0 %v5507
        %v5509 = vpop.f32.mrb[0].mxu0
        %v5510 = vadd.f32 %v5431, %v5509
        %v5511 = vpop.f32.mrb[0].mxu0
        %5512 = vdwg.mxu0
        %5513 = vst.msk [vmem:[%s796] sm:$0xff] %vm802, %v5510
        %s5514 = sand.u32 %s336, 1
        %s5515 = scalar_lea.sflag [#allocation4], %s5514
        %s5516 = sand.u32 %s336, 1
        %s5517 = smul.addr %s5516, 8
        %s5518 = scalar_lea.vmem [#allocation21], %s5517
        %s5519 = sand.u32 %s45, 1
        %s5520 = scalar_lea.sflag [#allocation23], %s5519
        %s5521 = sand.u32 %s364, 1
        %s5522 = smul.addr %s5521, 8
        %s5523 = scalar_lea.vmem [#allocation22], %s5522
        %s5524 = sand.u32 %s45, 1
        %s5525 = scalar_lea.sflag [#allocation23], %s5524
        %s5526 = sand.u32 %s392, 1
        %s5527 = smul.addr %s5526, 8
        %s5528 = scalar_lea.vmem [#allocation24], %s5527
        %s5529 = sand.u32 %s45, 1
        %s5530 = scalar_lea.sflag [#allocation26], %s5529
        %s5531 = sand.u32 %s420, 1
        %s5532 = smul.addr %s5531, 8
        %s5533 = scalar_lea.vmem [#allocation25], %s5532
        %s5534 = sand.u32 %s45, 1
        %s5535 = scalar_lea.sflag [#allocation26], %s5534
        %s5536 = sand.u32 %s448, 1
        %s5537 = smul.addr %s5536, 8
        %s5538 = scalar_lea.vmem [#allocation27], %s5537
        // Predicated region
        $region117: #{tpu_custom_call.1} parent=67 // pred_check
          %p5539 = pneg %p346
        $region118: #{tpu_custom_call.1} parent=67 // pred_check_branch
          %5541 = sbr.rel (%p5539) target = $region120
        $region119: #{tpu_custom_call.1} parent=67 // pred_region
          %s5543 = ssub.s32 128, 128
          %5544 = vsyncadd %s5515, %s5543
          %s5545 = smul.addr %s49, 2
          %s5546 = sadd.s32 %s50, %s5545
          %s5547 = smul.addr %s5546, 128
          %s5548 = scalar_lea.hbm %s12, %s5547
          %s5550 = sshll.u32 %s5518, 4
          %s5551 = int_to_ptr.vmem [resolvable:$true] %s5550
          %5553 = dma.vmem_to_hbm [thread:$0]  %s5551, 128, %s5548, %s5515
        $region120: #{tpu_custom_call.1} parent=67 // pred_fallthru
          _
        // Predicated region
        $region121: #{tpu_custom_call.1} parent=67 // pred_check
          %p5554 = pneg %p374
        $region122: #{tpu_custom_call.1} parent=67 // pred_check_branch
          %5556 = sbr.rel (%p5554) target = $region124
        $region123: #{tpu_custom_call.1} parent=67 // pred_region
          %s5558 = ssub.s32 128, 128
          %5559 = vsyncadd %s5520, %s5558
          %s5560 = smul.addr %s49, 2
          %s5561 = sadd.s32 %s50, %s5560
          %s5562 = smul.addr %s5561, 128
          %s5563 = scalar_lea.hbm %s13, %s5562
          %s5565 = sshll.u32 %s5523, 4
          %s5566 = int_to_ptr.vmem [resolvable:$true] %s5565
          %5568 = dma.vmem_to_hbm [thread:$0]  %s5566, 128, %s5563, %s5520
        $region124: #{tpu_custom_call.1} parent=67 // pred_fallthru
          _
        // Predicated region
        $region125: #{tpu_custom_call.1} parent=67 // pred_check
          %p5569 = pneg %p402
        $region126: #{tpu_custom_call.1} parent=67 // pred_check_branch
          %5571 = sbr.rel (%p5569) target = $region128
        $region127: #{tpu_custom_call.1} parent=67 // pred_region
          %s5573 = ssub.s32 128, 128
          %5574 = vsyncadd %s5525, %s5573
          %s5575 = smul.addr %s49, 2
          %s5576 = sadd.s32 %s50, %s5575
          %s5577 = smul.addr %s5576, 128
          %s5578 = scalar_lea.hbm %s14, %s5577
          %s5580 = sshll.u32 %s5528, 4
          %s5581 = int_to_ptr.vmem [resolvable:$true] %s5580
          %5583 = dma.vmem_to_hbm [thread:$0]  %s5581, 128, %s5578, %s5525
        $region128: #{tpu_custom_call.1} parent=67 // pred_fallthru
          _
        // Predicated region
        $region129: #{tpu_custom_call.1} parent=67 // pred_check
          %p5584 = pneg %p430
        $region130: #{tpu_custom_call.1} parent=67 // pred_check_branch
          %5586 = sbr.rel (%p5584) target = $region132
        $region131: #{tpu_custom_call.1} parent=67 // pred_region
          %s5588 = ssub.s32 128, 128
          %5589 = vsyncadd %s5530, %s5588
          %s5590 = smul.addr %s49, 2
          %s5591 = sadd.s32 %s50, %s5590
          %s5592 = smul.addr %s5591, 128
          %s5593 = scalar_lea.hbm %s15, %s5592
          %s5595 = sshll.u32 %s5533, 4
          %s5596 = int_to_ptr.vmem [resolvable:$true] %s5595
          %5598 = dma.vmem_to_hbm [thread:$0]  %s5596, 128, %s5593, %s5530
        $region132: #{tpu_custom_call.1} parent=67 // pred_fallthru
          _
        // Predicated region
        $region133: #{tpu_custom_call.1} parent=67 // pred_check
          %p5599 = pneg %p458
        $region134: #{tpu_custom_call.1} parent=67 // pred_check_branch
          %5601 = sbr.rel (%p5599) target = $region136
        $region135: #{tpu_custom_call.1} parent=67 // pred_region
          %s5603 = ssub.s32 128, 128
          %5604 = vsyncadd %s5535, %s5603
          %s5605 = smul.addr %s49, 2
          %s5606 = sadd.s32 %s50, %s5605
          %s5607 = smul.addr %s5606, 128
          %s5608 = scalar_lea.hbm %s16, %s5607
          %s5610 = sshll.u32 %s5538, 4
          %s5611 = int_to_ptr.vmem [resolvable:$true] %s5610
          %5613 = dma.vmem_to_hbm [thread:$0]  %s5611, 128, %s5608, %s5535
        $region136: #{tpu_custom_call.1} parent=67 // pred_fallthru
          _
      $region68: #{tpu_custom_call.1} parent=5 // pred_fallthru
        _
      %p5614 = scmp.le.s32.totalorder 2, %s40
      // Predicated region
      $region137: #{tpu_custom_call.1} parent=5 // pred_check
        %p5615 = pneg %p5614
      $region138: #{tpu_custom_call.1} parent=5 // pred_check_branch
        %5617 = sbr.rel (%p5615) target = $region140
      $region139: #{tpu_custom_call.1} parent=5 // pred_region
        %s5618 = ssub.s32 %s40, 2
        // Predicated region
        $region141: #{tpu_custom_call.1} parent=139 // pred_check
          %p5619 = pneg %p352
        $region142: #{tpu_custom_call.1} parent=139 // pred_check_branch
          %5621 = sbr.rel (%p5619) target = $region144
        $region143: #{tpu_custom_call.1} parent=139 // pred_region
          %s5622 = sand.u32 %s337, 1
          %s5623 = scalar_lea.sflag [#allocation4], %s5622
          %s5624 = sand.u32 %s337, 1
          %s5625 = smul.addr %s5624, 8
          %s5626 = scalar_lea.vmem [#allocation21], %s5625
          %5627 = dma.done %s5623, 128
        $region144: #{tpu_custom_call.1} parent=139 // pred_fallthru
          _
        // Predicated region
        $region145: #{tpu_custom_call.1} parent=139 // pred_check
          %p5628 = pneg %p380
        $region146: #{tpu_custom_call.1} parent=139 // pred_check_branch
          %5630 = sbr.rel (%p5628) target = $region148
        $region147: #{tpu_custom_call.1} parent=139 // pred_region
          %s5631 = sand.u32 %s46, 1
          %s5632 = scalar_lea.sflag [#allocation23], %s5631
          %s5633 = sand.u32 %s365, 1
          %s5634 = smul.addr %s5633, 8
          %s5635 = scalar_lea.vmem [#allocation22], %s5634
          %5636 = dma.done %s5632, 128
        $region148: #{tpu_custom_call.1} parent=139 // pred_fallthru
          _
        // Predicated region
        $region149: #{tpu_custom_call.1} parent=139 // pred_check
          %p5637 = pneg %p408
        $region150: #{tpu_custom_call.1} parent=139 // pred_check_branch
          %5639 = sbr.rel (%p5637) target = $region152
        $region151: #{tpu_custom_call.1} parent=139 // pred_region
          %s5640 = sand.u32 %s46, 1
          %s5641 = scalar_lea.sflag [#allocation23], %s5640
          %s5642 = sand.u32 %s393, 1
          %s5643 = smul.addr %s5642, 8
          %s5644 = scalar_lea.vmem [#allocation24], %s5643
          %5645 = dma.done %s5641, 128
        $region152: #{tpu_custom_call.1} parent=139 // pred_fallthru
          _
        // Predicated region
        $region153: #{tpu_custom_call.1} parent=139 // pred_check
          %p5646 = pneg %p436
        $region154: #{tpu_custom_call.1} parent=139 // pred_check_branch
          %5648 = sbr.rel (%p5646) target = $region156
        $region155: #{tpu_custom_call.1} parent=139 // pred_region
          %s5649 = sand.u32 %s46, 1
          %s5650 = scalar_lea.sflag [#allocation26], %s5649
          %s5651 = sand.u32 %s421, 1
          %s5652 = smul.addr %s5651, 8
          %s5653 = scalar_lea.vmem [#allocation25], %s5652
          %5654 = dma.done %s5650, 128
        $region156: #{tpu_custom_call.1} parent=139 // pred_fallthru
          _
        // Predicated region
        $region157: #{tpu_custom_call.1} parent=139 // pred_check
          %p5655 = pneg %p464
        $region158: #{tpu_custom_call.1} parent=139 // pred_check_branch
          %5657 = sbr.rel (%p5655) target = $region160
        $region159: #{tpu_custom_call.1} parent=139 // pred_region
          %s5658 = sand.u32 %s46, 1
          %s5659 = scalar_lea.sflag [#allocation26], %s5658
          %s5660 = sand.u32 %s449, 1
          %s5661 = smul.addr %s5660, 8
          %s5662 = scalar_lea.vmem [#allocation27], %s5661
          %5663 = dma.done %s5659, 128
        $region160: #{tpu_custom_call.1} parent=139 // pred_fallthru
          _
      $region140: #{tpu_custom_call.1} parent=5 // pred_fallthru
        _
    $region6: #{tpu_custom_call.1} parent=1 // loop_footer
      %s44 = sadd.s32 1, %s40
    $region7: #{tpu_custom_call.1} parent=1 // loop_footer_branch
      %39 = sbr.rel target = $region3
    $region8: #{tpu_custom_call.1} parent=1 // loop_exit
      _
    %5664 = vsyncpa [#allocation3], 1
    %s5665 = scalar_lea.sflag [#allocation3], 1
    %5666 = vsyncpa %s5665, 1
    %5667 = vsyncpa [#allocation6], 1
    %5668 = vsyncpa [#allocation9], 1
    %5669 = vsyncpa [#allocation12], 1
    %5670 = vsyncpa [#allocation15], 1
    %5671 = vsyncpa [#allocation18], 1
    %5672 = vsyncpa [#allocation4], 1
    %s5673 = scalar_lea.sflag [#allocation4], 1
    %5674 = vsyncpa %s5673, 1
    %5675 = vsyncpa [#allocation23], 1
    %s5676 = scalar_lea.sflag [#allocation23], 1
    %5677 = vsyncpa %s5676, 1
    %5678 = vsyncpa [#allocation26], 1
    %s5679 = scalar_lea.sflag [#allocation26], 1
    %5680 = vsyncpa %s5679, 1

</llo_original>
